<compile_context>
chip_gen: v6e
topology: v6e:2x2x1
jax: 0.10.0
libtpu: 0.0.40
codegen_flags: <defaults>
</compile_context>

<pallas_src>
import functools

import jax
import jax.numpy as jnp
from jax.experimental import pallas as pl
from jax.experimental.pallas import tpu as pltpu


def _round_up(n, m):
    return ((n + m - 1) // m) * m


def _apply_activation(h, activation):
    if activation == "tanh":
        return jnp.tanh(h)
    if activation == "relu":
        return jnp.maximum(h, 0.0)
    if activation == "lrelu":                      # nn.LeakyReLU default slope
        return jnp.where(h > 0, h, 0.01 * h)
    raise ValueError(f"unknown activation {activation}")


def _decoder_kernel(x_ref, cond_ref, wh_ref, wa_ref, bab_ref,
                    w1x_ref, w1c_ref, b1_ref, *rest,
                    activation, n_layers):
    """One batch tile. rest = (w2, b2, ..., wN, bN, out_ref)."""
    out_ref = rest[-1]
    tail = rest[:-1]

    x = x_ref[...]                                 # (TB, D0)  f32
    cond = cond_ref[...]                           # (TB, C)   f32
    xb = x.astype(jnp.bfloat16)                    # MXU operands in bf16
    condb = cond.astype(jnp.bfloat16)

    # attn = softmax(elu(cond @ Wh + x @ Wa + (bh + ba)), axis=1)  -- f32 accumulate
    z = (jnp.dot(condb, wh_ref[...], preferred_element_type=jnp.float32)
         + jnp.dot(xb, wa_ref[...], preferred_element_type=jnp.float32)
         + bab_ref[...])
    # ELU(alpha=1): z if z > 0 else exp(z) - 1   (clamp exp arg for safety)
    z = jnp.where(z > 0, z, jnp.exp(jnp.minimum(z, 0.0)) - 1.0)
    # numerically stable softmax over the condition lanes (f32, VPU/EUP)
    z = z - jnp.max(z, axis=1, keepdims=True)
    e = jnp.exp(z)
    inv = pl.reciprocal(jnp.sum(e, axis=1, keepdims=True), approx=True)   # EUP
    attn = e * inv
    # attn_condition = attn * condition_h ; torch .squeeze() is a no-op for B > 1
    attn_cond = (attn * cond).astype(jnp.bfloat16)

    # Layer 0, concat-free:  cat([x, attn_cond]) @ W1  ==  x @ W1x + attn_cond @ W1c
    h = (jnp.dot(xb, w1x_ref[...], preferred_element_type=jnp.float32)
         + jnp.dot(attn_cond, w1c_ref[...], preferred_element_type=jnp.float32)
         + b1_ref[...])
    if n_layers > 1:
        h = _apply_activation(h, activation)

    for li in range(1, n_layers):
        w_ref = tail[2 * (li - 1)]
        b_ref = tail[2 * (li - 1) + 1]
        h = (jnp.dot(h.astype(jnp.bfloat16), w_ref[...],
                     preferred_element_type=jnp.float32) + b_ref[...])
        if li != n_layers - 1:
            h = _apply_activation(h, activation)

    out_ref[...] = h.astype(out_ref.dtype)


def prepare_decoder_params(torch_params, dims, condition_size, lane_pad=128):
    """Convert PyTorch-layout params ((out,in) weights) into kernel layout.

    Transposes to (in, out), splits the first MLP weight into x / condition parts
    (kills the in-kernel concat), fuses the two attention biases, zero-pads hidden
    and output dims to `lane_pad` multiples (use 256 on v6e/v7x for large dims),
    and stores all matmul weights in bf16. x's feature dim D0 is NOT padded.
    """
    D0, C = dims[0], condition_size
    padded = [_round_up(d, lane_pad) for d in dims[1:]]

    (wh_t, bh), (wa_t, ba) = torch_params["attn_h"], torch_params["attn"]
    wh = wh_t.T.astype(jnp.bfloat16)                               # (C, C)
    wa = wa_t.T.astype(jnp.bfloat16)                               # (D0, C)
    bab = (bh + ba).reshape(1, C).astype(jnp.float32)              # fused bias

    layers = torch_params["layers"]
    w1_t, b1 = layers[0]                                           # (H1, D0+C)
    H1, H1p = dims[1], padded[0]
    w1 = w1_t.T                                                    # (D0+C, H1)
    w1x = jnp.zeros((D0, H1p), jnp.float32).at[:, :H1].set(w1[:D0]).astype(jnp.bfloat16)
    w1c = jnp.zeros((C, H1p), jnp.float32).at[:, :H1].set(w1[D0:]).astype(jnp.bfloat16)
    b1p = jnp.zeros((1, H1p), jnp.float32).at[0, :H1].set(b1)

    rest = []
    for li in range(1, len(layers)):
        w_t, b = layers[li]                                        # (out, in)
        in_f, out_f = dims[li], dims[li + 1]
        in_p, out_p = padded[li - 1], padded[li]
        wp = (jnp.zeros((in_p, out_p), jnp.float32)
              .at[:in_f, :out_f].set(w_t.T).astype(jnp.bfloat16))
        bp = jnp.zeros((1, out_p), jnp.float32).at[0, :out_f].set(b)
        rest.append((wp, bp))

    return dict(wh=wh, wa=wa, bab=bab, w1x=w1x, w1c=w1c, b1=b1p,
                rest=rest, D0=D0, C=C,
                out_dim=dims[-1], out_pad=padded[-1], padded_dims=padded)


def vae_decoder_attn_pallas(x, condition_h, kparams, activation="tanh",
                            block_b=512):
    """x: (B, D0), condition_h: (B, C).  Returns (B, dims[-1]) decoder output."""
    B, D0 = x.shape
    # torch .squeeze() changes semantics for B == 1; this kernel assumes B > 1.
    assert B > 1, "VAEDecoder_attn Pallas kernel assumes batch > 1"
    C, Op = kparams["C"], kparams["out_pad"]
    assert D0 == kparams["D0"] and condition_h.shape == (B, C)
    n_layers = 1 + len(kparams["rest"])
    pdims = kparams["padded_dims"]

    TB = min(block_b, _round_up(B, 8))
    Bp = _round_up(B, TB)

    xp = x.astype(jnp.float32)
    condp = condition_h.astype(jnp.float32)
    if Bp != B:   # only pad batch rows; feature lanes stay at D0 / C
        xp = jnp.zeros((Bp, D0), jnp.float32).at[:B].set(xp)
        condp = jnp.zeros((Bp, C), jnp.float32).at[:B].set(condp)

    weights = [kparams["wh"], kparams["wa"], kparams["bab"],
               kparams["w1x"], kparams["w1c"], kparams["b1"]]
    for w, b in kparams["rest"]:
        weights += [w, b]

    # Rough cost estimate (whole call) for XLA scheduling.
    flops = 2 * Bp * (C * C + D0 * C + D0 * pdims[0] + C * pdims[0])
    prev = pdims[0]
    for d in pdims[1:]:
        flops += 2 * Bp * prev * d
        prev = d
    transcendentals = Bp * (2 * C + sum(pdims[:-1]))
    bytes_accessed = (4 * (xp.size + condp.size + Bp * Op)
                      + sum(int(w.size) * w.dtype.itemsize for w in weights))

    # VMEM budget: double-buffered batch tiles + (single-buffered) resident bf16
    # weights + live f32 intermediates, clamped so it stays valid on v7x (64 MiB).
    w_bytes = sum(int(w.size) * w.dtype.itemsize for w in weights)
    tile_bytes = 4 * TB * (D0 + C + Op)
    live_bytes = 4 * 4 * TB * (max(pdims) + C)
    need = 2 * tile_bytes + 2 * w_bytes + live_bytes
    vmem_limit = int(min(max(2 * need, 32 << 20), 64 << 20))

    kernel = functools.partial(_decoder_kernel, activation=activation,
                               n_layers=n_layers)

    def build(single_buffer_weights):
        def tile_spec(shape):
            return pl.BlockSpec(shape, lambda i: (i, 0))          # batch-tiled

        def resident(arr):
            if single_buffer_weights:
                # constant index_map -> weights stay resident; 1 buffer is enough
                return pl.BlockSpec(arr.shape, lambda i: (0, 0),
                                    pipeline_mode=pl.Buffered(1))
            return pl.BlockSpec(arr.shape, lambda i: (0, 0))

        in_specs = ([tile_spec((TB, D0)), tile_spec((TB, C))]
                    + [resident(w) for w in weights])
        out_specs = pl.BlockSpec((TB, Op), lambda i: (i, 0))      # lane-dense out

        return pl.pallas_call(
            kernel,
            out_shape=jax.ShapeDtypeStruct((Bp, Op), jnp.float32),
            grid=(Bp // TB,),
            in_specs=in_specs,
            out_specs=out_specs,
            compiler_params=pltpu.CompilerParams(
                dimension_semantics=("parallel",),
                vmem_limit_bytes=vmem_limit),
            cost_estimate=pl.CostEstimate(flops=int(flops),
                                          transcendentals=int(transcendentals),
                                          bytes_accessed=int(bytes_accessed)),
        )

    try:
        out = build(True)(xp, condp, *weights)
        jax.block_until_ready(out)
    except Exception:
        # Fallback for jax versions where pipeline_mode=pl.Buffered(1) is rejected.
        out = build(False)(xp, condp, *weights)

    return out[:B, :kparams["out_dim"]]


def init_torch_params(key, dims, condition, condition_size):
    """Deterministic init matching PyTorch nn.Linear layouts ((out,in) weights)."""
    d = list(dims)
    if condition:
        d[0] = d[0] + condition_size

    def linear(k, in_f, out_f):
        k1, k2 = jax.random.split(k)
        bound = float(in_f) ** -0.5
        w = jax.random.uniform(k1, (out_f, in_f), jnp.float32, -bound, bound)
        b = jax.random.uniform(k2, (out_f,), jnp.float32, -bound, bound)
        return w, b

    params = {"layers": []}
    for in_f, out_f in zip(d[:-1], d[1:]):
        key, sub = jax.random.split(key)
        params["layers"].append(linear(sub, in_f, out_f))
    key, sub = jax.random.split(key)
    params["attn_h"] = linear(sub, condition_size, condition_size)
    key, sub = jax.random.split(key)
    params["attn"] = linear(sub, d[0] - condition_size, condition_size)
    return params


def reference_jax(x, condition_h, torch_params, activation="tanh"):
    """Plain-JAX f32 mirror of the PyTorch forward (condition=True, B > 1)."""
    (wh_t, bh), (wa_t, ba) = torch_params["attn_h"], torch_params["attn"]
    z = condition_h @ wh_t.T + bh + x @ wa_t.T + ba
    attn = jax.nn.softmax(jax.nn.elu(z), axis=1)
    attn_cond = attn * condition_h                 # .squeeze() no-op for B > 1
    h = jnp.concatenate([x, attn_cond], axis=1)
    layers = torch_params["layers"]
    for i, (w_t, b) in enumerate(layers):
        h = h @ w_t.T + b
        if i != len(layers) - 1:
            h = _apply_activation(h, activation)
    return h


if __name__ == "__main__":
    # Small decoder config: latent 16 -> hidden 64 -> output 32, condition 8.
    dims = [16, 64, 32]
    condition = True
    condition_size = 8
    activation = "tanh"
    batch = 200            # exercises batch tiling (TB=128, grid=2) + row padding

    key = jax.random.PRNGKey(0)
    key, kx, kc, kparam = jax.random.split(key, 4)
    x = jax.random.normal(kx, (batch, dims[0]), jnp.float32)
    condition_h = jax.random.normal(kc, (batch, condition_size), jnp.float32)

    torch_params = init_torch_params(kparam, dims, condition, condition_size)
    kernel_params = prepare_decoder_params(torch_params, dims, condition_size)

    out = vae_decoder_attn_pallas(x, condition_h, kernel_params,
                                  activation=activation, block_b=128)
    jax.block_until_ready(out)

    ref = reference_jax(x, condition_h, torch_params, activation)
    assert out.shape == (batch, dims[-1]), out.shape
    # bf16 MXU operands + approx reciprocal -> loosened tolerance vs f32 reference.
    max_err = float(jnp.max(jnp.abs(out - ref)))
    assert jnp.allclose(out, ref, atol=3e-2, rtol=3e-2), max_err

    print("KERNEL_OK")
</pallas_src>

<mosaic_0001>
module attributes {stable_mosaic.version = 11 : i64} {
  func.func @_decoder_kernel(%arg0: i32, %arg1: memref<128x16xf32, #tpu.memory_space<vmem>>, %arg2: memref<128x8xf32, #tpu.memory_space<vmem>>, %arg3: memref<8x8xbf16, #tpu.memory_space<vmem>>, %arg4: memref<16x8xbf16, #tpu.memory_space<vmem>>, %arg5: memref<1x8xf32, #tpu.memory_space<vmem>>, %arg6: memref<16x128xbf16, #tpu.memory_space<vmem>>, %arg7: memref<8x128xbf16, #tpu.memory_space<vmem>>, %arg8: memref<1x128xf32, #tpu.memory_space<vmem>>, %arg9: memref<128x128xbf16, #tpu.memory_space<vmem>>, %arg10: memref<1x128xf32, #tpu.memory_space<vmem>>, %arg11: memref<128x128xf32, #tpu.memory_space<vmem>>) attributes {dimension_semantics = [#tpu.dimension_semantics<parallel>], iteration_bounds = array<i64: 2>, scalar_prefetch = 0 : i64, scratch_operands = 0 : i64, tpu.core_type = #tpu.core_type<tc>, window_params = [{transform_indices = @transform_0, window_bounds = array<i64: 128, 16>}, {transform_indices = @transform_1, window_bounds = array<i64: 128, 8>}, {pipeline_mode = #tpu.pipeline_mode<synchronous>, transform_indices = @transform_2, window_bounds = array<i64: 8, 8>}, {pipeline_mode = #tpu.pipeline_mode<synchronous>, transform_indices = @transform_3, window_bounds = array<i64: 16, 8>}, {pipeline_mode = #tpu.pipeline_mode<synchronous>, transform_indices = @transform_4, window_bounds = array<i64: 1, 8>}, {pipeline_mode = #tpu.pipeline_mode<synchronous>, transform_indices = @transform_5, window_bounds = array<i64: 16, 128>}, {pipeline_mode = #tpu.pipeline_mode<synchronous>, transform_indices = @transform_6, window_bounds = array<i64: 8, 128>}, {pipeline_mode = #tpu.pipeline_mode<synchronous>, transform_indices = @transform_7, window_bounds = array<i64: 1, 128>}, {pipeline_mode = #tpu.pipeline_mode<synchronous>, transform_indices = @transform_8, window_bounds = array<i64: 128, 128>}, {pipeline_mode = #tpu.pipeline_mode<synchronous>, transform_indices = @transform_9, window_bounds = array<i64: 1, 128>}, {transform_indices = @transform_10, window_bounds = array<i64: 128, 128>}]} {
    %c0 = arith.constant 0 : index
    %c0_0 = arith.constant 0 : index
    %0 = vector.load %arg1[%c0, %c0_0] : memref<128x16xf32, #tpu.memory_space<vmem>>, vector<128x16xf32>
    %c0_1 = arith.constant 0 : index
    %c0_2 = arith.constant 0 : index
    %1 = vector.load %arg2[%c0_1, %c0_2] : memref<128x8xf32, #tpu.memory_space<vmem>>, vector<128x8xf32>
    %2 = arith.truncf %0 : vector<128x16xf32> to vector<128x16xbf16>
    %3 = arith.truncf %1 : vector<128x8xf32> to vector<128x8xbf16>
    %c0_3 = arith.constant 0 : index
    %c0_4 = arith.constant 0 : index
    %4 = vector.load %arg3[%c0_3, %c0_4] : memref<8x8xbf16, #tpu.memory_space<vmem>>, vector<8x8xbf16>
    %cst = arith.constant dense<0.000000e+00> : vector<128x8xf32>
    %5 = tpu.matmul %3, %4, %cst {dimension_numbers = #tpu.dot_dimension_numbers<[1], [0], [0], [1], [0, 0, 1, 1], [], []>} : vector<128x8xbf16>, vector<8x8xbf16>, vector<128x8xf32> -> vector<128x8xf32>
    %c0_5 = arith.constant 0 : index
    %c0_6 = arith.constant 0 : index
    %6 = vector.load %arg4[%c0_5, %c0_6] : memref<16x8xbf16, #tpu.memory_space<vmem>>, vector<16x8xbf16>
    %cst_7 = arith.constant dense<0.000000e+00> : vector<128x8xf32>
    %7 = tpu.matmul %2, %6, %cst_7 {dimension_numbers = #tpu.dot_dimension_numbers<[1], [0], [0], [1], [0, 0, 1, 1], [], []>} : vector<128x16xbf16>, vector<16x8xbf16>, vector<128x8xf32> -> vector<128x8xf32>
    %8 = arith.addf %5, %7 : vector<128x8xf32>
    %c0_8 = arith.constant 0 : index
    %c0_9 = arith.constant 0 : index
    %9 = vector.load %arg5[%c0_8, %c0_9] : memref<1x8xf32, #tpu.memory_space<vmem>>, vector<1x8xf32>
    %10 = vector.broadcast %9 : vector<1x8xf32> to vector<128x8xf32>
    %11 = arith.addf %8, %10 : vector<128x8xf32>
    %cst_10 = arith.constant 0.000000e+00 : f32
    %12 = vector.broadcast %cst_10 : f32 to vector<128x8xf32>
    %13 = arith.cmpf ogt, %11, %12 : vector<128x8xf32>
    %cst_11 = arith.constant 0.000000e+00 : f32
    %14 = vector.broadcast %cst_11 : f32 to vector<128x8xf32>
    %15 = arith.minimumf %11, %14 : vector<128x8xf32>
    %16 = math.exp %15 : vector<128x8xf32>
    %cst_12 = arith.constant 1.000000e+00 : f32
    %17 = vector.broadcast %cst_12 : f32 to vector<128x8xf32>
    %18 = arith.subf %16, %17 : vector<128x8xf32>
    %19 = arith.select %13, %11, %18 : vector<128x8xi1>, vector<128x8xf32>
    %cst_13 = arith.constant dense<0xFF800000> : vector<128xf32>
    %20 = vector.multi_reduction <maximumf>, %19, %cst_13 [1] : vector<128x8xf32> to vector<128xf32>
    %21 = vector.shape_cast %20 : vector<128xf32> to vector<128x1xf32>
    %22 = vector.broadcast %21 : vector<128x1xf32> to vector<128x8xf32>
    %23 = arith.subf %19, %22 : vector<128x8xf32>
    %24 = math.exp %23 : vector<128x8xf32>
    %cst_14 = arith.constant dense<0.000000e+00> : vector<128xf32>
    %25 = vector.multi_reduction <add>, %24, %cst_14 [1] : vector<128x8xf32> to vector<128xf32>
    %26 = vector.shape_cast %25 : vector<128xf32> to vector<128x1xf32>
    %27 = tpu.reciprocal %26 {approx = true} : vector<128x1xf32> -> vector<128x1xf32>
    %28 = vector.broadcast %27 : vector<128x1xf32> to vector<128x8xf32>
    %29 = arith.mulf %24, %28 : vector<128x8xf32>
    %30 = arith.mulf %29, %1 : vector<128x8xf32>
    %31 = arith.truncf %30 : vector<128x8xf32> to vector<128x8xbf16>
    %c0_15 = arith.constant 0 : index
    %c0_16 = arith.constant 0 : index
    %32 = vector.load %arg6[%c0_15, %c0_16] : memref<16x128xbf16, #tpu.memory_space<vmem>>, vector<16x128xbf16>
    %cst_17 = arith.constant dense<0.000000e+00> : vector<128x128xf32>
    %33 = tpu.matmul %2, %32, %cst_17 {dimension_numbers = #tpu.dot_dimension_numbers<[1], [0], [0], [1], [0, 0, 1, 1], [], []>} : vector<128x16xbf16>, vector<16x128xbf16>, vector<128x128xf32> -> vector<128x128xf32>
    %c0_18 = arith.constant 0 : index
    %c0_19 = arith.constant 0 : index
    %34 = vector.load %arg7[%c0_18, %c0_19] : memref<8x128xbf16, #tpu.memory_space<vmem>>, vector<8x128xbf16>
    %cst_20 = arith.constant dense<0.000000e+00> : vector<128x128xf32>
    %35 = tpu.matmul %31, %34, %cst_20 {dimension_numbers = #tpu.dot_dimension_numbers<[1], [0], [0], [1], [0, 0, 1, 1], [], []>} : vector<128x8xbf16>, vector<8x128xbf16>, vector<128x128xf32> -> vector<128x128xf32>
    %36 = arith.addf %33, %35 : vector<128x128xf32>
    %c0_21 = arith.constant 0 : index
    %c0_22 = arith.constant 0 : index
    %37 = vector.load %arg8[%c0_21, %c0_22] : memref<1x128xf32, #tpu.memory_space<vmem>>, vector<1x128xf32>
    %38 = vector.broadcast %37 : vector<1x128xf32> to vector<128x128xf32>
    %39 = arith.addf %36, %38 : vector<128x128xf32>
    %40 = math.tanh %39 : vector<128x128xf32>
    %41 = arith.truncf %40 : vector<128x128xf32> to vector<128x128xbf16>
    %c0_23 = arith.constant 0 : index
    %c0_24 = arith.constant 0 : index
    %42 = vector.load %arg9[%c0_23, %c0_24] : memref<128x128xbf16, #tpu.memory_space<vmem>>, vector<128x128xbf16>
    %cst_25 = arith.constant dense<0.000000e+00> : vector<128x128xf32>
    %43 = tpu.matmul %41, %42, %cst_25 {dimension_numbers = #tpu.dot_dimension_numbers<[1], [0], [0], [1], [0, 0, 1, 1], [], []>} : vector<128x128xbf16>, vector<128x128xbf16>, vector<128x128xf32> -> vector<128x128xf32>
    %c0_26 = arith.constant 0 : index
    %c0_27 = arith.constant 0 : index
    %44 = vector.load %arg10[%c0_26, %c0_27] : memref<1x128xf32, #tpu.memory_space<vmem>>, vector<1x128xf32>
    %45 = vector.broadcast %44 : vector<1x128xf32> to vector<128x128xf32>
    %46 = arith.addf %43, %45 : vector<128x128xf32>
    %c0_28 = arith.constant 0 : index
    %c0_29 = arith.constant 0 : index
    %47 = vector.load %arg11[%c0_28, %c0_29] : memref<128x128xf32, #tpu.memory_space<vmem>>, vector<128x128xf32>
    tpu.vector_store %arg11[%c0_28, %c0_29], %46 {strides = array<i32>} : memref<128x128xf32, #tpu.memory_space<vmem>>, vector<128x128xf32>,
    return
  }
  func.func @transform_0(%arg0: i32) -> (i32, i32) {
    %c0_i32 = arith.constant 0 : i32
    %c0_i32_0 = arith.constant 0 : i32
    return %arg0, %c0_i32 : i32, i32
  }
  func.func @transform_1(%arg0: i32) -> (i32, i32) {
    %c0_i32 = arith.constant 0 : i32
    %c0_i32_0 = arith.constant 0 : i32
    return %arg0, %c0_i32 : i32, i32
  }
  func.func @transform_2(%arg0: i32) -> (i32, i32) {
    %c0_i32 = arith.constant 0 : i32
    %c0_i32_0 = arith.constant 0 : i32
    %c0_i32_1 = arith.constant 0 : i32
    return %c0_i32, %c0_i32_0 : i32, i32
  }
  func.func @transform_3(%arg0: i32) -> (i32, i32) {
    %c0_i32 = arith.constant 0 : i32
    %c0_i32_0 = arith.constant 0 : i32
    %c0_i32_1 = arith.constant 0 : i32
    return %c0_i32, %c0_i32_0 : i32, i32
  }
  func.func @transform_4(%arg0: i32) -> (i32, i32) {
    %c0_i32 = arith.constant 0 : i32
    %c0_i32_0 = arith.constant 0 : i32
    %c0_i32_1 = arith.constant 0 : i32
    return %c0_i32, %c0_i32_0 : i32, i32
  }
  func.func @transform_5(%arg0: i32) -> (i32, i32) {
    %c0_i32 = arith.constant 0 : i32
    %c0_i32_0 = arith.constant 0 : i32
    %c0_i32_1 = arith.constant 0 : i32
    return %c0_i32, %c0_i32_0 : i32, i32
  }
  func.func @transform_6(%arg0: i32) -> (i32, i32) {
    %c0_i32 = arith.constant 0 : i32
    %c0_i32_0 = arith.constant 0 : i32
    %c0_i32_1 = arith.constant 0 : i32
    return %c0_i32, %c0_i32_0 : i32, i32
  }
  func.func @transform_7(%arg0: i32) -> (i32, i32) {
    %c0_i32 = arith.constant 0 : i32
    %c0_i32_0 = arith.constant 0 : i32
    %c0_i32_1 = arith.constant 0 : i32
    return %c0_i32, %c0_i32_0 : i32, i32
  }
  func.func @transform_8(%arg0: i32) -> (i32, i32) {
    %c0_i32 = arith.constant 0 : i32
    %c0_i32_0 = arith.constant 0 : i32
    %c0_i32_1 = arith.constant 0 : i32
    return %c0_i32, %c0_i32_0 : i32, i32
  }
  func.func @transform_9(%arg0: i32) -> (i32, i32) {
    %c0_i32 = arith.constant 0 : i32
    %c0_i32_0 = arith.constant 0 : i32
    %c0_i32_1 = arith.constant 0 : i32
    return %c0_i32, %c0_i32_0 : i32, i32
  }
  func.func @transform_10(%arg0: i32) -> (i32, i32) {
    %c0_i32 = arith.constant 0 : i32
    %c0_i32_0 = arith.constant 0 : i32
    return %arg0, %c0_i32 : i32, i32
  }
}

module attributes {stable_mosaic.version = 11 : i64} {
  func.func @_decoder_kernel(%arg0: i32, %arg1: memref<128x16xf32, #tpu.memory_space<vmem>>, %arg2: memref<128x8xf32, #tpu.memory_space<vmem>>, %arg3: memref<8x8xbf16, #tpu.memory_space<vmem>>, %arg4: memref<16x8xbf16, #tpu.memory_space<vmem>>, %arg5: memref<1x8xf32, #tpu.memory_space<vmem>>, %arg6: memref<16x128xbf16, #tpu.memory_space<vmem>>, %arg7: memref<8x128xbf16, #tpu.memory_space<vmem>>, %arg8: memref<1x128xf32, #tpu.memory_space<vmem>>, %arg9: memref<128x128xbf16, #tpu.memory_space<vmem>>, %arg10: memref<1x128xf32, #tpu.memory_space<vmem>>, %arg11: memref<128x128xf32, #tpu.memory_space<vmem>>) attributes {dimension_semantics = [#tpu.dimension_semantics<parallel>], iteration_bounds = array<i64: 2>, scalar_prefetch = 0 : i64, scratch_operands = 0 : i64, tpu.core_type = #tpu.core_type<tc>, window_params = [{transform_indices = @transform_0, window_bounds = array<i64: 128, 16>}, {transform_indices = @transform_1, window_bounds = array<i64: 128, 8>}, {pipeline_mode = #tpu.pipeline_mode<synchronous>, transform_indices = @transform_2, window_bounds = array<i64: 8, 8>}, {pipeline_mode = #tpu.pipeline_mode<synchronous>, transform_indices = @transform_3, window_bounds = array<i64: 16, 8>}, {pipeline_mode = #tpu.pipeline_mode<synchronous>, transform_indices = @transform_4, window_bounds = array<i64: 1, 8>}, {pipeline_mode = #tpu.pipeline_mode<synchronous>, transform_indices = @transform_5, window_bounds = array<i64: 16, 128>}, {pipeline_mode = #tpu.pipeline_mode<synchronous>, transform_indices = @transform_6, window_bounds = array<i64: 8, 128>}, {pipeline_mode = #tpu.pipeline_mode<synchronous>, transform_indices = @transform_7, window_bounds = array<i64: 1, 128>}, {pipeline_mode = #tpu.pipeline_mode<synchronous>, transform_indices = @transform_8, window_bounds = array<i64: 128, 128>}, {pipeline_mode = #tpu.pipeline_mode<synchronous>, transform_indices = @transform_9, window_bounds = array<i64: 1, 128>}, {transform_indices = @transform_10, window_bounds = array<i64: 128, 128>}]} {
    %c0 = arith.constant 0 : index
    %c0_0 = arith.constant 0 : index
    %0 = vector.load %arg1[%c0, %c0_0] : memref<128x16xf32, #tpu.memory_space<vmem>>, vector<128x16xf32>
    %c0_1 = arith.constant 0 : index
    %c0_2 = arith.constant 0 : index
    %1 = vector.load %arg2[%c0_1, %c0_2] : memref<128x8xf32, #tpu.memory_space<vmem>>, vector<128x8xf32>
    %2 = arith.truncf %0 : vector<128x16xf32> to vector<128x16xbf16>
    %3 = arith.truncf %1 : vector<128x8xf32> to vector<128x8xbf16>
    %c0_3 = arith.constant 0 : index
    %c0_4 = arith.constant 0 : index
    %4 = vector.load %arg3[%c0_3, %c0_4] : memref<8x8xbf16, #tpu.memory_space<vmem>>, vector<8x8xbf16>
    %cst = arith.constant dense<0.000000e+00> : vector<128x8xf32>
    %5 = tpu.matmul %3, %4, %cst {dimension_numbers = #tpu.dot_dimension_numbers<[1], [0], [0], [1], [0, 0, 1, 1], [], []>} : vector<128x8xbf16>, vector<8x8xbf16>, vector<128x8xf32> -> vector<128x8xf32>
    %c0_5 = arith.constant 0 : index
    %c0_6 = arith.constant 0 : index
    %6 = vector.load %arg4[%c0_5, %c0_6] : memref<16x8xbf16, #tpu.memory_space<vmem>>, vector<16x8xbf16>
    %cst_7 = arith.constant dense<0.000000e+00> : vector<128x8xf32>
    %7 = tpu.matmul %2, %6, %cst_7 {dimension_numbers = #tpu.dot_dimension_numbers<[1], [0], [0], [1], [0, 0, 1, 1], [], []>} : vector<128x16xbf16>, vector<16x8xbf16>, vector<128x8xf32> -> vector<128x8xf32>
    %8 = arith.addf %5, %7 : vector<128x8xf32>
    %c0_8 = arith.constant 0 : index
    %c0_9 = arith.constant 0 : index
    %9 = vector.load %arg5[%c0_8, %c0_9] : memref<1x8xf32, #tpu.memory_space<vmem>>, vector<1x8xf32>
    %10 = vector.broadcast %9 : vector<1x8xf32> to vector<128x8xf32>
    %11 = arith.addf %8, %10 : vector<128x8xf32>
    %cst_10 = arith.constant 0.000000e+00 : f32
    %12 = vector.broadcast %cst_10 : f32 to vector<128x8xf32>
    %13 = arith.cmpf ogt, %11, %12 : vector<128x8xf32>
    %cst_11 = arith.constant 0.000000e+00 : f32
    %14 = vector.broadcast %cst_11 : f32 to vector<128x8xf32>
    %15 = arith.minimumf %11, %14 : vector<128x8xf32>
    %16 = math.exp %15 : vector<128x8xf32>
    %cst_12 = arith.constant 1.000000e+00 : f32
    %17 = vector.broadcast %cst_12 : f32 to vector<128x8xf32>
    %18 = arith.subf %16, %17 : vector<128x8xf32>
    %19 = arith.select %13, %11, %18 : vector<128x8xi1>, vector<128x8xf32>
    %cst_13 = arith.constant dense<0xFF800000> : vector<128xf32>
    %20 = vector.multi_reduction <maximumf>, %19, %cst_13 [1] : vector<128x8xf32> to vector<128xf32>
    %21 = vector.shape_cast %20 : vector<128xf32> to vector<128x1xf32>
    %22 = vector.broadcast %21 : vector<128x1xf32> to vector<128x8xf32>
    %23 = arith.subf %19, %22 : vector<128x8xf32>
    %24 = math.exp %23 : vector<128x8xf32>
    %cst_14 = arith.constant dense<0.000000e+00> : vector<128xf32>
    %25 = vector.multi_reduction <add>, %24, %cst_14 [1] : vector<128x8xf32> to vector<128xf32>
    %26 = vector.shape_cast %25 : vector<128xf32> to vector<128x1xf32>
    %27 = tpu.reciprocal %26 {approx = true} : vector<128x1xf32> -> vector<128x1xf32>
    %28 = vector.broadcast %27 : vector<128x1xf32> to vector<128x8xf32>
    %29 = arith.mulf %24, %28 : vector<128x8xf32>
    %30 = arith.mulf %29, %1 : vector<128x8xf32>
    %31 = arith.truncf %30 : vector<128x8xf32> to vector<128x8xbf16>
    %c0_15 = arith.constant 0 : index
    %c0_16 = arith.constant 0 : index
    %32 = vector.load %arg6[%c0_15, %c0_16] : memref<16x128xbf16, #tpu.memory_space<vmem>>, vector<16x128xbf16>
    %cst_17 = arith.constant dense<0.000000e+00> : vector<128x128xf32>
    %33 = tpu.matmul %2, %32, %cst_17 {dimension_numbers = #tpu.dot_dimension_numbers<[1], [0], [0], [1], [0, 0, 1, 1], [], []>} : vector<128x16xbf16>, vector<16x128xbf16>, vector<128x128xf32> -> vector<128x128xf32>
    %c0_18 = arith.constant 0 : index
    %c0_19 = arith.constant 0 : index
    %34 = vector.load %arg7[%c0_18, %c0_19] : memref<8x128xbf16, #tpu.memory_space<vmem>>, vector<8x128xbf16>
    %cst_20 = arith.constant dense<0.000000e+00> : vector<128x128xf32>
    %35 = tpu.matmul %31, %34, %cst_20 {dimension_numbers = #tpu.dot_dimension_numbers<[1], [0], [0], [1], [0, 0, 1, 1], [], []>} : vector<128x8xbf16>, vector<8x128xbf16>, vector<128x128xf32> -> vector<128x128xf32>
    %36 = arith.addf %33, %35 : vector<128x128xf32>
    %c0_21 = arith.constant 0 : index
    %c0_22 = arith.constant 0 : index
    %37 = vector.load %arg8[%c0_21, %c0_22] : memref<1x128xf32, #tpu.memory_space<vmem>>, vector<1x128xf32>
    %38 = vector.broadcast %37 : vector<1x128xf32> to vector<128x128xf32>
    %39 = arith.addf %36, %38 : vector<128x128xf32>
    %40 = math.tanh %39 : vector<128x128xf32>
    %41 = arith.truncf %40 : vector<128x128xf32> to vector<128x128xbf16>
    %c0_23 = arith.constant 0 : index
    %c0_24 = arith.constant 0 : index
    %42 = vector.load %arg9[%c0_23, %c0_24] : memref<128x128xbf16, #tpu.memory_space<vmem>>, vector<128x128xbf16>
    %cst_25 = arith.constant dense<0.000000e+00> : vector<128x128xf32>
    %43 = tpu.matmul %41, %42, %cst_25 {dimension_numbers = #tpu.dot_dimension_numbers<[1], [0], [0], [1], [0, 0, 1, 1], [], []>} : vector<128x128xbf16>, vector<128x128xbf16>, vector<128x128xf32> -> vector<128x128xf32>
    %c0_26 = arith.constant 0 : index
    %c0_27 = arith.constant 0 : index
    %44 = vector.load %arg10[%c0_26, %c0_27] : memref<1x128xf32, #tpu.memory_space<vmem>>, vector<1x128xf32>
    %45 = vector.broadcast %44 : vector<1x128xf32> to vector<128x128xf32>
    %46 = arith.addf %43, %45 : vector<128x128xf32>
    %c0_28 = arith.constant 0 : index
    %c0_29 = arith.constant 0 : index
    %47 = vector.load %arg11[%c0_28, %c0_29] : memref<128x128xf32, #tpu.memory_space<vmem>>, vector<128x128xf32>
    tpu.vector_store %arg11[%c0_28, %c0_29], %46 {strides = array<i32>} : memref<128x128xf32, #tpu.memory_space<vmem>>, vector<128x128xf32>,
    return
  }
  func.func @transform_0(%arg0: i32) -> (i32, i32) {
    %c0_i32 = arith.constant 0 : i32
    %c0_i32_0 = arith.constant 0 : i32
    return %arg0, %c0_i32 : i32, i32
  }
  func.func @transform_1(%arg0: i32) -> (i32, i32) {
    %c0_i32 = arith.constant 0 : i32
    %c0_i32_0 = arith.constant 0 : i32
    return %arg0, %c0_i32 : i32, i32
  }
  func.func @transform_2(%arg0: i32) -> (i32, i32) {
    %c0_i32 = arith.constant 0 : i32
    %c0_i32_0 = arith.constant 0 : i32
    %c0_i32_1 = arith.constant 0 : i32
    return %c0_i32, %c0_i32_0 : i32, i32
  }
  func.func @transform_3(%arg0: i32) -> (i32, i32) {
    %c0_i32 = arith.constant 0 : i32
    %c0_i32_0 = arith.constant 0 : i32
    %c0_i32_1 = arith.constant 0 : i32
    return %c0_i32, %c0_i32_0 : i32, i32
  }
  func.func @transform_4(%arg0: i32) -> (i32, i32) {
    %c0_i32 = arith.constant 0 : i32
    %c0_i32_0 = arith.constant 0 : i32
    %c0_i32_1 = arith.constant 0 : i32
    return %c0_i32, %c0_i32_0 : i32, i32
  }
  func.func @transform_5(%arg0: i32) -> (i32, i32) {
    %c0_i32 = arith.constant 0 : i32
    %c0_i32_0 = arith.constant 0 : i32
    %c0_i32_1 = arith.constant 0 : i32
    return %c0_i32, %c0_i32_0 : i32, i32
  }
  func.func @transform_6(%arg0: i32) -> (i32, i32) {
    %c0_i32 = arith.constant 0 : i32
    %c0_i32_0 = arith.constant 0 : i32
    %c0_i32_1 = arith.constant 0 : i32
    return %c0_i32, %c0_i32_0 : i32, i32
  }
  func.func @transform_7(%arg0: i32) -> (i32, i32) {
    %c0_i32 = arith.constant 0 : i32
    %c0_i32_0 = arith.constant 0 : i32
    %c0_i32_1 = arith.constant 0 : i32
    return %c0_i32, %c0_i32_0 : i32, i32
  }
  func.func @transform_8(%arg0: i32) -> (i32, i32) {
    %c0_i32 = arith.constant 0 : i32
    %c0_i32_0 = arith.constant 0 : i32
    %c0_i32_1 = arith.constant 0 : i32
    return %c0_i32, %c0_i32_0 : i32, i32
  }
  func.func @transform_9(%arg0: i32) -> (i32, i32) {
    %c0_i32 = arith.constant 0 : i32
    %c0_i32_0 = arith.constant 0 : i32
    %c0_i32_1 = arith.constant 0 : i32
    return %c0_i32, %c0_i32_0 : i32, i32
  }
  func.func @transform_10(%arg0: i32) -> (i32, i32) {
    %c0_i32 = arith.constant 0 : i32
    %c0_i32_0 = arith.constant 0 : i32
    return %arg0, %c0_i32 : i32, i32
  }
}

</mosaic_0001>

<llo_original>
// kernel: tpu_custom_call.1
$region0: #{tpu_custom_call.1}
  #allocation0 [shape = 'u32[]', space=smem, size = 0x4, offset = 0x4, fixed_abs, tag = 'smem constant byte address 0x4 - core index']
  #allocation1 [shape = 'u32[144,128]{1,0:T(1,128)}', space=vmem, size = 0x12000, scoped, tag = 'internal scratch']
  %s0 = inlined_call_operand.vmem [shape: f32[256,16], index: 0, kind: input, shape index: {}]
  %s1 = inlined_call_operand.vmem [shape: f32[256,8], index: 1, kind: input, shape index: {}]
  %s2 = inlined_call_operand.vmem [shape: bf16[8,8], index: 2, kind: input, shape index: {}]
  %s3 = inlined_call_operand.vmem [shape: bf16[16,8], index: 3, kind: input, shape index: {}]
  %s4 = inlined_call_operand.vmem [shape: f32[1,8], index: 4, kind: input, shape index: {}]
  %s5 = inlined_call_operand.vmem [shape: bf16[16,128], index: 5, kind: input, shape index: {}]
  %s6 = inlined_call_operand.vmem [shape: bf16[8,128], index: 6, kind: input, shape index: {}]
  %s7 = inlined_call_operand.vmem [shape: f32[1,128], index: 7, kind: input, shape index: {}]
  %s8 = inlined_call_operand.vmem [shape: bf16[128,128], index: 8, kind: input, shape index: {}]
  %s9 = inlined_call_operand.vmem [shape: f32[1,128], index: 9, kind: input, shape index: {}]
  %s10 = inlined_call_operand.hbm [shape: f32[256,128], index: 10, kind: output, shape index: {}]
  %s11 = sld [smem:[#allocation0]]
  $region73: #{tpu_custom_call.1} parent=0
    _
  %s13 = ssub.s32 1, %s11
  %s14 = scalar_select 0, %s13, %s11
  $region1: #{tpu_custom_call.1} parent=0
    #allocation2 [shape = 'u8[131072]{0}', space=vmem, size = 0x20000, scoped, tag = 'output window, operand 0']
    #allocation3 [shape = 's32[2]{0}', space=sflag, size = 0x8, scoped, tag = 'scoped memory for tpu_custom_call.1']
    %15 = vsyncpa [#allocation3], 0
    %s16 = scalar_lea.sflag [#allocation3], 1
    %17 = vsyncpa %s16, 0
    loop: start=0, step=1, limit=4
    $region2: #{tpu_custom_call.1} parent=1 // loop_pre_header
      _
    $region3: #{tpu_custom_call.1} parent=1 // loop_header
      %s19 = sphi 0, %s23
      %p20 = scmp.ge.s32.totalorder %s19, 4
      %s29 = sphi 0, %s31
      %s32 = sphi 0, %s29
      %s33 = sphi 0, %s32
      %s49 = sphi 0, %s33
      %s55 = sphi 0, %s57
      %s58 = sphi 0, %s55
      %s59 = sphi 0, %s58
      %s75 = sphi 0, %s59
      %s79 = sphi 0, %s79
      %s81 = sphi 0, %s79
      %s82 = sphi 0, %s81
      %s96 = sphi 0, %s82
      %s100 = sphi 0, %s100
      %s102 = sphi 0, %s100
      %s103 = sphi 0, %s102
      %s117 = sphi 0, %s103
      %s121 = sphi 0, %s121
      %s123 = sphi 0, %s121
      %s124 = sphi 0, %s123
      %s138 = sphi 0, %s124
      %s142 = sphi 0, %s142
      %s144 = sphi 0, %s142
      %s145 = sphi 0, %s144
      %s159 = sphi 0, %s145
      %s163 = sphi 0, %s163
      %s165 = sphi 0, %s163
      %s166 = sphi 0, %s165
      %s180 = sphi 0, %s166
      %s184 = sphi 0, %s184
      %s186 = sphi 0, %s184
      %s187 = sphi 0, %s186
      %s201 = sphi 0, %s187
      %s205 = sphi 0, %s205
      %s207 = sphi 0, %s205
      %s208 = sphi 0, %s207
      %s222 = sphi 0, %s208
      %s226 = sphi 0, %s226
      %s228 = sphi 0, %s226
      %s229 = sphi 0, %s228
      %s243 = sphi 0, %s229
      %s249 = sphi 0, %s251
      %s252 = sphi 0, %s249
      %s253 = sphi 0, %s252
      %s269 = sphi 0, %s253
    $region4: #{tpu_custom_call.1} parent=1 // loop_header_branch
      %22 = sbr.rel (%p20) target = $region8
    $region5: #{tpu_custom_call.1} parent=1 // loop_body
      %s24 = ssub.s32 %s19, 1
      %s25 = ssub.s32 %s19, 2
      %s26 = sadd.s32 %s19, 1
      %s27 = ssub.s32 %s19, %s26
      %p28 = scmp.eq.s32.totalorder %s27, 0
      %s30 = sadd.s32 %s29, 1
      %s31 = scalar_select %p28, %s29, %s30
      %p34 = pneg %p28
      %p35 = scmp.eq.s32.totalorder %s19, 1
      %p36 = por %p34, %p35
      %p37 = scmp.ne.s32.totalorder %s29, %s32
      %p38 = scmp.eq.s32.totalorder %s19, 0
      %p39 = por %p37, %p38
      %p40 = scmp.ne.s32.totalorder %s29, %s32
      %p41 = scmp.eq.s32.totalorder %s24, 1
      %p42 = por %p40, %p41
      %p43 = scmp.ne.s32.totalorder %s32, %s33
      %p44 = scmp.eq.s32.totalorder %s24, 0
      %p45 = por %p43, %p44
      %p46 = scmp.ne.s32.totalorder %s32, %s33
      %p47 = scmp.eq.s32.totalorder %s25, 1
      %p48 = por %p46, %p47
      %p50 = scmp.ne.s32.totalorder %s33, %s49
      %p51 = scmp.eq.s32.totalorder %s25, 0
      %p52 = por %p50, %p51
      %s53 = ssub.s32 %s19, %s26
      %p54 = scmp.eq.s32.totalorder %s53, 0
      %s56 = sadd.s32 %s55, 1
      %s57 = scalar_select %p54, %s55, %s56
      %p60 = pneg %p54
      %p61 = scmp.eq.s32.totalorder %s19, 1
      %p62 = por %p60, %p61
      %p63 = scmp.ne.s32.totalorder %s55, %s58
      %p64 = scmp.eq.s32.totalorder %s19, 0
      %p65 = por %p63, %p64
      %p66 = scmp.ne.s32.totalorder %s55, %s58
      %p67 = scmp.eq.s32.totalorder %s24, 1
      %p68 = por %p66, %p67
      %p69 = scmp.ne.s32.totalorder %s58, %s59
      %p70 = scmp.eq.s32.totalorder %s24, 0
      %p71 = por %p69, %p70
      %p72 = scmp.ne.s32.totalorder %s58, %s59
      %p73 = scmp.eq.s32.totalorder %s25, 1
      %p74 = por %p72, %p73
      %p76 = scmp.ne.s32.totalorder %s59, %s75
      %p77 = scmp.eq.s32.totalorder %s25, 0
      %p78 = por %p76, %p77
      %s80 = sadd.s32 %s79, 1
      %p83 = scmp.eq.s32.totalorder %s19, 1
      %p84 = scmp.ne.s32.totalorder %s79, %s81
      %p85 = scmp.eq.s32.totalorder %s19, 0
      %p86 = por %p84, %p85
      %p87 = scmp.ne.s32.totalorder %s79, %s81
      %p88 = scmp.eq.s32.totalorder %s24, 1
      %p89 = por %p87, %p88
      %p90 = scmp.ne.s32.totalorder %s81, %s82
      %p91 = scmp.eq.s32.totalorder %s24, 0
      %p92 = por %p90, %p91
      %p93 = scmp.ne.s32.totalorder %s81, %s82
      %p94 = scmp.eq.s32.totalorder %s25, 1
      %p95 = por %p93, %p94
      %p97 = scmp.ne.s32.totalorder %s82, %s96
      %p98 = scmp.eq.s32.totalorder %s25, 0
      %p99 = por %p97, %p98
      %s101 = sadd.s32 %s100, 1
      %p104 = scmp.eq.s32.totalorder %s19, 1
      %p105 = scmp.ne.s32.totalorder %s100, %s102
      %p106 = scmp.eq.s32.totalorder %s19, 0
      %p107 = por %p105, %p106
      %p108 = scmp.ne.s32.totalorder %s100, %s102
      %p109 = scmp.eq.s32.totalorder %s24, 1
      %p110 = por %p108, %p109
      %p111 = scmp.ne.s32.totalorder %s102, %s103
      %p112 = scmp.eq.s32.totalorder %s24, 0
      %p113 = por %p111, %p112
      %p114 = scmp.ne.s32.totalorder %s102, %s103
      %p115 = scmp.eq.s32.totalorder %s25, 1
      %p116 = por %p114, %p115
      %p118 = scmp.ne.s32.totalorder %s103, %s117
      %p119 = scmp.eq.s32.totalorder %s25, 0
      %p120 = por %p118, %p119
      %s122 = sadd.s32 %s121, 1
      %p125 = scmp.eq.s32.totalorder %s19, 1
      %p126 = scmp.ne.s32.totalorder %s121, %s123
      %p127 = scmp.eq.s32.totalorder %s19, 0
      %p128 = por %p126, %p127
      %p129 = scmp.ne.s32.totalorder %s121, %s123
      %p130 = scmp.eq.s32.totalorder %s24, 1
      %p131 = por %p129, %p130
      %p132 = scmp.ne.s32.totalorder %s123, %s124
      %p133 = scmp.eq.s32.totalorder %s24, 0
      %p134 = por %p132, %p133
      %p135 = scmp.ne.s32.totalorder %s123, %s124
      %p136 = scmp.eq.s32.totalorder %s25, 1
      %p137 = por %p135, %p136
      %p139 = scmp.ne.s32.totalorder %s124, %s138
      %p140 = scmp.eq.s32.totalorder %s25, 0
      %p141 = por %p139, %p140
      %s143 = sadd.s32 %s142, 1
      %p146 = scmp.eq.s32.totalorder %s19, 1
      %p147 = scmp.ne.s32.totalorder %s142, %s144
      %p148 = scmp.eq.s32.totalorder %s19, 0
      %p149 = por %p147, %p148
      %p150 = scmp.ne.s32.totalorder %s142, %s144
      %p151 = scmp.eq.s32.totalorder %s24, 1
      %p152 = por %p150, %p151
      %p153 = scmp.ne.s32.totalorder %s144, %s145
      %p154 = scmp.eq.s32.totalorder %s24, 0
      %p155 = por %p153, %p154
      %p156 = scmp.ne.s32.totalorder %s144, %s145
      %p157 = scmp.eq.s32.totalorder %s25, 1
      %p158 = por %p156, %p157
      %p160 = scmp.ne.s32.totalorder %s145, %s159
      %p161 = scmp.eq.s32.totalorder %s25, 0
      %p162 = por %p160, %p161
      %s164 = sadd.s32 %s163, 1
      %p167 = scmp.eq.s32.totalorder %s19, 1
      %p168 = scmp.ne.s32.totalorder %s163, %s165
      %p169 = scmp.eq.s32.totalorder %s19, 0
      %p170 = por %p168, %p169
      %p171 = scmp.ne.s32.totalorder %s163, %s165
      %p172 = scmp.eq.s32.totalorder %s24, 1
      %p173 = por %p171, %p172
      %p174 = scmp.ne.s32.totalorder %s165, %s166
      %p175 = scmp.eq.s32.totalorder %s24, 0
      %p176 = por %p174, %p175
      %p177 = scmp.ne.s32.totalorder %s165, %s166
      %p178 = scmp.eq.s32.totalorder %s25, 1
      %p179 = por %p177, %p178
      %p181 = scmp.ne.s32.totalorder %s166, %s180
      %p182 = scmp.eq.s32.totalorder %s25, 0
      %p183 = por %p181, %p182
      %s185 = sadd.s32 %s184, 1
      %p188 = scmp.eq.s32.totalorder %s19, 1
      %p189 = scmp.ne.s32.totalorder %s184, %s186
      %p190 = scmp.eq.s32.totalorder %s19, 0
      %p191 = por %p189, %p190
      %p192 = scmp.ne.s32.totalorder %s184, %s186
      %p193 = scmp.eq.s32.totalorder %s24, 1
      %p194 = por %p192, %p193
      %p195 = scmp.ne.s32.totalorder %s186, %s187
      %p196 = scmp.eq.s32.totalorder %s24, 0
      %p197 = por %p195, %p196
      %p198 = scmp.ne.s32.totalorder %s186, %s187
      %p199 = scmp.eq.s32.totalorder %s25, 1
      %p200 = por %p198, %p199
      %p202 = scmp.ne.s32.totalorder %s187, %s201
      %p203 = scmp.eq.s32.totalorder %s25, 0
      %p204 = por %p202, %p203
      %s206 = sadd.s32 %s205, 1
      %p209 = scmp.eq.s32.totalorder %s19, 1
      %p210 = scmp.ne.s32.totalorder %s205, %s207
      %p211 = scmp.eq.s32.totalorder %s19, 0
      %p212 = por %p210, %p211
      %p213 = scmp.ne.s32.totalorder %s205, %s207
      %p214 = scmp.eq.s32.totalorder %s24, 1
      %p215 = por %p213, %p214
      %p216 = scmp.ne.s32.totalorder %s207, %s208
      %p217 = scmp.eq.s32.totalorder %s24, 0
      %p218 = por %p216, %p217
      %p219 = scmp.ne.s32.totalorder %s207, %s208
      %p220 = scmp.eq.s32.totalorder %s25, 1
      %p221 = por %p219, %p220
      %p223 = scmp.ne.s32.totalorder %s208, %s222
      %p224 = scmp.eq.s32.totalorder %s25, 0
      %p225 = por %p223, %p224
      %s227 = sadd.s32 %s226, 1
      %p230 = scmp.eq.s32.totalorder %s19, 1
      %p231 = scmp.ne.s32.totalorder %s226, %s228
      %p232 = scmp.eq.s32.totalorder %s19, 0
      %p233 = por %p231, %p232
      %p234 = scmp.ne.s32.totalorder %s226, %s228
      %p235 = scmp.eq.s32.totalorder %s24, 1
      %p236 = por %p234, %p235
      %p237 = scmp.ne.s32.totalorder %s228, %s229
      %p238 = scmp.eq.s32.totalorder %s24, 0
      %p239 = por %p237, %p238
      %p240 = scmp.ne.s32.totalorder %s228, %s229
      %p241 = scmp.eq.s32.totalorder %s25, 1
      %p242 = por %p240, %p241
      %p244 = scmp.ne.s32.totalorder %s229, %s243
      %p245 = scmp.eq.s32.totalorder %s25, 0
      %p246 = por %p244, %p245
      %s247 = ssub.s32 %s19, %s26
      %p248 = scmp.eq.s32.totalorder %s247, 0
      %s250 = sadd.s32 %s249, 1
      %s251 = scalar_select %p248, %s249, %s250
      %p254 = pneg %p248
      %p255 = scmp.eq.s32.totalorder %s19, 1
      %p256 = por %p254, %p255
      %p257 = scmp.ne.s32.totalorder %s249, %s252
      %p258 = scmp.eq.s32.totalorder %s19, 0
      %p259 = por %p257, %p258
      %p260 = scmp.ne.s32.totalorder %s249, %s252
      %p261 = scmp.eq.s32.totalorder %s24, 1
      %p262 = por %p260, %p261
      %p263 = scmp.ne.s32.totalorder %s252, %s253
      %p264 = scmp.eq.s32.totalorder %s24, 0
      %p265 = por %p263, %p264
      %p266 = scmp.ne.s32.totalorder %s252, %s253
      %p267 = scmp.eq.s32.totalorder %s25, 1
      %p268 = por %p266, %p267
      %p270 = scmp.ne.s32.totalorder %s253, %s269
      %p271 = scmp.eq.s32.totalorder %s25, 0
      %p272 = por %p270, %p271
      %p273 = scmp.le.s32.totalorder 1, %s19
      %p274 = scmp.lt.s32.totalorder %s19, 3
      %p275 = pnand %p273, %p274
      %p276 = pneg %p275
      // Predicated region
      $region9: #{tpu_custom_call.1} parent=5 // pred_check
        _
      $region10: #{tpu_custom_call.1} parent=5 // pred_check_branch
        %278 = sbr.rel (%p275) target = $region12
      $region11: #{tpu_custom_call.1} parent=5 // pred_region
        %s279 = ssub.s32 %s19, 1
        // Predicated region
        $region13: #{tpu_custom_call.1} parent=11 // pred_check
          %p280 = pneg %p92
        $region14: #{tpu_custom_call.1} parent=11 // pred_check_branch
          %282 = sbr.rel (%p280) target = $region16
        $region15: #{tpu_custom_call.1} parent=11 // pred_region
          _
        $region16: #{tpu_custom_call.1} parent=11 // pred_fallthru
          _
        // Predicated region
        $region17: #{tpu_custom_call.1} parent=11 // pred_check
          %p283 = pneg %p113
        $region18: #{tpu_custom_call.1} parent=11 // pred_check_branch
          %285 = sbr.rel (%p283) target = $region20
        $region19: #{tpu_custom_call.1} parent=11 // pred_region
          _
        $region20: #{tpu_custom_call.1} parent=11 // pred_fallthru
          _
        // Predicated region
        $region21: #{tpu_custom_call.1} parent=11 // pred_check
          %p286 = pneg %p134
        $region22: #{tpu_custom_call.1} parent=11 // pred_check_branch
          %288 = sbr.rel (%p286) target = $region24
        $region23: #{tpu_custom_call.1} parent=11 // pred_region
          _
        $region24: #{tpu_custom_call.1} parent=11 // pred_fallthru
          _
        // Predicated region
        $region25: #{tpu_custom_call.1} parent=11 // pred_check
          %p289 = pneg %p155
        $region26: #{tpu_custom_call.1} parent=11 // pred_check_branch
          %291 = sbr.rel (%p289) target = $region28
        $region27: #{tpu_custom_call.1} parent=11 // pred_region
          _
        $region28: #{tpu_custom_call.1} parent=11 // pred_fallthru
          _
        // Predicated region
        $region29: #{tpu_custom_call.1} parent=11 // pred_check
          %p292 = pneg %p176
        $region30: #{tpu_custom_call.1} parent=11 // pred_check_branch
          %294 = sbr.rel (%p292) target = $region32
        $region31: #{tpu_custom_call.1} parent=11 // pred_region
          _
        $region32: #{tpu_custom_call.1} parent=11 // pred_fallthru
          _
        // Predicated region
        $region33: #{tpu_custom_call.1} parent=11 // pred_check
          %p295 = pneg %p197
        $region34: #{tpu_custom_call.1} parent=11 // pred_check_branch
          %297 = sbr.rel (%p295) target = $region36
        $region35: #{tpu_custom_call.1} parent=11 // pred_region
          _
        $region36: #{tpu_custom_call.1} parent=11 // pred_fallthru
          _
        // Predicated region
        $region37: #{tpu_custom_call.1} parent=11 // pred_check
          %p298 = pneg %p218
        $region38: #{tpu_custom_call.1} parent=11 // pred_check_branch
          %300 = sbr.rel (%p298) target = $region40
        $region39: #{tpu_custom_call.1} parent=11 // pred_region
          _
        $region40: #{tpu_custom_call.1} parent=11 // pred_fallthru
          _
        // Predicated region
        $region41: #{tpu_custom_call.1} parent=11 // pred_check
          %p301 = pneg %p239
        $region42: #{tpu_custom_call.1} parent=11 // pred_check_branch
          %303 = sbr.rel (%p301) target = $region44
        $region43: #{tpu_custom_call.1} parent=11 // pred_region
          _
        $region44: #{tpu_custom_call.1} parent=11 // pred_fallthru
          _
      $region12: #{tpu_custom_call.1} parent=5 // pred_fallthru
        _
      %p304 = scmp.lt.s32.totalorder %s19, 2
      // Predicated region
      $region45: #{tpu_custom_call.1} parent=5 // pred_check
        %p305 = pneg %p304
      $region46: #{tpu_custom_call.1} parent=5 // pred_check_branch
        %307 = sbr.rel (%p305) target = $region48
      $region47: #{tpu_custom_call.1} parent=5 // pred_region
        // Predicated region
        $region49: #{tpu_custom_call.1} parent=47 // pred_check
          %p308 = pneg %p39
        $region50: #{tpu_custom_call.1} parent=47 // pred_check_branch
          %310 = sbr.rel (%p308) target = $region52
        $region51: #{tpu_custom_call.1} parent=47 // pred_region
          %s311 = smul.u32 16, %s19
          %p312 = scmp.lt.s32.totalorder %s311, 31
          %s313 = scalar_select %p312, %s311, 31
          %s314 = smul.addr %s313, 8
          %s315 = scalar_lea.vmem %s0, %s314
          %s316 = smul.u32 16, %s19
        $region52: #{tpu_custom_call.1} parent=47 // pred_fallthru
          _
        // Predicated region
        $region53: #{tpu_custom_call.1} parent=47 // pred_check
          %p317 = pneg %p65
        $region54: #{tpu_custom_call.1} parent=47 // pred_check_branch
          %319 = sbr.rel (%p317) target = $region56
        $region55: #{tpu_custom_call.1} parent=47 // pred_region
          %s320 = smul.u32 16, %s19
          %p321 = scmp.lt.s32.totalorder %s320, 31
          %s322 = scalar_select %p321, %s320, 31
          %s323 = smul.addr %s322, 8
          %s324 = scalar_lea.vmem %s1, %s323
          %s325 = smul.u32 16, %s19
        $region56: #{tpu_custom_call.1} parent=47 // pred_fallthru
          _
      $region48: #{tpu_custom_call.1} parent=5 // pred_fallthru
        _
      %p326 = scmp.le.s32.totalorder 1, %s19
      %p327 = scmp.lt.s32.totalorder %s19, 3
      %p328 = pnand %p326, %p327
      %p329 = pneg %p328
      // Predicated region
      $region57: #{tpu_custom_call.1} parent=5 // pred_check
        _
      $region58: #{tpu_custom_call.1} parent=5 // pred_check_branch
        %331 = sbr.rel (%p328) target = $region60
      $region59: #{tpu_custom_call.1} parent=5 // pred_region
        %s332 = ssub.s32 %s19, 1
        %s333 = smul.u32 16, %s24
        %p334 = scmp.lt.s32.totalorder %s333, 31
        %s335 = scalar_select %p334, %s333, 31
        %s336 = smul.addr %s335, 8
        %s337 = scalar_lea.vmem %s0, %s336
        %p338 = pneg %p45
        %p339 = pneg %p42
        %s340 = smul.u32 16, %s24
        %p341 = scmp.lt.s32.totalorder %s340, 31
        %s342 = scalar_select %p341, %s340, 31
        %s343 = smul.addr %s342, 8
        %s344 = scalar_lea.vmem %s1, %s343
        %p345 = pneg %p71
        %p346 = pneg %p68
        %p347 = pneg %p92
        %p348 = pneg %p89
        %p349 = pneg %p113
        %p350 = pneg %p110
        %p351 = pneg %p134
        %p352 = pneg %p131
        %p353 = pneg %p155
        %p354 = pneg %p152
        %p355 = pneg %p176
        %p356 = pneg %p173
        %p357 = pneg %p197
        %p358 = pneg %p194
        %p359 = pneg %p218
        %p360 = pneg %p215
        %p361 = pneg %p239
        %p362 = pneg %p236
        %p363 = pneg %p265
        %p364 = pneg %p262
        %s365 = sand.u32 %s252, 1
        %s366 = scalar_lea.sflag [#allocation3], %s365
        %s367 = sand.u32 %s252, 1
        %s368 = smul.addr %s367, 128
        %s369 = scalar_lea.vmem [#allocation2], %s368
        %s370 = smul.u32 16, %s24
        %p371 = scmp.lt.s32.totalorder %s370, 31
        %s372 = scalar_select %p371, %s370, 31
        %s373 = smul.addr %s372, 8
        %s374 = scalar_lea.vmem %s0, %s373
        %s375 = smul.u32 16, %s24
        %s376 = smul.u32 16, %s24
        %p377 = scmp.lt.s32.totalorder %s376, 31
        %s378 = scalar_select %p377, %s376, 31
        %s379 = smul.addr %s378, 8
        %s380 = scalar_lea.vmem %s1, %s379
        %s381 = smul.u32 16, %s24
        %s382 = smul.u32 16, %s24
        %v384 = vld [vmem:[%s374] sm:$0xff]
        %v385 = vld [vmem:[%s374 + $0x8] sm:$0xff]
        %v386 = vld [vmem:[%s374 + $0x10] sm:$0xff]
        %v387 = vld [vmem:[%s374 + $0x18] sm:$0xff]
        %v388 = vld [vmem:[%s374 + $0x20] sm:$0xff]
        %v389 = vld [vmem:[%s374 + $0x28] sm:$0xff]
        %v390 = vld [vmem:[%s374 + $0x30] sm:$0xff]
        %v391 = vld [vmem:[%s374 + $0x38] sm:$0xff]
        %v392 = vld [vmem:[%s374 + $0x40] sm:$0xff]
        %v393 = vld [vmem:[%s374 + $0x48] sm:$0xff]
        %v394 = vld [vmem:[%s374 + $0x50] sm:$0xff]
        %v395 = vld [vmem:[%s374 + $0x58] sm:$0xff]
        %v396 = vld [vmem:[%s374 + $0x60] sm:$0xff]
        %v397 = vld [vmem:[%s374 + $0x68] sm:$0xff]
        %v398 = vld [vmem:[%s374 + $0x70] sm:$0xff]
        %v399 = vld [vmem:[%s374 + $0x78] sm:$0xff]
        %v400 = vld [vmem:[%s380] sm:$0xff]
        %v401 = vld [vmem:[%s380 + $0x8] sm:$0xff]
        %v402 = vld [vmem:[%s380 + $0x10] sm:$0xff]
        %v403 = vld [vmem:[%s380 + $0x18] sm:$0xff]
        %v404 = vld [vmem:[%s380 + $0x20] sm:$0xff]
        %v405 = vld [vmem:[%s380 + $0x28] sm:$0xff]
        %v406 = vld [vmem:[%s380 + $0x30] sm:$0xff]
        %v407 = vld [vmem:[%s380 + $0x38] sm:$0xff]
        %v408 = vld [vmem:[%s380 + $0x40] sm:$0xff]
        %v409 = vld [vmem:[%s380 + $0x48] sm:$0xff]
        %v410 = vld [vmem:[%s380 + $0x50] sm:$0xff]
        %v411 = vld [vmem:[%s380 + $0x58] sm:$0xff]
        %v412 = vld [vmem:[%s380 + $0x60] sm:$0xff]
        %v413 = vld [vmem:[%s380 + $0x68] sm:$0xff]
        %v414 = vld [vmem:[%s380 + $0x70] sm:$0xff]
        %v415 = vld [vmem:[%s380 + $0x78] sm:$0xff]
        %v416 = vpack.c.bf16 %v385, %v384
        %v417 = vpack.c.bf16 %v387, %v386
        %v418 = vpack.c.bf16 %v389, %v388
        %v419 = vpack.c.bf16 %v391, %v390
        %v420 = vpack.c.bf16 %v393, %v392
        %v421 = vpack.c.bf16 %v395, %v394
        %v422 = vpack.c.bf16 %v397, %v396
        %v423 = vpack.c.bf16 %v399, %v398
        %v424 = vpack.c.bf16 %v401, %v400
        %v425 = vpack.c.bf16 %v403, %v402
        %v426 = vpack.c.bf16 %v405, %v404
        %v427 = vpack.c.bf16 %v407, %v406
        %v428 = vpack.c.bf16 %v409, %v408
        %v429 = vpack.c.bf16 %v411, %v410
        %v430 = vpack.c.bf16 %v413, %v412
        %v431 = vpack.c.bf16 %v415, %v414
        %v432 = vld [vmem:[%s2] sm:$0xf]
        %v433 = vld [vmem:[%s3] sm:$0xf]
        %v434 = vld [vmem:[%s3 + $0x4] sm:$0xf]
        %v437 = vunpack.c.l.b16 %v433
        %v438 = vunpack.c.l.b16 %v434
        %v439 = vpack.c.b16 %v438, %v437
        %vm441 = vcmask 130048
        %v443 = vsel %vm441, %v416, 0
        %v446 = vsel %vm441, %v417, 0
        %v449 = vsel %vm441, %v418, 0
        %v452 = vsel %vm441, %v419, 0
        %v455 = vsel %vm441, %v420, 0
        %v458 = vsel %vm441, %v421, 0
        %v461 = vsel %vm441, %v422, 0
        %v464 = vsel %vm441, %v423, 0
        %466 = vmatprep.subr.bf16.mxu0 0
        %467 = vmatpush1.bf16.msra.mxu0 0
        %468 = vmatprep.subr.bf16.mxu0 0
        %469 = vmatpush1.bf16.msra.mxu0 0
        %470 = vmatprep.subr.bf16.mxu0 0
        %471 = vmatpush1.bf16.msra.mxu0 0
        %472 = vmatprep.subr.bf16.mxu0 0
        %473 = vmatpush1.bf16.msra.mxu0 0
        %474 = vmatprep.subr.bf16.mxu0 0
        %475 = vmatpush1.bf16.msra.mxu0 0
        %476 = vmatprep.subr.bf16.mxu0 0
        %477 = vmatpush1.bf16.msra.mxu0 0
        %478 = vmatprep.subr.bf16.mxu0 0
        %479 = vmatpush1.bf16.msra.mxu0 0
        %480 = vmatprep.subr.bf16.mxu0 0
        %481 = vmatpush1.bf16.msra.mxu0 %v439
        %482 = vmatprep.subr.bf16.mxu0 0
        %483 = vmatpush2.bf16.msra.mxu0 0
        %484 = vmatprep.subr.bf16.mxu0 0
        %485 = vmatpush2.bf16.msra.mxu0 0
        %486 = vmatprep.subr.bf16.mxu0 0
        %487 = vmatpush2.bf16.msra.mxu0 0
        %488 = vmatprep.subr.bf16.mxu0 0
        %489 = vmatpush2.bf16.msra.mxu0 0
        %490 = vmatprep.subr.bf16.mxu0 0
        %491 = vmatpush2.bf16.msra.mxu0 0
        %492 = vmatprep.subr.bf16.mxu0 0
        %493 = vmatpush2.bf16.msra.mxu0 0
        %494 = vmatprep.subr.bf16.mxu0 0
        %495 = vmatpush2.bf16.msra.mxu0 0
        %496 = vmatprep.subr.bf16.mxu0 0
        %497 = vmatpush2.bf16.msra.mxu0 0
        %498 = vmatprep.mubr.bf16.mxu0 0
        %499 = vmatmul.mubr.bf16.gmra.mxu0 %v443
        %v500 = vpop.f32.mrf.mxu0
        %v501 = vadd.f32 0.0, %v500
        %v502 = vpop.f32.mrf.mxu0
        %v503 = vpop.f32.mrf.mxu0
        %v504 = vadd.f32 0.0, %v503
        %v505 = vpop.f32.mrf.mxu0
        %506 = vmatprep.mubr.bf16.mxu0 0
        %507 = vmatmul.mubr.bf16.gmra.mxu0 %v446
        %v508 = vpop.f32.mrf.mxu0
        %v509 = vadd.f32 0.0, %v508
        %v510 = vpop.f32.mrf.mxu0
        %v511 = vpop.f32.mrf.mxu0
        %v512 = vadd.f32 0.0, %v511
        %v513 = vpop.f32.mrf.mxu0
        %514 = vmatprep.mubr.bf16.mxu0 0
        %515 = vmatmul.mubr.bf16.gmra.mxu0 %v449
        %v516 = vpop.f32.mrf.mxu0
        %v517 = vadd.f32 0.0, %v516
        %v518 = vpop.f32.mrf.mxu0
        %v519 = vpop.f32.mrf.mxu0
        %v520 = vadd.f32 0.0, %v519
        %v521 = vpop.f32.mrf.mxu0
        %522 = vmatprep.mubr.bf16.mxu0 0
        %523 = vmatmul.mubr.bf16.gmra.mxu0 %v452
        %v524 = vpop.f32.mrf.mxu0
        %v525 = vadd.f32 0.0, %v524
        %v526 = vpop.f32.mrf.mxu0
        %v527 = vpop.f32.mrf.mxu0
        %v528 = vadd.f32 0.0, %v527
        %v529 = vpop.f32.mrf.mxu0
        %530 = vmatprep.mubr.bf16.mxu0 0
        %531 = vmatmul.mubr.bf16.gmra.mxu0 %v455
        %v532 = vpop.f32.mrf.mxu0
        %v533 = vadd.f32 0.0, %v532
        %v534 = vpop.f32.mrf.mxu0
        %v535 = vpop.f32.mrf.mxu0
        %v536 = vadd.f32 0.0, %v535
        %v537 = vpop.f32.mrf.mxu0
        %538 = vmatprep.mubr.bf16.mxu0 0
        %539 = vmatmul.mubr.bf16.gmra.mxu0 %v458
        %v540 = vpop.f32.mrf.mxu0
        %v541 = vadd.f32 0.0, %v540
        %v542 = vpop.f32.mrf.mxu0
        %v543 = vpop.f32.mrf.mxu0
        %v544 = vadd.f32 0.0, %v543
        %v545 = vpop.f32.mrf.mxu0
        %546 = vmatprep.mubr.bf16.mxu0 0
        %547 = vmatmul.mubr.bf16.gmra.mxu0 %v461
        %v548 = vpop.f32.mrf.mxu0
        %v549 = vadd.f32 0.0, %v548
        %v550 = vpop.f32.mrf.mxu0
        %v551 = vpop.f32.mrf.mxu0
        %v552 = vadd.f32 0.0, %v551
        %v553 = vpop.f32.mrf.mxu0
        %554 = vmatprep.mubr.bf16.mxu0 0
        %555 = vmatmul.mubr.bf16.gmra.mxu0 %v464
        %v556 = vpop.f32.mrf.mxu0
        %v557 = vadd.f32 0.0, %v556
        %v558 = vpop.f32.mrf.mxu0
        %v559 = vpop.f32.mrf.mxu0
        %v560 = vadd.f32 0.0, %v559
        %v561 = vpop.f32.mrf.mxu0
        %562 = vdwg.mxu0
        %vm563 = vcmask 64512
        %v565 = vsel %vm563, %v424, 0
        %v568 = vsel %vm563, %v425, 0
        %v571 = vsel %vm563, %v426, 0
        %v574 = vsel %vm563, %v427, 0
        %v577 = vsel %vm563, %v428, 0
        %v580 = vsel %vm563, %v429, 0
        %v583 = vsel %vm563, %v430, 0
        %v586 = vsel %vm563, %v431, 0
        %vm588 = vcmask 1043456
        %v590 = vsel %vm588, %v432, 0
        %592 = vmatprep.subr.bf16.mxu0 0
        %593 = vmatpush1.bf16.msra.mxu0 0
        %594 = vmatprep.subr.bf16.mxu0 0
        %595 = vmatpush1.bf16.msra.mxu0 0
        %596 = vmatprep.subr.bf16.mxu0 0
        %597 = vmatpush1.bf16.msra.mxu0 0
        %598 = vmatprep.subr.bf16.mxu0 0
        %599 = vmatpush1.bf16.msra.mxu0 0
        %600 = vmatprep.subr.bf16.mxu0 0
        %601 = vmatpush1.bf16.msra.mxu0 0
        %602 = vmatprep.subr.bf16.mxu0 0
        %603 = vmatpush1.bf16.msra.mxu0 0
        %604 = vmatprep.subr.bf16.mxu0 0
        %605 = vmatpush1.bf16.msra.mxu0 0
        %606 = vmatprep.subr.bf16.mxu0 0
        %607 = vmatpush1.bf16.msra.mxu0 %v590
        %608 = vmatprep.subr.bf16.mxu0 0
        %609 = vmatpush2.bf16.msra.mxu0 0
        %610 = vmatprep.subr.bf16.mxu0 0
        %611 = vmatpush2.bf16.msra.mxu0 0
        %612 = vmatprep.subr.bf16.mxu0 0
        %613 = vmatpush2.bf16.msra.mxu0 0
        %614 = vmatprep.subr.bf16.mxu0 0
        %615 = vmatpush2.bf16.msra.mxu0 0
        %616 = vmatprep.subr.bf16.mxu0 0
        %617 = vmatpush2.bf16.msra.mxu0 0
        %618 = vmatprep.subr.bf16.mxu0 0
        %619 = vmatpush2.bf16.msra.mxu0 0
        %620 = vmatprep.subr.bf16.mxu0 0
        %621 = vmatpush2.bf16.msra.mxu0 0
        %622 = vmatprep.subr.bf16.mxu0 0
        %623 = vmatpush2.bf16.msra.mxu0 0
        %624 = vmatprep.mubr.bf16.mxu0 0
        %625 = vmatmul.mubr.bf16.gmra.mxu0 %v565
        %v626 = vpop.f32.mrf.mxu0
        %v627 = vadd.f32 %v501, %v626
        %v628 = vpop.f32.mrf.mxu0
        %v629 = vpop.f32.mrf.mxu0
        %v630 = vadd.f32 %v504, %v629
        %v631 = vpop.f32.mrf.mxu0
        %632 = vmatprep.mubr.bf16.mxu0 0
        %633 = vmatmul.mubr.bf16.gmra.mxu0 %v568
        %v634 = vpop.f32.mrf.mxu0
        %v635 = vadd.f32 %v509, %v634
        %v636 = vpop.f32.mrf.mxu0
        %v637 = vpop.f32.mrf.mxu0
        %v638 = vadd.f32 %v512, %v637
        %v639 = vpop.f32.mrf.mxu0
        %640 = vmatprep.mubr.bf16.mxu0 0
        %641 = vmatmul.mubr.bf16.gmra.mxu0 %v571
        %v642 = vpop.f32.mrf.mxu0
        %v643 = vadd.f32 %v517, %v642
        %v644 = vpop.f32.mrf.mxu0
        %v645 = vpop.f32.mrf.mxu0
        %v646 = vadd.f32 %v520, %v645
        %v647 = vpop.f32.mrf.mxu0
        %648 = vmatprep.mubr.bf16.mxu0 0
        %649 = vmatmul.mubr.bf16.gmra.mxu0 %v574
        %v650 = vpop.f32.mrf.mxu0
        %v651 = vadd.f32 %v525, %v650
        %v652 = vpop.f32.mrf.mxu0
        %v653 = vpop.f32.mrf.mxu0
        %v654 = vadd.f32 %v528, %v653
        %v655 = vpop.f32.mrf.mxu0
        %656 = vmatprep.mubr.bf16.mxu0 0
        %657 = vmatmul.mubr.bf16.gmra.mxu0 %v577
        %v658 = vpop.f32.mrf.mxu0
        %v659 = vadd.f32 %v533, %v658
        %v660 = vpop.f32.mrf.mxu0
        %v661 = vpop.f32.mrf.mxu0
        %v662 = vadd.f32 %v536, %v661
        %v663 = vpop.f32.mrf.mxu0
        %664 = vmatprep.mubr.bf16.mxu0 0
        %665 = vmatmul.mubr.bf16.gmra.mxu0 %v580
        %v666 = vpop.f32.mrf.mxu0
        %v667 = vadd.f32 %v541, %v666
        %v668 = vpop.f32.mrf.mxu0
        %v669 = vpop.f32.mrf.mxu0
        %v670 = vadd.f32 %v544, %v669
        %v671 = vpop.f32.mrf.mxu0
        %672 = vmatprep.mubr.bf16.mxu0 0
        %673 = vmatmul.mubr.bf16.gmra.mxu0 %v583
        %v674 = vpop.f32.mrf.mxu0
        %v675 = vadd.f32 %v549, %v674
        %v676 = vpop.f32.mrf.mxu0
        %v677 = vpop.f32.mrf.mxu0
        %v678 = vadd.f32 %v552, %v677
        %v679 = vpop.f32.mrf.mxu0
        %680 = vmatprep.mubr.bf16.mxu0 0
        %681 = vmatmul.mubr.bf16.gmra.mxu0 %v586
        %v682 = vpop.f32.mrf.mxu0
        %v683 = vadd.f32 %v557, %v682
        %v684 = vpop.f32.mrf.mxu0
        %v685 = vpop.f32.mrf.mxu0
        %v686 = vadd.f32 %v560, %v685
        %v687 = vpop.f32.mrf.mxu0
        %688 = vdwg.mxu0
        %v689 = vld [vmem:[%s4] sm:$0x1]
        %v691 = vlaneseq
        %v692 = vshrl.u32 %v691, 7
        %v693 = vsub.s32 0, %v692
        %v694 = vrot.slane %v689, %v693
        %v696 = vadd.f32 %v627, %v694
        %v697 = vadd.f32 %v630, %v694
        %v698 = vadd.f32 %v635, %v694
        %v699 = vadd.f32 %v638, %v694
        %v700 = vadd.f32 %v643, %v694
        %v701 = vadd.f32 %v646, %v694
        %v702 = vadd.f32 %v651, %v694
        %v703 = vadd.f32 %v654, %v694
        %v704 = vadd.f32 %v659, %v694
        %v705 = vadd.f32 %v662, %v694
        %v706 = vadd.f32 %v667, %v694
        %v707 = vadd.f32 %v670, %v694
        %v708 = vadd.f32 %v675, %v694
        %v709 = vadd.f32 %v678, %v694
        %v710 = vadd.f32 %v683, %v694
        %v711 = vadd.f32 %v686, %v694
        %vm712 = vcmp.gt.f32.partialorder %v696, 0.0
        %vm713 = vcmp.gt.f32.partialorder %v697, 0.0
        %vm714 = vcmp.gt.f32.partialorder %v698, 0.0
        %vm715 = vcmp.gt.f32.partialorder %v699, 0.0
        %vm716 = vcmp.gt.f32.partialorder %v700, 0.0
        %vm717 = vcmp.gt.f32.partialorder %v701, 0.0
        %vm718 = vcmp.gt.f32.partialorder %v702, 0.0
        %vm719 = vcmp.gt.f32.partialorder %v703, 0.0
        %vm720 = vcmp.gt.f32.partialorder %v704, 0.0
        %vm721 = vcmp.gt.f32.partialorder %v705, 0.0
        %vm722 = vcmp.gt.f32.partialorder %v706, 0.0
        %vm723 = vcmp.gt.f32.partialorder %v707, 0.0
        %vm724 = vcmp.gt.f32.partialorder %v708, 0.0
        %vm725 = vcmp.gt.f32.partialorder %v709, 0.0
        %vm726 = vcmp.gt.f32.partialorder %v710, 0.0
        %vm727 = vcmp.gt.f32.partialorder %v711, 0.0
        %v728 = vmin.f32 %v696, 0.0
        %v729 = vmin.f32 %v697, 0.0
        %v730 = vmin.f32 %v698, 0.0
        %v731 = vmin.f32 %v699, 0.0
        %v732 = vmin.f32 %v700, 0.0
        %v733 = vmin.f32 %v701, 0.0
        %v734 = vmin.f32 %v702, 0.0
        %v735 = vmin.f32 %v703, 0.0
        %v736 = vmin.f32 %v704, 0.0
        %v737 = vmin.f32 %v705, 0.0
        %v738 = vmin.f32 %v706, 0.0
        %v739 = vmin.f32 %v707, 0.0
        %v740 = vmin.f32 %v708, 0.0
        %v741 = vmin.f32 %v709, 0.0
        %v742 = vmin.f32 %v710, 0.0
        %v743 = vmin.f32 %v711, 0.0
        %v744 = vmul.f32 %v728, 1.442695
        %v745 = vpow.pop %v744
        %v746 = vmul.f32 %v729, 1.442695
        %v747 = vpow.pop %v746
        %v748 = vmul.f32 %v730, 1.442695
        %v749 = vpow.pop %v748
        %v750 = vmul.f32 %v731, 1.442695
        %v751 = vpow.pop %v750
        %v752 = vmul.f32 %v732, 1.442695
        %v753 = vpow.pop %v752
        %v754 = vmul.f32 %v733, 1.442695
        %v755 = vpow.pop %v754
        %v756 = vmul.f32 %v734, 1.442695
        %v757 = vpow.pop %v756
        %v758 = vmul.f32 %v735, 1.442695
        %v759 = vpow.pop %v758
        %v760 = vmul.f32 %v736, 1.442695
        %v761 = vpow.pop %v760
        %v762 = vmul.f32 %v737, 1.442695
        %v763 = vpow.pop %v762
        %v764 = vmul.f32 %v738, 1.442695
        %v765 = vpow.pop %v764
        %v766 = vmul.f32 %v739, 1.442695
        %v767 = vpow.pop %v766
        %v768 = vmul.f32 %v740, 1.442695
        %v769 = vpow.pop %v768
        %v770 = vmul.f32 %v741, 1.442695
        %v771 = vpow.pop %v770
        %v772 = vmul.f32 %v742, 1.442695
        %v773 = vpow.pop %v772
        %v774 = vmul.f32 %v743, 1.442695
        %v775 = vpow.pop %v774
        %v776 = vsub.f32 %v745, 1.0
        %v777 = vsub.f32 %v747, 1.0
        %v778 = vsub.f32 %v749, 1.0
        %v779 = vsub.f32 %v751, 1.0
        %v780 = vsub.f32 %v753, 1.0
        %v781 = vsub.f32 %v755, 1.0
        %v782 = vsub.f32 %v757, 1.0
        %v783 = vsub.f32 %v759, 1.0
        %v784 = vsub.f32 %v761, 1.0
        %v785 = vsub.f32 %v763, 1.0
        %v786 = vsub.f32 %v765, 1.0
        %v787 = vsub.f32 %v767, 1.0
        %v788 = vsub.f32 %v769, 1.0
        %v789 = vsub.f32 %v771, 1.0
        %v790 = vsub.f32 %v773, 1.0
        %v791 = vsub.f32 %v775, 1.0
        %v792 = vsel %vm712, %v696, %v776
        %v793 = vsel %vm713, %v697, %v777
        %v794 = vsel %vm714, %v698, %v778
        %v795 = vsel %vm715, %v699, %v779
        %v796 = vsel %vm716, %v700, %v780
        %v797 = vsel %vm717, %v701, %v781
        %v798 = vsel %vm718, %v702, %v782
        %v799 = vsel %vm719, %v703, %v783
        %v800 = vsel %vm720, %v704, %v784
        %v801 = vsel %vm721, %v705, %v785
        %v802 = vsel %vm722, %v706, %v786
        %v803 = vsel %vm723, %v707, %v787
        %v804 = vsel %vm724, %v708, %v788
        %v805 = vsel %vm725, %v709, %v789
        %v806 = vsel %vm726, %v710, %v790
        %v807 = vsel %vm727, %v711, %v791
        %v808 = vsel %vm563, %v792, -inf
        %809 = vmax.xlane.f32.xlu0 %v808
        %v810 = vpop.xlane.xlu0 %809
        %v811 = vsel %vm563, %v793, -inf
        %812 = vmax.xlane.f32.xlu0 %v811
        %v813 = vpop.xlane.xlu0 %812
        %v814 = vsel %vm563, %v794, -inf
        %815 = vmax.xlane.f32.xlu0 %v814
        %v816 = vpop.xlane.xlu0 %815
        %v817 = vsel %vm563, %v795, -inf
        %818 = vmax.xlane.f32.xlu0 %v817
        %v819 = vpop.xlane.xlu0 %818
        %v820 = vsel %vm563, %v796, -inf
        %821 = vmax.xlane.f32.xlu0 %v820
        %v822 = vpop.xlane.xlu0 %821
        %v823 = vsel %vm563, %v797, -inf
        %824 = vmax.xlane.f32.xlu0 %v823
        %v825 = vpop.xlane.xlu0 %824
        %v826 = vsel %vm563, %v798, -inf
        %827 = vmax.xlane.f32.xlu0 %v826
        %v828 = vpop.xlane.xlu0 %827
        %v829 = vsel %vm563, %v799, -inf
        %830 = vmax.xlane.f32.xlu0 %v829
        %v831 = vpop.xlane.xlu0 %830
        %v832 = vsel %vm563, %v800, -inf
        %833 = vmax.xlane.f32.xlu0 %v832
        %v834 = vpop.xlane.xlu0 %833
        %v835 = vsel %vm563, %v801, -inf
        %836 = vmax.xlane.f32.xlu0 %v835
        %v837 = vpop.xlane.xlu0 %836
        %v838 = vsel %vm563, %v802, -inf
        %839 = vmax.xlane.f32.xlu0 %v838
        %v840 = vpop.xlane.xlu0 %839
        %v841 = vsel %vm563, %v803, -inf
        %842 = vmax.xlane.f32.xlu0 %v841
        %v843 = vpop.xlane.xlu0 %842
        %v844 = vsel %vm563, %v804, -inf
        %845 = vmax.xlane.f32.xlu0 %v844
        %v846 = vpop.xlane.xlu0 %845
        %v847 = vsel %vm563, %v805, -inf
        %848 = vmax.xlane.f32.xlu0 %v847
        %v849 = vpop.xlane.xlu0 %848
        %v850 = vsel %vm563, %v806, -inf
        %851 = vmax.xlane.f32.xlu0 %v850
        %v852 = vpop.xlane.xlu0 %851
        %v853 = vsel %vm563, %v807, -inf
        %854 = vmax.xlane.f32.xlu0 %v853
        %v855 = vpop.xlane.xlu0 %854
        %v856 = vsub.f32 %v792, %v810
        %v857 = vsub.f32 %v793, %v813
        %v858 = vsub.f32 %v794, %v816
        %v859 = vsub.f32 %v795, %v819
        %v860 = vsub.f32 %v796, %v822
        %v861 = vsub.f32 %v797, %v825
        %v862 = vsub.f32 %v798, %v828
        %v863 = vsub.f32 %v799, %v831
        %v864 = vsub.f32 %v800, %v834
        %v865 = vsub.f32 %v801, %v837
        %v866 = vsub.f32 %v802, %v840
        %v867 = vsub.f32 %v803, %v843
        %v868 = vsub.f32 %v804, %v846
        %v869 = vsub.f32 %v805, %v849
        %v870 = vsub.f32 %v806, %v852
        %v871 = vsub.f32 %v807, %v855
        %v872 = vmul.f32 %v856, 1.442695
        %v873 = vpow.pop %v872
        %v874 = vmul.f32 %v857, 1.442695
        %v875 = vpow.pop %v874
        %v876 = vmul.f32 %v858, 1.442695
        %v877 = vpow.pop %v876
        %v878 = vmul.f32 %v859, 1.442695
        %v879 = vpow.pop %v878
        %v880 = vmul.f32 %v860, 1.442695
        %v881 = vpow.pop %v880
        %v882 = vmul.f32 %v861, 1.442695
        %v883 = vpow.pop %v882
        %v884 = vmul.f32 %v862, 1.442695
        %v885 = vpow.pop %v884
        %v886 = vmul.f32 %v863, 1.442695
        %v887 = vpow.pop %v886
        %v888 = vmul.f32 %v864, 1.442695
        %v889 = vpow.pop %v888
        %v890 = vmul.f32 %v865, 1.442695
        %v891 = vpow.pop %v890
        %v892 = vmul.f32 %v866, 1.442695
        %v893 = vpow.pop %v892
        %v894 = vmul.f32 %v867, 1.442695
        %v895 = vpow.pop %v894
        %v896 = vmul.f32 %v868, 1.442695
        %v897 = vpow.pop %v896
        %v898 = vmul.f32 %v869, 1.442695
        %v899 = vpow.pop %v898
        %v900 = vmul.f32 %v870, 1.442695
        %v901 = vpow.pop %v900
        %v902 = vmul.f32 %v871, 1.442695
        %v903 = vpow.pop %v902
        %v904 = vsel %vm563, %v873, 0.0
        %905 = vadd.xlane.f32.xlu0 %v904
        %v906 = vpop.xlane.xlu0 %905
        %v907 = vsel %vm563, %v875, 0.0
        %908 = vadd.xlane.f32.xlu0 %v907
        %v909 = vpop.xlane.xlu0 %908
        %v910 = vsel %vm563, %v877, 0.0
        %911 = vadd.xlane.f32.xlu0 %v910
        %v912 = vpop.xlane.xlu0 %911
        %v913 = vsel %vm563, %v879, 0.0
        %914 = vadd.xlane.f32.xlu0 %v913
        %v915 = vpop.xlane.xlu0 %914
        %v916 = vsel %vm563, %v881, 0.0
        %917 = vadd.xlane.f32.xlu0 %v916
        %v918 = vpop.xlane.xlu0 %917
        %v919 = vsel %vm563, %v883, 0.0
        %920 = vadd.xlane.f32.xlu0 %v919
        %v921 = vpop.xlane.xlu0 %920
        %v922 = vsel %vm563, %v885, 0.0
        %923 = vadd.xlane.f32.xlu0 %v922
        %v924 = vpop.xlane.xlu0 %923
        %v925 = vsel %vm563, %v887, 0.0
        %926 = vadd.xlane.f32.xlu0 %v925
        %v927 = vpop.xlane.xlu0 %926
        %v928 = vsel %vm563, %v889, 0.0
        %929 = vadd.xlane.f32.xlu0 %v928
        %v930 = vpop.xlane.xlu0 %929
        %v931 = vsel %vm563, %v891, 0.0
        %932 = vadd.xlane.f32.xlu0 %v931
        %v933 = vpop.xlane.xlu0 %932
        %v934 = vsel %vm563, %v893, 0.0
        %935 = vadd.xlane.f32.xlu0 %v934
        %v936 = vpop.xlane.xlu0 %935
        %v937 = vsel %vm563, %v895, 0.0
        %938 = vadd.xlane.f32.xlu0 %v937
        %v939 = vpop.xlane.xlu0 %938
        %v940 = vsel %vm563, %v897, 0.0
        %941 = vadd.xlane.f32.xlu0 %v940
        %v942 = vpop.xlane.xlu0 %941
        %v943 = vsel %vm563, %v899, 0.0
        %944 = vadd.xlane.f32.xlu0 %v943
        %v945 = vpop.xlane.xlu0 %944
        %v946 = vsel %vm563, %v901, 0.0
        %947 = vadd.xlane.f32.xlu0 %v946
        %v948 = vpop.xlane.xlu0 %947
        %v949 = vsel %vm563, %v903, 0.0
        %950 = vadd.xlane.f32.xlu0 %v949
        %v951 = vpop.xlane.xlu0 %950
        %v952 = vrcp.pop %v906
        %v953 = vrcp.pop %v909
        %v954 = vrcp.pop %v912
        %v955 = vrcp.pop %v915
        %v956 = vrcp.pop %v918
        %v957 = vrcp.pop %v921
        %v958 = vrcp.pop %v924
        %v959 = vrcp.pop %v927
        %v960 = vrcp.pop %v930
        %v961 = vrcp.pop %v933
        %v962 = vrcp.pop %v936
        %v963 = vrcp.pop %v939
        %v964 = vrcp.pop %v942
        %v965 = vrcp.pop %v945
        %v966 = vrcp.pop %v948
        %v967 = vrcp.pop %v951
        %v968 = vmul.f32 %v873, %v952
        %v969 = vmul.f32 %v875, %v953
        %v970 = vmul.f32 %v877, %v954
        %v971 = vmul.f32 %v879, %v955
        %v972 = vmul.f32 %v881, %v956
        %v973 = vmul.f32 %v883, %v957
        %v974 = vmul.f32 %v885, %v958
        %v975 = vmul.f32 %v887, %v959
        %v976 = vmul.f32 %v889, %v960
        %v977 = vmul.f32 %v891, %v961
        %v978 = vmul.f32 %v893, %v962
        %v979 = vmul.f32 %v895, %v963
        %v980 = vmul.f32 %v897, %v964
        %v981 = vmul.f32 %v899, %v965
        %v982 = vmul.f32 %v901, %v966
        %v983 = vmul.f32 %v903, %v967
        %v984 = vmul.f32 %v968, %v400
        %v985 = vmul.f32 %v969, %v401
        %v986 = vmul.f32 %v970, %v402
        %v987 = vmul.f32 %v971, %v403
        %v988 = vmul.f32 %v972, %v404
        %v989 = vmul.f32 %v973, %v405
        %v990 = vmul.f32 %v974, %v406
        %v991 = vmul.f32 %v975, %v407
        %v992 = vmul.f32 %v976, %v408
        %v993 = vmul.f32 %v977, %v409
        %v994 = vmul.f32 %v978, %v410
        %v995 = vmul.f32 %v979, %v411
        %v996 = vmul.f32 %v980, %v412
        %v997 = vmul.f32 %v981, %v413
        %v998 = vmul.f32 %v982, %v414
        %v999 = vmul.f32 %v983, %v415
        %v1000 = vpack.c.bf16 %v985, %v984
        %v1001 = vpack.c.bf16 %v987, %v986
        %v1002 = vpack.c.bf16 %v989, %v988
        %v1003 = vpack.c.bf16 %v991, %v990
        %v1004 = vpack.c.bf16 %v993, %v992
        %v1005 = vpack.c.bf16 %v995, %v994
        %v1006 = vpack.c.bf16 %v997, %v996
        %v1007 = vpack.c.bf16 %v999, %v998
        %v1008 = vld [vmem:[%s5] sm:$0xf]
        %v1009 = vld [vmem:[%s5 + $0x4] sm:$0xf]
        %v1010 = vld [vmem:[%s6] sm:$0xf]
        %v1012 = vsel %vm563, %v1000, 0
        %v1015 = vsel %vm563, %v1001, 0
        %v1018 = vsel %vm563, %v1002, 0
        %v1021 = vsel %vm563, %v1003, 0
        %v1024 = vsel %vm563, %v1004, 0
        %v1027 = vsel %vm563, %v1005, 0
        %v1030 = vsel %vm563, %v1006, 0
        %v1033 = vsel %vm563, %v1007, 0
        %v1036 = vsel %vm588, %v1010, 0
        %1038 = vmatprep.subr.bf16.mxu0 0
        %1039 = vmatpush1.bf16.msra.mxu0 0
        %1040 = vmatprep.subr.bf16.mxu0 0
        %1041 = vmatpush1.bf16.msra.mxu0 0
        %1042 = vmatprep.subr.bf16.mxu0 0
        %1043 = vmatpush1.bf16.msra.mxu0 0
        %1044 = vmatprep.subr.bf16.mxu0 0
        %1045 = vmatpush1.bf16.msra.mxu0 0
        %1046 = vmatprep.subr.bf16.mxu0 0
        %1047 = vmatpush1.bf16.msra.mxu0 0
        %1048 = vmatprep.subr.bf16.mxu0 0
        %1049 = vmatpush1.bf16.msra.mxu0 0
        %1050 = vmatprep.subr.bf16.mxu0 0
        %1051 = vmatpush1.bf16.msra.mxu0 0
        %1052 = vmatprep.subr.bf16.mxu0 0
        %1053 = vmatpush1.bf16.msra.mxu0 %v1036
        %1054 = vmatprep.subr.bf16.mxu0 0
        %1055 = vmatpush2.bf16.msra.mxu0 0
        %1056 = vmatprep.subr.bf16.mxu0 0
        %1057 = vmatpush2.bf16.msra.mxu0 0
        %1058 = vmatprep.subr.bf16.mxu0 0
        %1059 = vmatpush2.bf16.msra.mxu0 0
        %1060 = vmatprep.subr.bf16.mxu0 0
        %1061 = vmatpush2.bf16.msra.mxu0 0
        %1062 = vmatprep.subr.bf16.mxu0 0
        %1063 = vmatpush2.bf16.msra.mxu0 0
        %1064 = vmatprep.subr.bf16.mxu0 0
        %1065 = vmatpush2.bf16.msra.mxu0 0
        %1066 = vmatprep.subr.bf16.mxu0 0
        %1067 = vmatpush2.bf16.msra.mxu0 0
        %1068 = vmatprep.subr.bf16.mxu0 0
        %1069 = vmatpush2.bf16.msra.mxu0 0
        %1070 = vmatprep.mubr.bf16.mxu0 0
        %1071 = vmatmul.mubr.bf16.gmra.mxu0 %v1012
        %v1072 = vpop.f32.mrf.mxu0
        %v1073 = vadd.f32 0.0, %v1072
        %v1074 = vpop.f32.mrf.mxu0
        %v1075 = vpop.f32.mrf.mxu0
        %v1076 = vadd.f32 0.0, %v1075
        %v1077 = vpop.f32.mrf.mxu0
        %1078 = vmatprep.mubr.bf16.mxu0 0
        %1079 = vmatmul.mubr.bf16.gmra.mxu0 %v1015
        %v1080 = vpop.f32.mrf.mxu0
        %v1081 = vadd.f32 0.0, %v1080
        %v1082 = vpop.f32.mrf.mxu0
        %v1083 = vpop.f32.mrf.mxu0
        %v1084 = vadd.f32 0.0, %v1083
        %v1085 = vpop.f32.mrf.mxu0
        %1086 = vmatprep.mubr.bf16.mxu0 0
        %1087 = vmatmul.mubr.bf16.gmra.mxu0 %v1018
        %v1088 = vpop.f32.mrf.mxu0
        %v1089 = vadd.f32 0.0, %v1088
        %v1090 = vpop.f32.mrf.mxu0
        %v1091 = vpop.f32.mrf.mxu0
        %v1092 = vadd.f32 0.0, %v1091
        %v1093 = vpop.f32.mrf.mxu0
        %1094 = vmatprep.mubr.bf16.mxu0 0
        %1095 = vmatmul.mubr.bf16.gmra.mxu0 %v1021
        %v1096 = vpop.f32.mrf.mxu0
        %v1097 = vadd.f32 0.0, %v1096
        %v1098 = vpop.f32.mrf.mxu0
        %v1099 = vpop.f32.mrf.mxu0
        %v1100 = vadd.f32 0.0, %v1099
        %v1101 = vpop.f32.mrf.mxu0
        %1102 = vmatprep.mubr.bf16.mxu0 0
        %1103 = vmatmul.mubr.bf16.gmra.mxu0 %v1024
        %v1104 = vpop.f32.mrf.mxu0
        %v1105 = vadd.f32 0.0, %v1104
        %v1106 = vpop.f32.mrf.mxu0
        %v1107 = vpop.f32.mrf.mxu0
        %v1108 = vadd.f32 0.0, %v1107
        %v1109 = vpop.f32.mrf.mxu0
        %1110 = vmatprep.mubr.bf16.mxu0 0
        %1111 = vmatmul.mubr.bf16.gmra.mxu0 %v1027
        %v1112 = vpop.f32.mrf.mxu0
        %v1113 = vadd.f32 0.0, %v1112
        %v1114 = vpop.f32.mrf.mxu0
        %v1115 = vpop.f32.mrf.mxu0
        %v1116 = vadd.f32 0.0, %v1115
        %v1117 = vpop.f32.mrf.mxu0
        %1118 = vmatprep.mubr.bf16.mxu0 0
        %1119 = vmatmul.mubr.bf16.gmra.mxu0 %v1030
        %v1120 = vpop.f32.mrf.mxu0
        %v1121 = vadd.f32 0.0, %v1120
        %v1122 = vpop.f32.mrf.mxu0
        %v1123 = vpop.f32.mrf.mxu0
        %v1124 = vadd.f32 0.0, %v1123
        %v1125 = vpop.f32.mrf.mxu0
        %1126 = vmatprep.mubr.bf16.mxu0 0
        %1127 = vmatmul.mubr.bf16.gmra.mxu0 %v1033
        %v1128 = vpop.f32.mrf.mxu0
        %v1129 = vadd.f32 0.0, %v1128
        %v1130 = vpop.f32.mrf.mxu0
        %v1131 = vpop.f32.mrf.mxu0
        %v1132 = vadd.f32 0.0, %v1131
        %v1133 = vpop.f32.mrf.mxu0
        %1134 = vdwg.mxu0
        %v1137 = vunpack.c.l.b16 %v1008
        %v1138 = vunpack.c.l.b16 %v1009
        %v1139 = vpack.c.b16 %v1138, %v1137
        %1141 = vmatprep.subr.bf16.mxu0 0
        %1142 = vmatpush1.bf16.msra.mxu0 0
        %1143 = vmatprep.subr.bf16.mxu0 0
        %1144 = vmatpush1.bf16.msra.mxu0 0
        %1145 = vmatprep.subr.bf16.mxu0 0
        %1146 = vmatpush1.bf16.msra.mxu0 0
        %1147 = vmatprep.subr.bf16.mxu0 0
        %1148 = vmatpush1.bf16.msra.mxu0 0
        %1149 = vmatprep.subr.bf16.mxu0 0
        %1150 = vmatpush1.bf16.msra.mxu0 0
        %1151 = vmatprep.subr.bf16.mxu0 0
        %1152 = vmatpush1.bf16.msra.mxu0 0
        %1153 = vmatprep.subr.bf16.mxu0 0
        %1154 = vmatpush1.bf16.msra.mxu0 0
        %1155 = vmatprep.subr.bf16.mxu0 0
        %1156 = vmatpush1.bf16.msra.mxu0 %v1139
        %1157 = vmatprep.subr.bf16.mxu0 0
        %1158 = vmatpush2.bf16.msra.mxu0 0
        %1159 = vmatprep.subr.bf16.mxu0 0
        %1160 = vmatpush2.bf16.msra.mxu0 0
        %1161 = vmatprep.subr.bf16.mxu0 0
        %1162 = vmatpush2.bf16.msra.mxu0 0
        %1163 = vmatprep.subr.bf16.mxu0 0
        %1164 = vmatpush2.bf16.msra.mxu0 0
        %1165 = vmatprep.subr.bf16.mxu0 0
        %1166 = vmatpush2.bf16.msra.mxu0 0
        %1167 = vmatprep.subr.bf16.mxu0 0
        %1168 = vmatpush2.bf16.msra.mxu0 0
        %1169 = vmatprep.subr.bf16.mxu0 0
        %1170 = vmatpush2.bf16.msra.mxu0 0
        %1171 = vmatprep.subr.bf16.mxu0 0
        %1172 = vmatpush2.bf16.msra.mxu0 0
        %1173 = vmatprep.mubr.bf16.mxu0 0
        %1174 = vmatmul.mubr.bf16.gmra.mxu0 %v443
        %v1175 = vpop.f32.mrf.mxu0
        %v1176 = vadd.f32 %v1073, %v1175
        %v1177 = vpop.f32.mrf.mxu0
        %v1178 = vpop.f32.mrf.mxu0
        %v1179 = vadd.f32 %v1076, %v1178
        %v1180 = vpop.f32.mrf.mxu0
        %1181 = vmatprep.mubr.bf16.mxu0 0
        %1182 = vmatmul.mubr.bf16.gmra.mxu0 %v446
        %v1183 = vpop.f32.mrf.mxu0
        %v1184 = vadd.f32 %v1081, %v1183
        %v1185 = vpop.f32.mrf.mxu0
        %v1186 = vpop.f32.mrf.mxu0
        %v1187 = vadd.f32 %v1084, %v1186
        %v1188 = vpop.f32.mrf.mxu0
        %1189 = vmatprep.mubr.bf16.mxu0 0
        %1190 = vmatmul.mubr.bf16.gmra.mxu0 %v449
        %v1191 = vpop.f32.mrf.mxu0
        %v1192 = vadd.f32 %v1089, %v1191
        %v1193 = vpop.f32.mrf.mxu0
        %v1194 = vpop.f32.mrf.mxu0
        %v1195 = vadd.f32 %v1092, %v1194
        %v1196 = vpop.f32.mrf.mxu0
        %1197 = vmatprep.mubr.bf16.mxu0 0
        %1198 = vmatmul.mubr.bf16.gmra.mxu0 %v452
        %v1199 = vpop.f32.mrf.mxu0
        %v1200 = vadd.f32 %v1097, %v1199
        %v1201 = vpop.f32.mrf.mxu0
        %v1202 = vpop.f32.mrf.mxu0
        %v1203 = vadd.f32 %v1100, %v1202
        %v1204 = vpop.f32.mrf.mxu0
        %1205 = vmatprep.mubr.bf16.mxu0 0
        %1206 = vmatmul.mubr.bf16.gmra.mxu0 %v455
        %v1207 = vpop.f32.mrf.mxu0
        %v1208 = vadd.f32 %v1105, %v1207
        %v1209 = vpop.f32.mrf.mxu0
        %v1210 = vpop.f32.mrf.mxu0
        %v1211 = vadd.f32 %v1108, %v1210
        %v1212 = vpop.f32.mrf.mxu0
        %1213 = vmatprep.mubr.bf16.mxu0 0
        %1214 = vmatmul.mubr.bf16.gmra.mxu0 %v458
        %v1215 = vpop.f32.mrf.mxu0
        %v1216 = vadd.f32 %v1113, %v1215
        %v1217 = vpop.f32.mrf.mxu0
        %v1218 = vpop.f32.mrf.mxu0
        %v1219 = vadd.f32 %v1116, %v1218
        %v1220 = vpop.f32.mrf.mxu0
        %1221 = vmatprep.mubr.bf16.mxu0 0
        %1222 = vmatmul.mubr.bf16.gmra.mxu0 %v461
        %v1223 = vpop.f32.mrf.mxu0
        %v1224 = vadd.f32 %v1121, %v1223
        %v1225 = vpop.f32.mrf.mxu0
        %v1226 = vpop.f32.mrf.mxu0
        %v1227 = vadd.f32 %v1124, %v1226
        %v1228 = vpop.f32.mrf.mxu0
        %1229 = vmatprep.mubr.bf16.mxu0 0
        %1230 = vmatmul.mubr.bf16.gmra.mxu0 %v464
        %v1231 = vpop.f32.mrf.mxu0
        %v1232 = vadd.f32 %v1129, %v1231
        %v1233 = vpop.f32.mrf.mxu0
        %v1234 = vpop.f32.mrf.mxu0
        %v1235 = vadd.f32 %v1132, %v1234
        %v1236 = vpop.f32.mrf.mxu0
        %1237 = vdwg.mxu0
        %v1238 = vld [vmem:[%s7] sm:$0x1]
        %v1240 = vlaneseq
        %v1241 = vshrl.u32 %v1240, 7
        %v1242 = vsub.s32 0, %v1241
        %v1243 = vrot.slane %v1238, %v1242
        %v1245 = vadd.f32 %v1176, %v1243
        %v1246 = vadd.f32 %v1179, %v1243
        %v1247 = vadd.f32 %v1184, %v1243
        %v1248 = vadd.f32 %v1187, %v1243
        %v1249 = vadd.f32 %v1192, %v1243
        %v1250 = vadd.f32 %v1195, %v1243
        %v1251 = vadd.f32 %v1200, %v1243
        %v1252 = vadd.f32 %v1203, %v1243
        %v1253 = vadd.f32 %v1208, %v1243
        %v1254 = vadd.f32 %v1211, %v1243
        %v1255 = vadd.f32 %v1216, %v1243
        %v1256 = vadd.f32 %v1219, %v1243
        %v1257 = vadd.f32 %v1224, %v1243
        %v1258 = vadd.f32 %v1227, %v1243
        %v1259 = vadd.f32 %v1232, %v1243
        %v1260 = vadd.f32 %v1235, %v1243
        %v1261 = vtanh.pop %v1245
        %v1262 = vtanh.pop %v1246
        %v1263 = vtanh.pop %v1247
        %v1264 = vtanh.pop %v1248
        %v1265 = vtanh.pop %v1249
        %v1266 = vtanh.pop %v1250
        %v1267 = vtanh.pop %v1251
        %v1268 = vtanh.pop %v1252
        %v1269 = vtanh.pop %v1253
        %v1270 = vtanh.pop %v1254
        %v1271 = vtanh.pop %v1255
        %v1272 = vtanh.pop %v1256
        %v1273 = vtanh.pop %v1257
        %v1274 = vtanh.pop %v1258
        %v1275 = vtanh.pop %v1259
        %v1276 = vtanh.pop %v1260
        %v1277 = vpack.c.bf16 %v1262, %v1261
        %v1278 = vpack.c.bf16 %v1264, %v1263
        %v1279 = vpack.c.bf16 %v1266, %v1265
        %v1280 = vpack.c.bf16 %v1268, %v1267
        %v1281 = vpack.c.bf16 %v1270, %v1269
        %v1282 = vpack.c.bf16 %v1272, %v1271
        %v1283 = vpack.c.bf16 %v1274, %v1273
        %v1284 = vpack.c.bf16 %v1276, %v1275
        %v1285 = vld [vmem:[%s8] sm:$0xf]
        %v1286 = vld [vmem:[%s8 + $0x4] sm:$0xf]
        %v1287 = vld [vmem:[%s8 + $0x8] sm:$0xf]
        %v1288 = vld [vmem:[%s8 + $0xc] sm:$0xf]
        %v1289 = vld [vmem:[%s8 + $0x10] sm:$0xf]
        %v1290 = vld [vmem:[%s8 + $0x14] sm:$0xf]
        %v1291 = vld [vmem:[%s8 + $0x18] sm:$0xf]
        %v1292 = vld [vmem:[%s8 + $0x1c] sm:$0xf]
        %v1293 = vld [vmem:[%s8 + $0x20] sm:$0xf]
        %v1294 = vld [vmem:[%s8 + $0x24] sm:$0xf]
        %v1295 = vld [vmem:[%s8 + $0x28] sm:$0xf]
        %v1296 = vld [vmem:[%s8 + $0x2c] sm:$0xf]
        %v1297 = vld [vmem:[%s8 + $0x30] sm:$0xf]
        %v1298 = vld [vmem:[%s8 + $0x34] sm:$0xf]
        %v1299 = vld [vmem:[%s8 + $0x38] sm:$0xf]
        %v1300 = vld [vmem:[%s8 + $0x3c] sm:$0xf]
        %v1301 = vld [vmem:[%s9] sm:$0x1]
        %v1303 = vlaneseq
        %v1304 = vshrl.u32 %v1303, 7
        %v1305 = vsub.s32 0, %v1304
        %v1306 = vrot.slane %v1301, %v1305
        %v1324 = vunpack.c.l.b16 %v1285
        %v1325 = vunpack.c.l.b16 %v1286
        %v1326 = vunpack.c.l.b16 %v1287
        %v1327 = vunpack.c.l.b16 %v1288
        %v1328 = vunpack.c.l.b16 %v1289
        %v1329 = vunpack.c.l.b16 %v1290
        %v1330 = vunpack.c.l.b16 %v1291
        %v1331 = vunpack.c.l.b16 %v1292
        %v1332 = vunpack.c.l.b16 %v1293
        %v1333 = vunpack.c.l.b16 %v1294
        %v1334 = vunpack.c.l.b16 %v1295
        %v1335 = vunpack.c.l.b16 %v1296
        %v1336 = vunpack.c.l.b16 %v1297
        %v1337 = vunpack.c.l.b16 %v1298
        %v1338 = vunpack.c.l.b16 %v1299
        %v1339 = vunpack.c.l.b16 %v1300
        %v1340 = vpack.c.b16 %v1325, %v1324
        %v1341 = vpack.c.b16 %v1327, %v1326
        %v1342 = vpack.c.b16 %v1329, %v1328
        %v1343 = vpack.c.b16 %v1331, %v1330
        %v1344 = vpack.c.b16 %v1333, %v1332
        %v1345 = vpack.c.b16 %v1335, %v1334
        %v1346 = vpack.c.b16 %v1337, %v1336
        %v1347 = vpack.c.b16 %v1339, %v1338
        %1356 = vmatprep.subr.bf16.mxu0 0
        %1357 = vmatpush1.bf16.msra.mxu0 %v1347
        %1358 = vmatprep.subr.bf16.mxu0 0
        %1359 = vmatpush1.bf16.msra.mxu0 %v1346
        %1360 = vmatprep.subr.bf16.mxu0 0
        %1361 = vmatpush1.bf16.msra.mxu0 %v1345
        %1362 = vmatprep.subr.bf16.mxu0 0
        %1363 = vmatpush1.bf16.msra.mxu0 %v1344
        %1364 = vmatprep.subr.bf16.mxu0 0
        %1365 = vmatpush1.bf16.msra.mxu0 %v1343
        %1366 = vmatprep.subr.bf16.mxu0 0
        %1367 = vmatpush1.bf16.msra.mxu0 %v1342
        %1368 = vmatprep.subr.bf16.mxu0 0
        %1369 = vmatpush1.bf16.msra.mxu0 %v1341
        %1370 = vmatprep.subr.bf16.mxu0 0
        %1371 = vmatpush1.bf16.msra.mxu0 %v1340
        %1372 = vmatprep.subr.bf16.mxu0 0
        %1373 = vmatpush2.bf16.msra.mxu0 0
        %1374 = vmatprep.subr.bf16.mxu0 0
        %1375 = vmatpush2.bf16.msra.mxu0 0
        %1376 = vmatprep.subr.bf16.mxu0 0
        %1377 = vmatpush2.bf16.msra.mxu0 0
        %1378 = vmatprep.subr.bf16.mxu0 0
        %1379 = vmatpush2.bf16.msra.mxu0 0
        %1380 = vmatprep.subr.bf16.mxu0 0
        %1381 = vmatpush2.bf16.msra.mxu0 0
        %1382 = vmatprep.subr.bf16.mxu0 0
        %1383 = vmatpush2.bf16.msra.mxu0 0
        %1384 = vmatprep.subr.bf16.mxu0 0
        %1385 = vmatpush2.bf16.msra.mxu0 0
        %1386 = vmatprep.subr.bf16.mxu0 0
        %1387 = vmatpush2.bf16.msra.mxu0 0
        %1388 = vmatprep.mubr.bf16.mxu0 0
        %1389 = vmatmul.mubr.bf16.gmra.mxu0 %v1277
        %v1390 = vpop.f32.mrf.mxu0
        %v1391 = vadd.f32 %v1306, %v1390
        %v1392 = vpop.f32.mrf.mxu0
        %v1393 = vpop.f32.mrf.mxu0
        %v1394 = vadd.f32 %v1306, %v1393
        %v1395 = vpop.f32.mrf.mxu0
        %1396 = vmatprep.mubr.bf16.mxu0 0
        %1397 = vmatmul.mubr.bf16.gmra.mxu0 %v1278
        %v1398 = vpop.f32.mrf.mxu0
        %v1399 = vadd.f32 %v1306, %v1398
        %v1400 = vpop.f32.mrf.mxu0
        %v1401 = vpop.f32.mrf.mxu0
        %v1402 = vadd.f32 %v1306, %v1401
        %v1403 = vpop.f32.mrf.mxu0
        %1404 = vmatprep.mubr.bf16.mxu0 0
        %1405 = vmatmul.mubr.bf16.gmra.mxu0 %v1279
        %v1406 = vpop.f32.mrf.mxu0
        %v1407 = vadd.f32 %v1306, %v1406
        %v1408 = vpop.f32.mrf.mxu0
        %v1409 = vpop.f32.mrf.mxu0
        %v1410 = vadd.f32 %v1306, %v1409
        %v1411 = vpop.f32.mrf.mxu0
        %1412 = vmatprep.mubr.bf16.mxu0 0
        %1413 = vmatmul.mubr.bf16.gmra.mxu0 %v1280
        %v1414 = vpop.f32.mrf.mxu0
        %v1415 = vadd.f32 %v1306, %v1414
        %v1416 = vpop.f32.mrf.mxu0
        %v1417 = vpop.f32.mrf.mxu0
        %v1418 = vadd.f32 %v1306, %v1417
        %v1419 = vpop.f32.mrf.mxu0
        %1420 = vmatprep.mubr.bf16.mxu0 0
        %1421 = vmatmul.mubr.bf16.gmra.mxu0 %v1281
        %v1422 = vpop.f32.mrf.mxu0
        %v1423 = vadd.f32 %v1306, %v1422
        %v1424 = vpop.f32.mrf.mxu0
        %v1425 = vpop.f32.mrf.mxu0
        %v1426 = vadd.f32 %v1306, %v1425
        %v1427 = vpop.f32.mrf.mxu0
        %1428 = vmatprep.mubr.bf16.mxu0 0
        %1429 = vmatmul.mubr.bf16.gmra.mxu0 %v1282
        %v1430 = vpop.f32.mrf.mxu0
        %v1431 = vadd.f32 %v1306, %v1430
        %v1432 = vpop.f32.mrf.mxu0
        %v1433 = vpop.f32.mrf.mxu0
        %v1434 = vadd.f32 %v1306, %v1433
        %v1435 = vpop.f32.mrf.mxu0
        %1436 = vmatprep.mubr.bf16.mxu0 0
        %1437 = vmatmul.mubr.bf16.gmra.mxu0 %v1283
        %v1438 = vpop.f32.mrf.mxu0
        %v1439 = vadd.f32 %v1306, %v1438
        %v1440 = vpop.f32.mrf.mxu0
        %v1441 = vpop.f32.mrf.mxu0
        %v1442 = vadd.f32 %v1306, %v1441
        %v1443 = vpop.f32.mrf.mxu0
        %1444 = vmatprep.mubr.bf16.mxu0 0
        %1445 = vmatmul.mubr.bf16.gmra.mxu0 %v1284
        %v1446 = vpop.f32.mrf.mxu0
        %v1447 = vadd.f32 %v1306, %v1446
        %v1448 = vpop.f32.mrf.mxu0
        %v1449 = vpop.f32.mrf.mxu0
        %v1450 = vadd.f32 %v1306, %v1449
        %v1451 = vpop.f32.mrf.mxu0
        %1452 = vdwg.mxu0
        %1453 = vst [vmem:[%s369] sm:$0xff] %v1391
        %1454 = vst [vmem:[%s369 + $0x8] sm:$0xff] %v1394
        %1455 = vst [vmem:[%s369 + $0x10] sm:$0xff] %v1399
        %1456 = vst [vmem:[%s369 + $0x18] sm:$0xff] %v1402
        %1457 = vst [vmem:[%s369 + $0x20] sm:$0xff] %v1407
        %1458 = vst [vmem:[%s369 + $0x28] sm:$0xff] %v1410
        %1459 = vst [vmem:[%s369 + $0x30] sm:$0xff] %v1415
        %1460 = vst [vmem:[%s369 + $0x38] sm:$0xff] %v1418
        %1461 = vst [vmem:[%s369 + $0x40] sm:$0xff] %v1423
        %1462 = vst [vmem:[%s369 + $0x48] sm:$0xff] %v1426
        %1463 = vst [vmem:[%s369 + $0x50] sm:$0xff] %v1431
        %1464 = vst [vmem:[%s369 + $0x58] sm:$0xff] %v1434
        %1465 = vst [vmem:[%s369 + $0x60] sm:$0xff] %v1439
        %1466 = vst [vmem:[%s369 + $0x68] sm:$0xff] %v1442
        %1467 = vst [vmem:[%s369 + $0x70] sm:$0xff] %v1447
        %1468 = vst [vmem:[%s369 + $0x78] sm:$0xff] %v1450
        %s1469 = sand.u32 %s252, 1
        %s1470 = scalar_lea.sflag [#allocation3], %s1469
        %s1471 = sand.u32 %s252, 1
        %s1472 = smul.addr %s1471, 128
        %s1473 = scalar_lea.vmem [#allocation2], %s1472
        // Predicated region
        $region61: #{tpu_custom_call.1} parent=59 // pred_check
          %p1474 = pneg %p262
        $region62: #{tpu_custom_call.1} parent=59 // pred_check_branch
          %1476 = sbr.rel (%p1474) target = $region64
        $region63: #{tpu_custom_call.1} parent=59 // pred_region
          %s1477 = smul.u32 16, %s24
          %s1479 = ssub.s32 2048, 2048
          %1480 = vsyncadd %s1470, %s1479
          %s1481 = smul.addr %s1477, 128
          %s1482 = scalar_lea.hbm %s10, %s1481
          %s1483 = sshll.u32 %s1473, 4
          %s1484 = int_to_ptr.vmem [resolvable:$true] %s1483
          %1489 = dma.vmem_to_hbm [thread:$0]  %s1484, 2048, %s1482, %s1470, 128, 128, 8
        $region64: #{tpu_custom_call.1} parent=59 // pred_fallthru
          _
      $region60: #{tpu_custom_call.1} parent=5 // pred_fallthru
        _
      %p1490 = scmp.le.s32.totalorder 2, %s19
      // Predicated region
      $region65: #{tpu_custom_call.1} parent=5 // pred_check
        %p1491 = pneg %p1490
      $region66: #{tpu_custom_call.1} parent=5 // pred_check_branch
        %1493 = sbr.rel (%p1491) target = $region68
      $region67: #{tpu_custom_call.1} parent=5 // pred_region
        %s1494 = ssub.s32 %s19, 2
        // Predicated region
        $region69: #{tpu_custom_call.1} parent=67 // pred_check
          %p1495 = pneg %p268
        $region70: #{tpu_custom_call.1} parent=67 // pred_check_branch
          %1497 = sbr.rel (%p1495) target = $region72
        $region71: #{tpu_custom_call.1} parent=67 // pred_region
          %s1498 = sand.u32 %s253, 1
          %s1499 = scalar_lea.sflag [#allocation3], %s1498
          %s1500 = sand.u32 %s253, 1
          %s1501 = smul.addr %s1500, 128
          %s1502 = scalar_lea.vmem [#allocation2], %s1501
          %1503 = dma.done %s1499, 2048
        $region72: #{tpu_custom_call.1} parent=67 // pred_fallthru
          _
      $region68: #{tpu_custom_call.1} parent=5 // pred_fallthru
        _
    $region6: #{tpu_custom_call.1} parent=1 // loop_footer
      %s23 = sadd.s32 1, %s19
    $region7: #{tpu_custom_call.1} parent=1 // loop_footer_branch
      %18 = sbr.rel target = $region3
    $region8: #{tpu_custom_call.1} parent=1 // loop_exit
      _
    %1504 = vsyncpa [#allocation3], 1
    %s1505 = scalar_lea.sflag [#allocation3], 1
    %1506 = vsyncpa %s1505, 1

// kernel: tpu_custom_call.1
$region0: #{tpu_custom_call.1}
  #allocation0 [shape = 'u32[]', space=smem, size = 0x4, offset = 0x4, fixed_abs, tag = 'smem constant byte address 0x4 - core index']
  #allocation1 [shape = 'u32[144,128]{1,0:T(1,128)}', space=vmem, size = 0x12000, scoped, tag = 'internal scratch']
  %s0 = inlined_call_operand.vmem [shape: f32[256,16], index: 0, kind: input, shape index: {}]
  %s1 = inlined_call_operand.vmem [shape: f32[256,8], index: 1, kind: input, shape index: {}]
  %s2 = inlined_call_operand.vmem [shape: bf16[8,8], index: 2, kind: input, shape index: {}]
  %s3 = inlined_call_operand.vmem [shape: bf16[16,8], index: 3, kind: input, shape index: {}]
  %s4 = inlined_call_operand.vmem [shape: f32[1,8], index: 4, kind: input, shape index: {}]
  %s5 = inlined_call_operand.vmem [shape: bf16[16,128], index: 5, kind: input, shape index: {}]
  %s6 = inlined_call_operand.vmem [shape: bf16[8,128], index: 6, kind: input, shape index: {}]
  %s7 = inlined_call_operand.vmem [shape: f32[1,128], index: 7, kind: input, shape index: {}]
  %s8 = inlined_call_operand.vmem [shape: bf16[128,128], index: 8, kind: input, shape index: {}]
  %s9 = inlined_call_operand.vmem [shape: f32[1,128], index: 9, kind: input, shape index: {}]
  %s10 = inlined_call_operand.hbm [shape: f32[256,128], index: 10, kind: output, shape index: {}]
  %s11 = sld [smem:[#allocation0]]
  $region73: #{tpu_custom_call.1} parent=0
    _
  %s13 = ssub.s32 1, %s11
  %s14 = scalar_select 0, %s13, %s11
  $region1: #{tpu_custom_call.1} parent=0
    #allocation2 [shape = 'u8[131072]{0}', space=vmem, size = 0x20000, scoped, tag = 'output window, operand 0']
    #allocation3 [shape = 's32[2]{0}', space=sflag, size = 0x8, scoped, tag = 'scoped memory for tpu_custom_call.1']
    %15 = vsyncpa [#allocation3], 0
    %s16 = scalar_lea.sflag [#allocation3], 1
    %17 = vsyncpa %s16, 0
    loop: start=0, step=1, limit=4
    $region2: #{tpu_custom_call.1} parent=1 // loop_pre_header
      _
    $region3: #{tpu_custom_call.1} parent=1 // loop_header
      %s19 = sphi 0, %s23
      %p20 = scmp.ge.s32.totalorder %s19, 4
      %s29 = sphi 0, %s31
      %s32 = sphi 0, %s29
      %s33 = sphi 0, %s32
      %s49 = sphi 0, %s33
      %s55 = sphi 0, %s57
      %s58 = sphi 0, %s55
      %s59 = sphi 0, %s58
      %s75 = sphi 0, %s59
      %s79 = sphi 0, %s79
      %s81 = sphi 0, %s79
      %s82 = sphi 0, %s81
      %s96 = sphi 0, %s82
      %s100 = sphi 0, %s100
      %s102 = sphi 0, %s100
      %s103 = sphi 0, %s102
      %s117 = sphi 0, %s103
      %s121 = sphi 0, %s121
      %s123 = sphi 0, %s121
      %s124 = sphi 0, %s123
      %s138 = sphi 0, %s124
      %s142 = sphi 0, %s142
      %s144 = sphi 0, %s142
      %s145 = sphi 0, %s144
      %s159 = sphi 0, %s145
      %s163 = sphi 0, %s163
      %s165 = sphi 0, %s163
      %s166 = sphi 0, %s165
      %s180 = sphi 0, %s166
      %s184 = sphi 0, %s184
      %s186 = sphi 0, %s184
      %s187 = sphi 0, %s186
      %s201 = sphi 0, %s187
      %s205 = sphi 0, %s205
      %s207 = sphi 0, %s205
      %s208 = sphi 0, %s207
      %s222 = sphi 0, %s208
      %s226 = sphi 0, %s226
      %s228 = sphi 0, %s226
      %s229 = sphi 0, %s228
      %s243 = sphi 0, %s229
      %s249 = sphi 0, %s251
      %s252 = sphi 0, %s249
      %s253 = sphi 0, %s252
      %s269 = sphi 0, %s253
    $region4: #{tpu_custom_call.1} parent=1 // loop_header_branch
      %22 = sbr.rel (%p20) target = $region8
    $region5: #{tpu_custom_call.1} parent=1 // loop_body
      %s24 = ssub.s32 %s19, 1
      %s25 = ssub.s32 %s19, 2
      %s26 = sadd.s32 %s19, 1
      %s27 = ssub.s32 %s19, %s26
      %p28 = scmp.eq.s32.totalorder %s27, 0
      %s30 = sadd.s32 %s29, 1
      %s31 = scalar_select %p28, %s29, %s30
      %p34 = pneg %p28
      %p35 = scmp.eq.s32.totalorder %s19, 1
      %p36 = por %p34, %p35
      %p37 = scmp.ne.s32.totalorder %s29, %s32
      %p38 = scmp.eq.s32.totalorder %s19, 0
      %p39 = por %p37, %p38
      %p40 = scmp.ne.s32.totalorder %s29, %s32
      %p41 = scmp.eq.s32.totalorder %s24, 1
      %p42 = por %p40, %p41
      %p43 = scmp.ne.s32.totalorder %s32, %s33
      %p44 = scmp.eq.s32.totalorder %s24, 0
      %p45 = por %p43, %p44
      %p46 = scmp.ne.s32.totalorder %s32, %s33
      %p47 = scmp.eq.s32.totalorder %s25, 1
      %p48 = por %p46, %p47
      %p50 = scmp.ne.s32.totalorder %s33, %s49
      %p51 = scmp.eq.s32.totalorder %s25, 0
      %p52 = por %p50, %p51
      %s53 = ssub.s32 %s19, %s26
      %p54 = scmp.eq.s32.totalorder %s53, 0
      %s56 = sadd.s32 %s55, 1
      %s57 = scalar_select %p54, %s55, %s56
      %p60 = pneg %p54
      %p61 = scmp.eq.s32.totalorder %s19, 1
      %p62 = por %p60, %p61
      %p63 = scmp.ne.s32.totalorder %s55, %s58
      %p64 = scmp.eq.s32.totalorder %s19, 0
      %p65 = por %p63, %p64
      %p66 = scmp.ne.s32.totalorder %s55, %s58
      %p67 = scmp.eq.s32.totalorder %s24, 1
      %p68 = por %p66, %p67
      %p69 = scmp.ne.s32.totalorder %s58, %s59
      %p70 = scmp.eq.s32.totalorder %s24, 0
      %p71 = por %p69, %p70
      %p72 = scmp.ne.s32.totalorder %s58, %s59
      %p73 = scmp.eq.s32.totalorder %s25, 1
      %p74 = por %p72, %p73
      %p76 = scmp.ne.s32.totalorder %s59, %s75
      %p77 = scmp.eq.s32.totalorder %s25, 0
      %p78 = por %p76, %p77
      %s80 = sadd.s32 %s79, 1
      %p83 = scmp.eq.s32.totalorder %s19, 1
      %p84 = scmp.ne.s32.totalorder %s79, %s81
      %p85 = scmp.eq.s32.totalorder %s19, 0
      %p86 = por %p84, %p85
      %p87 = scmp.ne.s32.totalorder %s79, %s81
      %p88 = scmp.eq.s32.totalorder %s24, 1
      %p89 = por %p87, %p88
      %p90 = scmp.ne.s32.totalorder %s81, %s82
      %p91 = scmp.eq.s32.totalorder %s24, 0
      %p92 = por %p90, %p91
      %p93 = scmp.ne.s32.totalorder %s81, %s82
      %p94 = scmp.eq.s32.totalorder %s25, 1
      %p95 = por %p93, %p94
      %p97 = scmp.ne.s32.totalorder %s82, %s96
      %p98 = scmp.eq.s32.totalorder %s25, 0
      %p99 = por %p97, %p98
      %s101 = sadd.s32 %s100, 1
      %p104 = scmp.eq.s32.totalorder %s19, 1
      %p105 = scmp.ne.s32.totalorder %s100, %s102
      %p106 = scmp.eq.s32.totalorder %s19, 0
      %p107 = por %p105, %p106
      %p108 = scmp.ne.s32.totalorder %s100, %s102
      %p109 = scmp.eq.s32.totalorder %s24, 1
      %p110 = por %p108, %p109
      %p111 = scmp.ne.s32.totalorder %s102, %s103
      %p112 = scmp.eq.s32.totalorder %s24, 0
      %p113 = por %p111, %p112
      %p114 = scmp.ne.s32.totalorder %s102, %s103
      %p115 = scmp.eq.s32.totalorder %s25, 1
      %p116 = por %p114, %p115
      %p118 = scmp.ne.s32.totalorder %s103, %s117
      %p119 = scmp.eq.s32.totalorder %s25, 0
      %p120 = por %p118, %p119
      %s122 = sadd.s32 %s121, 1
      %p125 = scmp.eq.s32.totalorder %s19, 1
      %p126 = scmp.ne.s32.totalorder %s121, %s123
      %p127 = scmp.eq.s32.totalorder %s19, 0
      %p128 = por %p126, %p127
      %p129 = scmp.ne.s32.totalorder %s121, %s123
      %p130 = scmp.eq.s32.totalorder %s24, 1
      %p131 = por %p129, %p130
      %p132 = scmp.ne.s32.totalorder %s123, %s124
      %p133 = scmp.eq.s32.totalorder %s24, 0
      %p134 = por %p132, %p133
      %p135 = scmp.ne.s32.totalorder %s123, %s124
      %p136 = scmp.eq.s32.totalorder %s25, 1
      %p137 = por %p135, %p136
      %p139 = scmp.ne.s32.totalorder %s124, %s138
      %p140 = scmp.eq.s32.totalorder %s25, 0
      %p141 = por %p139, %p140
      %s143 = sadd.s32 %s142, 1
      %p146 = scmp.eq.s32.totalorder %s19, 1
      %p147 = scmp.ne.s32.totalorder %s142, %s144
      %p148 = scmp.eq.s32.totalorder %s19, 0
      %p149 = por %p147, %p148
      %p150 = scmp.ne.s32.totalorder %s142, %s144
      %p151 = scmp.eq.s32.totalorder %s24, 1
      %p152 = por %p150, %p151
      %p153 = scmp.ne.s32.totalorder %s144, %s145
      %p154 = scmp.eq.s32.totalorder %s24, 0
      %p155 = por %p153, %p154
      %p156 = scmp.ne.s32.totalorder %s144, %s145
      %p157 = scmp.eq.s32.totalorder %s25, 1
      %p158 = por %p156, %p157
      %p160 = scmp.ne.s32.totalorder %s145, %s159
      %p161 = scmp.eq.s32.totalorder %s25, 0
      %p162 = por %p160, %p161
      %s164 = sadd.s32 %s163, 1
      %p167 = scmp.eq.s32.totalorder %s19, 1
      %p168 = scmp.ne.s32.totalorder %s163, %s165
      %p169 = scmp.eq.s32.totalorder %s19, 0
      %p170 = por %p168, %p169
      %p171 = scmp.ne.s32.totalorder %s163, %s165
      %p172 = scmp.eq.s32.totalorder %s24, 1
      %p173 = por %p171, %p172
      %p174 = scmp.ne.s32.totalorder %s165, %s166
      %p175 = scmp.eq.s32.totalorder %s24, 0
      %p176 = por %p174, %p175
      %p177 = scmp.ne.s32.totalorder %s165, %s166
      %p178 = scmp.eq.s32.totalorder %s25, 1
      %p179 = por %p177, %p178
      %p181 = scmp.ne.s32.totalorder %s166, %s180
      %p182 = scmp.eq.s32.totalorder %s25, 0
      %p183 = por %p181, %p182
      %s185 = sadd.s32 %s184, 1
      %p188 = scmp.eq.s32.totalorder %s19, 1
      %p189 = scmp.ne.s32.totalorder %s184, %s186
      %p190 = scmp.eq.s32.totalorder %s19, 0
      %p191 = por %p189, %p190
      %p192 = scmp.ne.s32.totalorder %s184, %s186
      %p193 = scmp.eq.s32.totalorder %s24, 1
      %p194 = por %p192, %p193
      %p195 = scmp.ne.s32.totalorder %s186, %s187
      %p196 = scmp.eq.s32.totalorder %s24, 0
      %p197 = por %p195, %p196
      %p198 = scmp.ne.s32.totalorder %s186, %s187
      %p199 = scmp.eq.s32.totalorder %s25, 1
      %p200 = por %p198, %p199
      %p202 = scmp.ne.s32.totalorder %s187, %s201
      %p203 = scmp.eq.s32.totalorder %s25, 0
      %p204 = por %p202, %p203
      %s206 = sadd.s32 %s205, 1
      %p209 = scmp.eq.s32.totalorder %s19, 1
      %p210 = scmp.ne.s32.totalorder %s205, %s207
      %p211 = scmp.eq.s32.totalorder %s19, 0
      %p212 = por %p210, %p211
      %p213 = scmp.ne.s32.totalorder %s205, %s207
      %p214 = scmp.eq.s32.totalorder %s24, 1
      %p215 = por %p213, %p214
      %p216 = scmp.ne.s32.totalorder %s207, %s208
      %p217 = scmp.eq.s32.totalorder %s24, 0
      %p218 = por %p216, %p217
      %p219 = scmp.ne.s32.totalorder %s207, %s208
      %p220 = scmp.eq.s32.totalorder %s25, 1
      %p221 = por %p219, %p220
      %p223 = scmp.ne.s32.totalorder %s208, %s222
      %p224 = scmp.eq.s32.totalorder %s25, 0
      %p225 = por %p223, %p224
      %s227 = sadd.s32 %s226, 1
      %p230 = scmp.eq.s32.totalorder %s19, 1
      %p231 = scmp.ne.s32.totalorder %s226, %s228
      %p232 = scmp.eq.s32.totalorder %s19, 0
      %p233 = por %p231, %p232
      %p234 = scmp.ne.s32.totalorder %s226, %s228
      %p235 = scmp.eq.s32.totalorder %s24, 1
      %p236 = por %p234, %p235
      %p237 = scmp.ne.s32.totalorder %s228, %s229
      %p238 = scmp.eq.s32.totalorder %s24, 0
      %p239 = por %p237, %p238
      %p240 = scmp.ne.s32.totalorder %s228, %s229
      %p241 = scmp.eq.s32.totalorder %s25, 1
      %p242 = por %p240, %p241
      %p244 = scmp.ne.s32.totalorder %s229, %s243
      %p245 = scmp.eq.s32.totalorder %s25, 0
      %p246 = por %p244, %p245
      %s247 = ssub.s32 %s19, %s26
      %p248 = scmp.eq.s32.totalorder %s247, 0
      %s250 = sadd.s32 %s249, 1
      %s251 = scalar_select %p248, %s249, %s250
      %p254 = pneg %p248
      %p255 = scmp.eq.s32.totalorder %s19, 1
      %p256 = por %p254, %p255
      %p257 = scmp.ne.s32.totalorder %s249, %s252
      %p258 = scmp.eq.s32.totalorder %s19, 0
      %p259 = por %p257, %p258
      %p260 = scmp.ne.s32.totalorder %s249, %s252
      %p261 = scmp.eq.s32.totalorder %s24, 1
      %p262 = por %p260, %p261
      %p263 = scmp.ne.s32.totalorder %s252, %s253
      %p264 = scmp.eq.s32.totalorder %s24, 0
      %p265 = por %p263, %p264
      %p266 = scmp.ne.s32.totalorder %s252, %s253
      %p267 = scmp.eq.s32.totalorder %s25, 1
      %p268 = por %p266, %p267
      %p270 = scmp.ne.s32.totalorder %s253, %s269
      %p271 = scmp.eq.s32.totalorder %s25, 0
      %p272 = por %p270, %p271
      %p273 = scmp.le.s32.totalorder 1, %s19
      %p274 = scmp.lt.s32.totalorder %s19, 3
      %p275 = pnand %p273, %p274
      %p276 = pneg %p275
      // Predicated region
      $region9: #{tpu_custom_call.1} parent=5 // pred_check
        _
      $region10: #{tpu_custom_call.1} parent=5 // pred_check_branch
        %278 = sbr.rel (%p275) target = $region12
      $region11: #{tpu_custom_call.1} parent=5 // pred_region
        %s279 = ssub.s32 %s19, 1
        // Predicated region
        $region13: #{tpu_custom_call.1} parent=11 // pred_check
          %p280 = pneg %p92
        $region14: #{tpu_custom_call.1} parent=11 // pred_check_branch
          %282 = sbr.rel (%p280) target = $region16
        $region15: #{tpu_custom_call.1} parent=11 // pred_region
          _
        $region16: #{tpu_custom_call.1} parent=11 // pred_fallthru
          _
        // Predicated region
        $region17: #{tpu_custom_call.1} parent=11 // pred_check
          %p283 = pneg %p113
        $region18: #{tpu_custom_call.1} parent=11 // pred_check_branch
          %285 = sbr.rel (%p283) target = $region20
        $region19: #{tpu_custom_call.1} parent=11 // pred_region
          _
        $region20: #{tpu_custom_call.1} parent=11 // pred_fallthru
          _
        // Predicated region
        $region21: #{tpu_custom_call.1} parent=11 // pred_check
          %p286 = pneg %p134
        $region22: #{tpu_custom_call.1} parent=11 // pred_check_branch
          %288 = sbr.rel (%p286) target = $region24
        $region23: #{tpu_custom_call.1} parent=11 // pred_region
          _
        $region24: #{tpu_custom_call.1} parent=11 // pred_fallthru
          _
        // Predicated region
        $region25: #{tpu_custom_call.1} parent=11 // pred_check
          %p289 = pneg %p155
        $region26: #{tpu_custom_call.1} parent=11 // pred_check_branch
          %291 = sbr.rel (%p289) target = $region28
        $region27: #{tpu_custom_call.1} parent=11 // pred_region
          _
        $region28: #{tpu_custom_call.1} parent=11 // pred_fallthru
          _
        // Predicated region
        $region29: #{tpu_custom_call.1} parent=11 // pred_check
          %p292 = pneg %p176
        $region30: #{tpu_custom_call.1} parent=11 // pred_check_branch
          %294 = sbr.rel (%p292) target = $region32
        $region31: #{tpu_custom_call.1} parent=11 // pred_region
          _
        $region32: #{tpu_custom_call.1} parent=11 // pred_fallthru
          _
        // Predicated region
        $region33: #{tpu_custom_call.1} parent=11 // pred_check
          %p295 = pneg %p197
        $region34: #{tpu_custom_call.1} parent=11 // pred_check_branch
          %297 = sbr.rel (%p295) target = $region36
        $region35: #{tpu_custom_call.1} parent=11 // pred_region
          _
        $region36: #{tpu_custom_call.1} parent=11 // pred_fallthru
          _
        // Predicated region
        $region37: #{tpu_custom_call.1} parent=11 // pred_check
          %p298 = pneg %p218
        $region38: #{tpu_custom_call.1} parent=11 // pred_check_branch
          %300 = sbr.rel (%p298) target = $region40
        $region39: #{tpu_custom_call.1} parent=11 // pred_region
          _
        $region40: #{tpu_custom_call.1} parent=11 // pred_fallthru
          _
        // Predicated region
        $region41: #{tpu_custom_call.1} parent=11 // pred_check
          %p301 = pneg %p239
        $region42: #{tpu_custom_call.1} parent=11 // pred_check_branch
          %303 = sbr.rel (%p301) target = $region44
        $region43: #{tpu_custom_call.1} parent=11 // pred_region
          _
        $region44: #{tpu_custom_call.1} parent=11 // pred_fallthru
          _
      $region12: #{tpu_custom_call.1} parent=5 // pred_fallthru
        _
      %p304 = scmp.lt.s32.totalorder %s19, 2
      // Predicated region
      $region45: #{tpu_custom_call.1} parent=5 // pred_check
        %p305 = pneg %p304
      $region46: #{tpu_custom_call.1} parent=5 // pred_check_branch
        %307 = sbr.rel (%p305) target = $region48
      $region47: #{tpu_custom_call.1} parent=5 // pred_region
        // Predicated region
        $region49: #{tpu_custom_call.1} parent=47 // pred_check
          %p308 = pneg %p39
        $region50: #{tpu_custom_call.1} parent=47 // pred_check_branch
          %310 = sbr.rel (%p308) target = $region52
        $region51: #{tpu_custom_call.1} parent=47 // pred_region
          %s311 = smul.u32 16, %s19
          %p312 = scmp.lt.s32.totalorder %s311, 31
          %s313 = scalar_select %p312, %s311, 31
          %s314 = smul.addr %s313, 8
          %s315 = scalar_lea.vmem %s0, %s314
          %s316 = smul.u32 16, %s19
        $region52: #{tpu_custom_call.1} parent=47 // pred_fallthru
          _
        // Predicated region
        $region53: #{tpu_custom_call.1} parent=47 // pred_check
          %p317 = pneg %p65
        $region54: #{tpu_custom_call.1} parent=47 // pred_check_branch
          %319 = sbr.rel (%p317) target = $region56
        $region55: #{tpu_custom_call.1} parent=47 // pred_region
          %s320 = smul.u32 16, %s19
          %p321 = scmp.lt.s32.totalorder %s320, 31
          %s322 = scalar_select %p321, %s320, 31
          %s323 = smul.addr %s322, 8
          %s324 = scalar_lea.vmem %s1, %s323
          %s325 = smul.u32 16, %s19
        $region56: #{tpu_custom_call.1} parent=47 // pred_fallthru
          _
      $region48: #{tpu_custom_call.1} parent=5 // pred_fallthru
        _
      %p326 = scmp.le.s32.totalorder 1, %s19
      %p327 = scmp.lt.s32.totalorder %s19, 3
      %p328 = pnand %p326, %p327
      %p329 = pneg %p328
      // Predicated region
      $region57: #{tpu_custom_call.1} parent=5 // pred_check
        _
      $region58: #{tpu_custom_call.1} parent=5 // pred_check_branch
        %331 = sbr.rel (%p328) target = $region60
      $region59: #{tpu_custom_call.1} parent=5 // pred_region
        %s332 = ssub.s32 %s19, 1
        %s333 = smul.u32 16, %s24
        %p334 = scmp.lt.s32.totalorder %s333, 31
        %s335 = scalar_select %p334, %s333, 31
        %s336 = smul.addr %s335, 8
        %s337 = scalar_lea.vmem %s0, %s336
        %p338 = pneg %p45
        %p339 = pneg %p42
        %s340 = smul.u32 16, %s24
        %p341 = scmp.lt.s32.totalorder %s340, 31
        %s342 = scalar_select %p341, %s340, 31
        %s343 = smul.addr %s342, 8
        %s344 = scalar_lea.vmem %s1, %s343
        %p345 = pneg %p71
        %p346 = pneg %p68
        %p347 = pneg %p92
        %p348 = pneg %p89
        %p349 = pneg %p113
        %p350 = pneg %p110
        %p351 = pneg %p134
        %p352 = pneg %p131
        %p353 = pneg %p155
        %p354 = pneg %p152
        %p355 = pneg %p176
        %p356 = pneg %p173
        %p357 = pneg %p197
        %p358 = pneg %p194
        %p359 = pneg %p218
        %p360 = pneg %p215
        %p361 = pneg %p239
        %p362 = pneg %p236
        %p363 = pneg %p265
        %p364 = pneg %p262
        %s365 = sand.u32 %s252, 1
        %s366 = scalar_lea.sflag [#allocation3], %s365
        %s367 = sand.u32 %s252, 1
        %s368 = smul.addr %s367, 128
        %s369 = scalar_lea.vmem [#allocation2], %s368
        %s370 = smul.u32 16, %s24
        %p371 = scmp.lt.s32.totalorder %s370, 31
        %s372 = scalar_select %p371, %s370, 31
        %s373 = smul.addr %s372, 8
        %s374 = scalar_lea.vmem %s0, %s373
        %s375 = smul.u32 16, %s24
        %s376 = smul.u32 16, %s24
        %p377 = scmp.lt.s32.totalorder %s376, 31
        %s378 = scalar_select %p377, %s376, 31
        %s379 = smul.addr %s378, 8
        %s380 = scalar_lea.vmem %s1, %s379
        %s381 = smul.u32 16, %s24
        %s382 = smul.u32 16, %s24
        %v384 = vld [vmem:[%s374] sm:$0xff]
        %v385 = vld [vmem:[%s374 + $0x8] sm:$0xff]
        %v386 = vld [vmem:[%s374 + $0x10] sm:$0xff]
        %v387 = vld [vmem:[%s374 + $0x18] sm:$0xff]
        %v388 = vld [vmem:[%s374 + $0x20] sm:$0xff]
        %v389 = vld [vmem:[%s374 + $0x28] sm:$0xff]
        %v390 = vld [vmem:[%s374 + $0x30] sm:$0xff]
        %v391 = vld [vmem:[%s374 + $0x38] sm:$0xff]
        %v392 = vld [vmem:[%s374 + $0x40] sm:$0xff]
        %v393 = vld [vmem:[%s374 + $0x48] sm:$0xff]
        %v394 = vld [vmem:[%s374 + $0x50] sm:$0xff]
        %v395 = vld [vmem:[%s374 + $0x58] sm:$0xff]
        %v396 = vld [vmem:[%s374 + $0x60] sm:$0xff]
        %v397 = vld [vmem:[%s374 + $0x68] sm:$0xff]
        %v398 = vld [vmem:[%s374 + $0x70] sm:$0xff]
        %v399 = vld [vmem:[%s374 + $0x78] sm:$0xff]
        %v400 = vld [vmem:[%s380] sm:$0xff]
        %v401 = vld [vmem:[%s380 + $0x8] sm:$0xff]
        %v402 = vld [vmem:[%s380 + $0x10] sm:$0xff]
        %v403 = vld [vmem:[%s380 + $0x18] sm:$0xff]
        %v404 = vld [vmem:[%s380 + $0x20] sm:$0xff]
        %v405 = vld [vmem:[%s380 + $0x28] sm:$0xff]
        %v406 = vld [vmem:[%s380 + $0x30] sm:$0xff]
        %v407 = vld [vmem:[%s380 + $0x38] sm:$0xff]
        %v408 = vld [vmem:[%s380 + $0x40] sm:$0xff]
        %v409 = vld [vmem:[%s380 + $0x48] sm:$0xff]
        %v410 = vld [vmem:[%s380 + $0x50] sm:$0xff]
        %v411 = vld [vmem:[%s380 + $0x58] sm:$0xff]
        %v412 = vld [vmem:[%s380 + $0x60] sm:$0xff]
        %v413 = vld [vmem:[%s380 + $0x68] sm:$0xff]
        %v414 = vld [vmem:[%s380 + $0x70] sm:$0xff]
        %v415 = vld [vmem:[%s380 + $0x78] sm:$0xff]
        %v416 = vpack.c.bf16 %v385, %v384
        %v417 = vpack.c.bf16 %v387, %v386
        %v418 = vpack.c.bf16 %v389, %v388
        %v419 = vpack.c.bf16 %v391, %v390
        %v420 = vpack.c.bf16 %v393, %v392
        %v421 = vpack.c.bf16 %v395, %v394
        %v422 = vpack.c.bf16 %v397, %v396
        %v423 = vpack.c.bf16 %v399, %v398
        %v424 = vpack.c.bf16 %v401, %v400
        %v425 = vpack.c.bf16 %v403, %v402
        %v426 = vpack.c.bf16 %v405, %v404
        %v427 = vpack.c.bf16 %v407, %v406
        %v428 = vpack.c.bf16 %v409, %v408
        %v429 = vpack.c.bf16 %v411, %v410
        %v430 = vpack.c.bf16 %v413, %v412
        %v431 = vpack.c.bf16 %v415, %v414
        %v432 = vld [vmem:[%s2] sm:$0xf]
        %v433 = vld [vmem:[%s3] sm:$0xf]
        %v434 = vld [vmem:[%s3 + $0x4] sm:$0xf]
        %v437 = vunpack.c.l.b16 %v433
        %v438 = vunpack.c.l.b16 %v434
        %v439 = vpack.c.b16 %v438, %v437
        %vm441 = vcmask 130048
        %v443 = vsel %vm441, %v416, 0
        %v446 = vsel %vm441, %v417, 0
        %v449 = vsel %vm441, %v418, 0
        %v452 = vsel %vm441, %v419, 0
        %v455 = vsel %vm441, %v420, 0
        %v458 = vsel %vm441, %v421, 0
        %v461 = vsel %vm441, %v422, 0
        %v464 = vsel %vm441, %v423, 0
        %466 = vmatprep.subr.bf16.mxu0 0
        %467 = vmatpush1.bf16.msra.mxu0 0
        %468 = vmatprep.subr.bf16.mxu0 0
        %469 = vmatpush1.bf16.msra.mxu0 0
        %470 = vmatprep.subr.bf16.mxu0 0
        %471 = vmatpush1.bf16.msra.mxu0 0
        %472 = vmatprep.subr.bf16.mxu0 0
        %473 = vmatpush1.bf16.msra.mxu0 0
        %474 = vmatprep.subr.bf16.mxu0 0
        %475 = vmatpush1.bf16.msra.mxu0 0
        %476 = vmatprep.subr.bf16.mxu0 0
        %477 = vmatpush1.bf16.msra.mxu0 0
        %478 = vmatprep.subr.bf16.mxu0 0
        %479 = vmatpush1.bf16.msra.mxu0 0
        %480 = vmatprep.subr.bf16.mxu0 0
        %481 = vmatpush1.bf16.msra.mxu0 %v439
        %482 = vmatprep.subr.bf16.mxu0 0
        %483 = vmatpush2.bf16.msra.mxu0 0
        %484 = vmatprep.subr.bf16.mxu0 0
        %485 = vmatpush2.bf16.msra.mxu0 0
        %486 = vmatprep.subr.bf16.mxu0 0
        %487 = vmatpush2.bf16.msra.mxu0 0
        %488 = vmatprep.subr.bf16.mxu0 0
        %489 = vmatpush2.bf16.msra.mxu0 0
        %490 = vmatprep.subr.bf16.mxu0 0
        %491 = vmatpush2.bf16.msra.mxu0 0
        %492 = vmatprep.subr.bf16.mxu0 0
        %493 = vmatpush2.bf16.msra.mxu0 0
        %494 = vmatprep.subr.bf16.mxu0 0
        %495 = vmatpush2.bf16.msra.mxu0 0
        %496 = vmatprep.subr.bf16.mxu0 0
        %497 = vmatpush2.bf16.msra.mxu0 0
        %498 = vmatprep.mubr.bf16.mxu0 0
        %499 = vmatmul.mubr.bf16.gmra.mxu0 %v443
        %v500 = vpop.f32.mrf.mxu0
        %v501 = vadd.f32 0.0, %v500
        %v502 = vpop.f32.mrf.mxu0
        %v503 = vpop.f32.mrf.mxu0
        %v504 = vadd.f32 0.0, %v503
        %v505 = vpop.f32.mrf.mxu0
        %506 = vmatprep.mubr.bf16.mxu0 0
        %507 = vmatmul.mubr.bf16.gmra.mxu0 %v446
        %v508 = vpop.f32.mrf.mxu0
        %v509 = vadd.f32 0.0, %v508
        %v510 = vpop.f32.mrf.mxu0
        %v511 = vpop.f32.mrf.mxu0
        %v512 = vadd.f32 0.0, %v511
        %v513 = vpop.f32.mrf.mxu0
        %514 = vmatprep.mubr.bf16.mxu0 0
        %515 = vmatmul.mubr.bf16.gmra.mxu0 %v449
        %v516 = vpop.f32.mrf.mxu0
        %v517 = vadd.f32 0.0, %v516
        %v518 = vpop.f32.mrf.mxu0
        %v519 = vpop.f32.mrf.mxu0
        %v520 = vadd.f32 0.0, %v519
        %v521 = vpop.f32.mrf.mxu0
        %522 = vmatprep.mubr.bf16.mxu0 0
        %523 = vmatmul.mubr.bf16.gmra.mxu0 %v452
        %v524 = vpop.f32.mrf.mxu0
        %v525 = vadd.f32 0.0, %v524
        %v526 = vpop.f32.mrf.mxu0
        %v527 = vpop.f32.mrf.mxu0
        %v528 = vadd.f32 0.0, %v527
        %v529 = vpop.f32.mrf.mxu0
        %530 = vmatprep.mubr.bf16.mxu0 0
        %531 = vmatmul.mubr.bf16.gmra.mxu0 %v455
        %v532 = vpop.f32.mrf.mxu0
        %v533 = vadd.f32 0.0, %v532
        %v534 = vpop.f32.mrf.mxu0
        %v535 = vpop.f32.mrf.mxu0
        %v536 = vadd.f32 0.0, %v535
        %v537 = vpop.f32.mrf.mxu0
        %538 = vmatprep.mubr.bf16.mxu0 0
        %539 = vmatmul.mubr.bf16.gmra.mxu0 %v458
        %v540 = vpop.f32.mrf.mxu0
        %v541 = vadd.f32 0.0, %v540
        %v542 = vpop.f32.mrf.mxu0
        %v543 = vpop.f32.mrf.mxu0
        %v544 = vadd.f32 0.0, %v543
        %v545 = vpop.f32.mrf.mxu0
        %546 = vmatprep.mubr.bf16.mxu0 0
        %547 = vmatmul.mubr.bf16.gmra.mxu0 %v461
        %v548 = vpop.f32.mrf.mxu0
        %v549 = vadd.f32 0.0, %v548
        %v550 = vpop.f32.mrf.mxu0
        %v551 = vpop.f32.mrf.mxu0
        %v552 = vadd.f32 0.0, %v551
        %v553 = vpop.f32.mrf.mxu0
        %554 = vmatprep.mubr.bf16.mxu0 0
        %555 = vmatmul.mubr.bf16.gmra.mxu0 %v464
        %v556 = vpop.f32.mrf.mxu0
        %v557 = vadd.f32 0.0, %v556
        %v558 = vpop.f32.mrf.mxu0
        %v559 = vpop.f32.mrf.mxu0
        %v560 = vadd.f32 0.0, %v559
        %v561 = vpop.f32.mrf.mxu0
        %562 = vdwg.mxu0
        %vm563 = vcmask 64512
        %v565 = vsel %vm563, %v424, 0
        %v568 = vsel %vm563, %v425, 0
        %v571 = vsel %vm563, %v426, 0
        %v574 = vsel %vm563, %v427, 0
        %v577 = vsel %vm563, %v428, 0
        %v580 = vsel %vm563, %v429, 0
        %v583 = vsel %vm563, %v430, 0
        %v586 = vsel %vm563, %v431, 0
        %vm588 = vcmask 1043456
        %v590 = vsel %vm588, %v432, 0
        %592 = vmatprep.subr.bf16.mxu0 0
        %593 = vmatpush1.bf16.msra.mxu0 0
        %594 = vmatprep.subr.bf16.mxu0 0
        %595 = vmatpush1.bf16.msra.mxu0 0
        %596 = vmatprep.subr.bf16.mxu0 0
        %597 = vmatpush1.bf16.msra.mxu0 0
        %598 = vmatprep.subr.bf16.mxu0 0
        %599 = vmatpush1.bf16.msra.mxu0 0
        %600 = vmatprep.subr.bf16.mxu0 0
        %601 = vmatpush1.bf16.msra.mxu0 0
        %602 = vmatprep.subr.bf16.mxu0 0
        %603 = vmatpush1.bf16.msra.mxu0 0
        %604 = vmatprep.subr.bf16.mxu0 0
        %605 = vmatpush1.bf16.msra.mxu0 0
        %606 = vmatprep.subr.bf16.mxu0 0
        %607 = vmatpush1.bf16.msra.mxu0 %v590
        %608 = vmatprep.subr.bf16.mxu0 0
        %609 = vmatpush2.bf16.msra.mxu0 0
        %610 = vmatprep.subr.bf16.mxu0 0
        %611 = vmatpush2.bf16.msra.mxu0 0
        %612 = vmatprep.subr.bf16.mxu0 0
        %613 = vmatpush2.bf16.msra.mxu0 0
        %614 = vmatprep.subr.bf16.mxu0 0
        %615 = vmatpush2.bf16.msra.mxu0 0
        %616 = vmatprep.subr.bf16.mxu0 0
        %617 = vmatpush2.bf16.msra.mxu0 0
        %618 = vmatprep.subr.bf16.mxu0 0
        %619 = vmatpush2.bf16.msra.mxu0 0
        %620 = vmatprep.subr.bf16.mxu0 0
        %621 = vmatpush2.bf16.msra.mxu0 0
        %622 = vmatprep.subr.bf16.mxu0 0
        %623 = vmatpush2.bf16.msra.mxu0 0
        %624 = vmatprep.mubr.bf16.mxu0 0
        %625 = vmatmul.mubr.bf16.gmra.mxu0 %v565
        %v626 = vpop.f32.mrf.mxu0
        %v627 = vadd.f32 %v501, %v626
        %v628 = vpop.f32.mrf.mxu0
        %v629 = vpop.f32.mrf.mxu0
        %v630 = vadd.f32 %v504, %v629
        %v631 = vpop.f32.mrf.mxu0
        %632 = vmatprep.mubr.bf16.mxu0 0
        %633 = vmatmul.mubr.bf16.gmra.mxu0 %v568
        %v634 = vpop.f32.mrf.mxu0
        %v635 = vadd.f32 %v509, %v634
        %v636 = vpop.f32.mrf.mxu0
        %v637 = vpop.f32.mrf.mxu0
        %v638 = vadd.f32 %v512, %v637
        %v639 = vpop.f32.mrf.mxu0
        %640 = vmatprep.mubr.bf16.mxu0 0
        %641 = vmatmul.mubr.bf16.gmra.mxu0 %v571
        %v642 = vpop.f32.mrf.mxu0
        %v643 = vadd.f32 %v517, %v642
        %v644 = vpop.f32.mrf.mxu0
        %v645 = vpop.f32.mrf.mxu0
        %v646 = vadd.f32 %v520, %v645
        %v647 = vpop.f32.mrf.mxu0
        %648 = vmatprep.mubr.bf16.mxu0 0
        %649 = vmatmul.mubr.bf16.gmra.mxu0 %v574
        %v650 = vpop.f32.mrf.mxu0
        %v651 = vadd.f32 %v525, %v650
        %v652 = vpop.f32.mrf.mxu0
        %v653 = vpop.f32.mrf.mxu0
        %v654 = vadd.f32 %v528, %v653
        %v655 = vpop.f32.mrf.mxu0
        %656 = vmatprep.mubr.bf16.mxu0 0
        %657 = vmatmul.mubr.bf16.gmra.mxu0 %v577
        %v658 = vpop.f32.mrf.mxu0
        %v659 = vadd.f32 %v533, %v658
        %v660 = vpop.f32.mrf.mxu0
        %v661 = vpop.f32.mrf.mxu0
        %v662 = vadd.f32 %v536, %v661
        %v663 = vpop.f32.mrf.mxu0
        %664 = vmatprep.mubr.bf16.mxu0 0
        %665 = vmatmul.mubr.bf16.gmra.mxu0 %v580
        %v666 = vpop.f32.mrf.mxu0
        %v667 = vadd.f32 %v541, %v666
        %v668 = vpop.f32.mrf.mxu0
        %v669 = vpop.f32.mrf.mxu0
        %v670 = vadd.f32 %v544, %v669
        %v671 = vpop.f32.mrf.mxu0
        %672 = vmatprep.mubr.bf16.mxu0 0
        %673 = vmatmul.mubr.bf16.gmra.mxu0 %v583
        %v674 = vpop.f32.mrf.mxu0
        %v675 = vadd.f32 %v549, %v674
        %v676 = vpop.f32.mrf.mxu0
        %v677 = vpop.f32.mrf.mxu0
        %v678 = vadd.f32 %v552, %v677
        %v679 = vpop.f32.mrf.mxu0
        %680 = vmatprep.mubr.bf16.mxu0 0
        %681 = vmatmul.mubr.bf16.gmra.mxu0 %v586
        %v682 = vpop.f32.mrf.mxu0
        %v683 = vadd.f32 %v557, %v682
        %v684 = vpop.f32.mrf.mxu0
        %v685 = vpop.f32.mrf.mxu0
        %v686 = vadd.f32 %v560, %v685
        %v687 = vpop.f32.mrf.mxu0
        %688 = vdwg.mxu0
        %v689 = vld [vmem:[%s4] sm:$0x1]
        %v691 = vlaneseq
        %v692 = vshrl.u32 %v691, 7
        %v693 = vsub.s32 0, %v692
        %v694 = vrot.slane %v689, %v693
        %v696 = vadd.f32 %v627, %v694
        %v697 = vadd.f32 %v630, %v694
        %v698 = vadd.f32 %v635, %v694
        %v699 = vadd.f32 %v638, %v694
        %v700 = vadd.f32 %v643, %v694
        %v701 = vadd.f32 %v646, %v694
        %v702 = vadd.f32 %v651, %v694
        %v703 = vadd.f32 %v654, %v694
        %v704 = vadd.f32 %v659, %v694
        %v705 = vadd.f32 %v662, %v694
        %v706 = vadd.f32 %v667, %v694
        %v707 = vadd.f32 %v670, %v694
        %v708 = vadd.f32 %v675, %v694
        %v709 = vadd.f32 %v678, %v694
        %v710 = vadd.f32 %v683, %v694
        %v711 = vadd.f32 %v686, %v694
        %vm712 = vcmp.gt.f32.partialorder %v696, 0.0
        %vm713 = vcmp.gt.f32.partialorder %v697, 0.0
        %vm714 = vcmp.gt.f32.partialorder %v698, 0.0
        %vm715 = vcmp.gt.f32.partialorder %v699, 0.0
        %vm716 = vcmp.gt.f32.partialorder %v700, 0.0
        %vm717 = vcmp.gt.f32.partialorder %v701, 0.0
        %vm718 = vcmp.gt.f32.partialorder %v702, 0.0
        %vm719 = vcmp.gt.f32.partialorder %v703, 0.0
        %vm720 = vcmp.gt.f32.partialorder %v704, 0.0
        %vm721 = vcmp.gt.f32.partialorder %v705, 0.0
        %vm722 = vcmp.gt.f32.partialorder %v706, 0.0
        %vm723 = vcmp.gt.f32.partialorder %v707, 0.0
        %vm724 = vcmp.gt.f32.partialorder %v708, 0.0
        %vm725 = vcmp.gt.f32.partialorder %v709, 0.0
        %vm726 = vcmp.gt.f32.partialorder %v710, 0.0
        %vm727 = vcmp.gt.f32.partialorder %v711, 0.0
        %v728 = vmin.f32 %v696, 0.0
        %v729 = vmin.f32 %v697, 0.0
        %v730 = vmin.f32 %v698, 0.0
        %v731 = vmin.f32 %v699, 0.0
        %v732 = vmin.f32 %v700, 0.0
        %v733 = vmin.f32 %v701, 0.0
        %v734 = vmin.f32 %v702, 0.0
        %v735 = vmin.f32 %v703, 0.0
        %v736 = vmin.f32 %v704, 0.0
        %v737 = vmin.f32 %v705, 0.0
        %v738 = vmin.f32 %v706, 0.0
        %v739 = vmin.f32 %v707, 0.0
        %v740 = vmin.f32 %v708, 0.0
        %v741 = vmin.f32 %v709, 0.0
        %v742 = vmin.f32 %v710, 0.0
        %v743 = vmin.f32 %v711, 0.0
        %v744 = vmul.f32 %v728, 1.442695
        %v745 = vpow.pop %v744
        %v746 = vmul.f32 %v729, 1.442695
        %v747 = vpow.pop %v746
        %v748 = vmul.f32 %v730, 1.442695
        %v749 = vpow.pop %v748
        %v750 = vmul.f32 %v731, 1.442695
        %v751 = vpow.pop %v750
        %v752 = vmul.f32 %v732, 1.442695
        %v753 = vpow.pop %v752
        %v754 = vmul.f32 %v733, 1.442695
        %v755 = vpow.pop %v754
        %v756 = vmul.f32 %v734, 1.442695
        %v757 = vpow.pop %v756
        %v758 = vmul.f32 %v735, 1.442695
        %v759 = vpow.pop %v758
        %v760 = vmul.f32 %v736, 1.442695
        %v761 = vpow.pop %v760
        %v762 = vmul.f32 %v737, 1.442695
        %v763 = vpow.pop %v762
        %v764 = vmul.f32 %v738, 1.442695
        %v765 = vpow.pop %v764
        %v766 = vmul.f32 %v739, 1.442695
        %v767 = vpow.pop %v766
        %v768 = vmul.f32 %v740, 1.442695
        %v769 = vpow.pop %v768
        %v770 = vmul.f32 %v741, 1.442695
        %v771 = vpow.pop %v770
        %v772 = vmul.f32 %v742, 1.442695
        %v773 = vpow.pop %v772
        %v774 = vmul.f32 %v743, 1.442695
        %v775 = vpow.pop %v774
        %v776 = vsub.f32 %v745, 1.0
        %v777 = vsub.f32 %v747, 1.0
        %v778 = vsub.f32 %v749, 1.0
        %v779 = vsub.f32 %v751, 1.0
        %v780 = vsub.f32 %v753, 1.0
        %v781 = vsub.f32 %v755, 1.0
        %v782 = vsub.f32 %v757, 1.0
        %v783 = vsub.f32 %v759, 1.0
        %v784 = vsub.f32 %v761, 1.0
        %v785 = vsub.f32 %v763, 1.0
        %v786 = vsub.f32 %v765, 1.0
        %v787 = vsub.f32 %v767, 1.0
        %v788 = vsub.f32 %v769, 1.0
        %v789 = vsub.f32 %v771, 1.0
        %v790 = vsub.f32 %v773, 1.0
        %v791 = vsub.f32 %v775, 1.0
        %v792 = vsel %vm712, %v696, %v776
        %v793 = vsel %vm713, %v697, %v777
        %v794 = vsel %vm714, %v698, %v778
        %v795 = vsel %vm715, %v699, %v779
        %v796 = vsel %vm716, %v700, %v780
        %v797 = vsel %vm717, %v701, %v781
        %v798 = vsel %vm718, %v702, %v782
        %v799 = vsel %vm719, %v703, %v783
        %v800 = vsel %vm720, %v704, %v784
        %v801 = vsel %vm721, %v705, %v785
        %v802 = vsel %vm722, %v706, %v786
        %v803 = vsel %vm723, %v707, %v787
        %v804 = vsel %vm724, %v708, %v788
        %v805 = vsel %vm725, %v709, %v789
        %v806 = vsel %vm726, %v710, %v790
        %v807 = vsel %vm727, %v711, %v791
        %v808 = vsel %vm563, %v792, -inf
        %809 = vmax.xlane.f32.xlu0 %v808
        %v810 = vpop.xlane.xlu0 %809
        %v811 = vsel %vm563, %v793, -inf
        %812 = vmax.xlane.f32.xlu0 %v811
        %v813 = vpop.xlane.xlu0 %812
        %v814 = vsel %vm563, %v794, -inf
        %815 = vmax.xlane.f32.xlu0 %v814
        %v816 = vpop.xlane.xlu0 %815
        %v817 = vsel %vm563, %v795, -inf
        %818 = vmax.xlane.f32.xlu0 %v817
        %v819 = vpop.xlane.xlu0 %818
        %v820 = vsel %vm563, %v796, -inf
        %821 = vmax.xlane.f32.xlu0 %v820
        %v822 = vpop.xlane.xlu0 %821
        %v823 = vsel %vm563, %v797, -inf
        %824 = vmax.xlane.f32.xlu0 %v823
        %v825 = vpop.xlane.xlu0 %824
        %v826 = vsel %vm563, %v798, -inf
        %827 = vmax.xlane.f32.xlu0 %v826
        %v828 = vpop.xlane.xlu0 %827
        %v829 = vsel %vm563, %v799, -inf
        %830 = vmax.xlane.f32.xlu0 %v829
        %v831 = vpop.xlane.xlu0 %830
        %v832 = vsel %vm563, %v800, -inf
        %833 = vmax.xlane.f32.xlu0 %v832
        %v834 = vpop.xlane.xlu0 %833
        %v835 = vsel %vm563, %v801, -inf
        %836 = vmax.xlane.f32.xlu0 %v835
        %v837 = vpop.xlane.xlu0 %836
        %v838 = vsel %vm563, %v802, -inf
        %839 = vmax.xlane.f32.xlu0 %v838
        %v840 = vpop.xlane.xlu0 %839
        %v841 = vsel %vm563, %v803, -inf
        %842 = vmax.xlane.f32.xlu0 %v841
        %v843 = vpop.xlane.xlu0 %842
        %v844 = vsel %vm563, %v804, -inf
        %845 = vmax.xlane.f32.xlu0 %v844
        %v846 = vpop.xlane.xlu0 %845
        %v847 = vsel %vm563, %v805, -inf
        %848 = vmax.xlane.f32.xlu0 %v847
        %v849 = vpop.xlane.xlu0 %848
        %v850 = vsel %vm563, %v806, -inf
        %851 = vmax.xlane.f32.xlu0 %v850
        %v852 = vpop.xlane.xlu0 %851
        %v853 = vsel %vm563, %v807, -inf
        %854 = vmax.xlane.f32.xlu0 %v853
        %v855 = vpop.xlane.xlu0 %854
        %v856 = vsub.f32 %v792, %v810
        %v857 = vsub.f32 %v793, %v813
        %v858 = vsub.f32 %v794, %v816
        %v859 = vsub.f32 %v795, %v819
        %v860 = vsub.f32 %v796, %v822
        %v861 = vsub.f32 %v797, %v825
        %v862 = vsub.f32 %v798, %v828
        %v863 = vsub.f32 %v799, %v831
        %v864 = vsub.f32 %v800, %v834
        %v865 = vsub.f32 %v801, %v837
        %v866 = vsub.f32 %v802, %v840
        %v867 = vsub.f32 %v803, %v843
        %v868 = vsub.f32 %v804, %v846
        %v869 = vsub.f32 %v805, %v849
        %v870 = vsub.f32 %v806, %v852
        %v871 = vsub.f32 %v807, %v855
        %v872 = vmul.f32 %v856, 1.442695
        %v873 = vpow.pop %v872
        %v874 = vmul.f32 %v857, 1.442695
        %v875 = vpow.pop %v874
        %v876 = vmul.f32 %v858, 1.442695
        %v877 = vpow.pop %v876
        %v878 = vmul.f32 %v859, 1.442695
        %v879 = vpow.pop %v878
        %v880 = vmul.f32 %v860, 1.442695
        %v881 = vpow.pop %v880
        %v882 = vmul.f32 %v861, 1.442695
        %v883 = vpow.pop %v882
        %v884 = vmul.f32 %v862, 1.442695
        %v885 = vpow.pop %v884
        %v886 = vmul.f32 %v863, 1.442695
        %v887 = vpow.pop %v886
        %v888 = vmul.f32 %v864, 1.442695
        %v889 = vpow.pop %v888
        %v890 = vmul.f32 %v865, 1.442695
        %v891 = vpow.pop %v890
        %v892 = vmul.f32 %v866, 1.442695
        %v893 = vpow.pop %v892
        %v894 = vmul.f32 %v867, 1.442695
        %v895 = vpow.pop %v894
        %v896 = vmul.f32 %v868, 1.442695
        %v897 = vpow.pop %v896
        %v898 = vmul.f32 %v869, 1.442695
        %v899 = vpow.pop %v898
        %v900 = vmul.f32 %v870, 1.442695
        %v901 = vpow.pop %v900
        %v902 = vmul.f32 %v871, 1.442695
        %v903 = vpow.pop %v902
        %v904 = vsel %vm563, %v873, 0.0
        %905 = vadd.xlane.f32.xlu0 %v904
        %v906 = vpop.xlane.xlu0 %905
        %v907 = vsel %vm563, %v875, 0.0
        %908 = vadd.xlane.f32.xlu0 %v907
        %v909 = vpop.xlane.xlu0 %908
        %v910 = vsel %vm563, %v877, 0.0
        %911 = vadd.xlane.f32.xlu0 %v910
        %v912 = vpop.xlane.xlu0 %911
        %v913 = vsel %vm563, %v879, 0.0
        %914 = vadd.xlane.f32.xlu0 %v913
        %v915 = vpop.xlane.xlu0 %914
        %v916 = vsel %vm563, %v881, 0.0
        %917 = vadd.xlane.f32.xlu0 %v916
        %v918 = vpop.xlane.xlu0 %917
        %v919 = vsel %vm563, %v883, 0.0
        %920 = vadd.xlane.f32.xlu0 %v919
        %v921 = vpop.xlane.xlu0 %920
        %v922 = vsel %vm563, %v885, 0.0
        %923 = vadd.xlane.f32.xlu0 %v922
        %v924 = vpop.xlane.xlu0 %923
        %v925 = vsel %vm563, %v887, 0.0
        %926 = vadd.xlane.f32.xlu0 %v925
        %v927 = vpop.xlane.xlu0 %926
        %v928 = vsel %vm563, %v889, 0.0
        %929 = vadd.xlane.f32.xlu0 %v928
        %v930 = vpop.xlane.xlu0 %929
        %v931 = vsel %vm563, %v891, 0.0
        %932 = vadd.xlane.f32.xlu0 %v931
        %v933 = vpop.xlane.xlu0 %932
        %v934 = vsel %vm563, %v893, 0.0
        %935 = vadd.xlane.f32.xlu0 %v934
        %v936 = vpop.xlane.xlu0 %935
        %v937 = vsel %vm563, %v895, 0.0
        %938 = vadd.xlane.f32.xlu0 %v937
        %v939 = vpop.xlane.xlu0 %938
        %v940 = vsel %vm563, %v897, 0.0
        %941 = vadd.xlane.f32.xlu0 %v940
        %v942 = vpop.xlane.xlu0 %941
        %v943 = vsel %vm563, %v899, 0.0
        %944 = vadd.xlane.f32.xlu0 %v943
        %v945 = vpop.xlane.xlu0 %944
        %v946 = vsel %vm563, %v901, 0.0
        %947 = vadd.xlane.f32.xlu0 %v946
        %v948 = vpop.xlane.xlu0 %947
        %v949 = vsel %vm563, %v903, 0.0
        %950 = vadd.xlane.f32.xlu0 %v949
        %v951 = vpop.xlane.xlu0 %950
        %v952 = vrcp.pop %v906
        %v953 = vrcp.pop %v909
        %v954 = vrcp.pop %v912
        %v955 = vrcp.pop %v915
        %v956 = vrcp.pop %v918
        %v957 = vrcp.pop %v921
        %v958 = vrcp.pop %v924
        %v959 = vrcp.pop %v927
        %v960 = vrcp.pop %v930
        %v961 = vrcp.pop %v933
        %v962 = vrcp.pop %v936
        %v963 = vrcp.pop %v939
        %v964 = vrcp.pop %v942
        %v965 = vrcp.pop %v945
        %v966 = vrcp.pop %v948
        %v967 = vrcp.pop %v951
        %v968 = vmul.f32 %v873, %v952
        %v969 = vmul.f32 %v875, %v953
        %v970 = vmul.f32 %v877, %v954
        %v971 = vmul.f32 %v879, %v955
        %v972 = vmul.f32 %v881, %v956
        %v973 = vmul.f32 %v883, %v957
        %v974 = vmul.f32 %v885, %v958
        %v975 = vmul.f32 %v887, %v959
        %v976 = vmul.f32 %v889, %v960
        %v977 = vmul.f32 %v891, %v961
        %v978 = vmul.f32 %v893, %v962
        %v979 = vmul.f32 %v895, %v963
        %v980 = vmul.f32 %v897, %v964
        %v981 = vmul.f32 %v899, %v965
        %v982 = vmul.f32 %v901, %v966
        %v983 = vmul.f32 %v903, %v967
        %v984 = vmul.f32 %v968, %v400
        %v985 = vmul.f32 %v969, %v401
        %v986 = vmul.f32 %v970, %v402
        %v987 = vmul.f32 %v971, %v403
        %v988 = vmul.f32 %v972, %v404
        %v989 = vmul.f32 %v973, %v405
        %v990 = vmul.f32 %v974, %v406
        %v991 = vmul.f32 %v975, %v407
        %v992 = vmul.f32 %v976, %v408
        %v993 = vmul.f32 %v977, %v409
        %v994 = vmul.f32 %v978, %v410
        %v995 = vmul.f32 %v979, %v411
        %v996 = vmul.f32 %v980, %v412
        %v997 = vmul.f32 %v981, %v413
        %v998 = vmul.f32 %v982, %v414
        %v999 = vmul.f32 %v983, %v415
        %v1000 = vpack.c.bf16 %v985, %v984
        %v1001 = vpack.c.bf16 %v987, %v986
        %v1002 = vpack.c.bf16 %v989, %v988
        %v1003 = vpack.c.bf16 %v991, %v990
        %v1004 = vpack.c.bf16 %v993, %v992
        %v1005 = vpack.c.bf16 %v995, %v994
        %v1006 = vpack.c.bf16 %v997, %v996
        %v1007 = vpack.c.bf16 %v999, %v998
        %v1008 = vld [vmem:[%s5] sm:$0xf]
        %v1009 = vld [vmem:[%s5 + $0x4] sm:$0xf]
        %v1010 = vld [vmem:[%s6] sm:$0xf]
        %v1012 = vsel %vm563, %v1000, 0
        %v1015 = vsel %vm563, %v1001, 0
        %v1018 = vsel %vm563, %v1002, 0
        %v1021 = vsel %vm563, %v1003, 0
        %v1024 = vsel %vm563, %v1004, 0
        %v1027 = vsel %vm563, %v1005, 0
        %v1030 = vsel %vm563, %v1006, 0
        %v1033 = vsel %vm563, %v1007, 0
        %v1036 = vsel %vm588, %v1010, 0
        %1038 = vmatprep.subr.bf16.mxu0 0
        %1039 = vmatpush1.bf16.msra.mxu0 0
        %1040 = vmatprep.subr.bf16.mxu0 0
        %1041 = vmatpush1.bf16.msra.mxu0 0
        %1042 = vmatprep.subr.bf16.mxu0 0
        %1043 = vmatpush1.bf16.msra.mxu0 0
        %1044 = vmatprep.subr.bf16.mxu0 0
        %1045 = vmatpush1.bf16.msra.mxu0 0
        %1046 = vmatprep.subr.bf16.mxu0 0
        %1047 = vmatpush1.bf16.msra.mxu0 0
        %1048 = vmatprep.subr.bf16.mxu0 0
        %1049 = vmatpush1.bf16.msra.mxu0 0
        %1050 = vmatprep.subr.bf16.mxu0 0
        %1051 = vmatpush1.bf16.msra.mxu0 0
        %1052 = vmatprep.subr.bf16.mxu0 0
        %1053 = vmatpush1.bf16.msra.mxu0 %v1036
        %1054 = vmatprep.subr.bf16.mxu0 0
        %1055 = vmatpush2.bf16.msra.mxu0 0
        %1056 = vmatprep.subr.bf16.mxu0 0
        %1057 = vmatpush2.bf16.msra.mxu0 0
        %1058 = vmatprep.subr.bf16.mxu0 0
        %1059 = vmatpush2.bf16.msra.mxu0 0
        %1060 = vmatprep.subr.bf16.mxu0 0
        %1061 = vmatpush2.bf16.msra.mxu0 0
        %1062 = vmatprep.subr.bf16.mxu0 0
        %1063 = vmatpush2.bf16.msra.mxu0 0
        %1064 = vmatprep.subr.bf16.mxu0 0
        %1065 = vmatpush2.bf16.msra.mxu0 0
        %1066 = vmatprep.subr.bf16.mxu0 0
        %1067 = vmatpush2.bf16.msra.mxu0 0
        %1068 = vmatprep.subr.bf16.mxu0 0
        %1069 = vmatpush2.bf16.msra.mxu0 0
        %1070 = vmatprep.mubr.bf16.mxu0 0
        %1071 = vmatmul.mubr.bf16.gmra.mxu0 %v1012
        %v1072 = vpop.f32.mrf.mxu0
        %v1073 = vadd.f32 0.0, %v1072
        %v1074 = vpop.f32.mrf.mxu0
        %v1075 = vpop.f32.mrf.mxu0
        %v1076 = vadd.f32 0.0, %v1075
        %v1077 = vpop.f32.mrf.mxu0
        %1078 = vmatprep.mubr.bf16.mxu0 0
        %1079 = vmatmul.mubr.bf16.gmra.mxu0 %v1015
        %v1080 = vpop.f32.mrf.mxu0
        %v1081 = vadd.f32 0.0, %v1080
        %v1082 = vpop.f32.mrf.mxu0
        %v1083 = vpop.f32.mrf.mxu0
        %v1084 = vadd.f32 0.0, %v1083
        %v1085 = vpop.f32.mrf.mxu0
        %1086 = vmatprep.mubr.bf16.mxu0 0
        %1087 = vmatmul.mubr.bf16.gmra.mxu0 %v1018
        %v1088 = vpop.f32.mrf.mxu0
        %v1089 = vadd.f32 0.0, %v1088
        %v1090 = vpop.f32.mrf.mxu0
        %v1091 = vpop.f32.mrf.mxu0
        %v1092 = vadd.f32 0.0, %v1091
        %v1093 = vpop.f32.mrf.mxu0
        %1094 = vmatprep.mubr.bf16.mxu0 0
        %1095 = vmatmul.mubr.bf16.gmra.mxu0 %v1021
        %v1096 = vpop.f32.mrf.mxu0
        %v1097 = vadd.f32 0.0, %v1096
        %v1098 = vpop.f32.mrf.mxu0
        %v1099 = vpop.f32.mrf.mxu0
        %v1100 = vadd.f32 0.0, %v1099
        %v1101 = vpop.f32.mrf.mxu0
        %1102 = vmatprep.mubr.bf16.mxu0 0
        %1103 = vmatmul.mubr.bf16.gmra.mxu0 %v1024
        %v1104 = vpop.f32.mrf.mxu0
        %v1105 = vadd.f32 0.0, %v1104
        %v1106 = vpop.f32.mrf.mxu0
        %v1107 = vpop.f32.mrf.mxu0
        %v1108 = vadd.f32 0.0, %v1107
        %v1109 = vpop.f32.mrf.mxu0
        %1110 = vmatprep.mubr.bf16.mxu0 0
        %1111 = vmatmul.mubr.bf16.gmra.mxu0 %v1027
        %v1112 = vpop.f32.mrf.mxu0
        %v1113 = vadd.f32 0.0, %v1112
        %v1114 = vpop.f32.mrf.mxu0
        %v1115 = vpop.f32.mrf.mxu0
        %v1116 = vadd.f32 0.0, %v1115
        %v1117 = vpop.f32.mrf.mxu0
        %1118 = vmatprep.mubr.bf16.mxu0 0
        %1119 = vmatmul.mubr.bf16.gmra.mxu0 %v1030
        %v1120 = vpop.f32.mrf.mxu0
        %v1121 = vadd.f32 0.0, %v1120
        %v1122 = vpop.f32.mrf.mxu0
        %v1123 = vpop.f32.mrf.mxu0
        %v1124 = vadd.f32 0.0, %v1123
        %v1125 = vpop.f32.mrf.mxu0
        %1126 = vmatprep.mubr.bf16.mxu0 0
        %1127 = vmatmul.mubr.bf16.gmra.mxu0 %v1033
        %v1128 = vpop.f32.mrf.mxu0
        %v1129 = vadd.f32 0.0, %v1128
        %v1130 = vpop.f32.mrf.mxu0
        %v1131 = vpop.f32.mrf.mxu0
        %v1132 = vadd.f32 0.0, %v1131
        %v1133 = vpop.f32.mrf.mxu0
        %1134 = vdwg.mxu0
        %v1137 = vunpack.c.l.b16 %v1008
        %v1138 = vunpack.c.l.b16 %v1009
        %v1139 = vpack.c.b16 %v1138, %v1137
        %1141 = vmatprep.subr.bf16.mxu0 0
        %1142 = vmatpush1.bf16.msra.mxu0 0
        %1143 = vmatprep.subr.bf16.mxu0 0
        %1144 = vmatpush1.bf16.msra.mxu0 0
        %1145 = vmatprep.subr.bf16.mxu0 0
        %1146 = vmatpush1.bf16.msra.mxu0 0
        %1147 = vmatprep.subr.bf16.mxu0 0
        %1148 = vmatpush1.bf16.msra.mxu0 0
        %1149 = vmatprep.subr.bf16.mxu0 0
        %1150 = vmatpush1.bf16.msra.mxu0 0
        %1151 = vmatprep.subr.bf16.mxu0 0
        %1152 = vmatpush1.bf16.msra.mxu0 0
        %1153 = vmatprep.subr.bf16.mxu0 0
        %1154 = vmatpush1.bf16.msra.mxu0 0
        %1155 = vmatprep.subr.bf16.mxu0 0
        %1156 = vmatpush1.bf16.msra.mxu0 %v1139
        %1157 = vmatprep.subr.bf16.mxu0 0
        %1158 = vmatpush2.bf16.msra.mxu0 0
        %1159 = vmatprep.subr.bf16.mxu0 0
        %1160 = vmatpush2.bf16.msra.mxu0 0
        %1161 = vmatprep.subr.bf16.mxu0 0
        %1162 = vmatpush2.bf16.msra.mxu0 0
        %1163 = vmatprep.subr.bf16.mxu0 0
        %1164 = vmatpush2.bf16.msra.mxu0 0
        %1165 = vmatprep.subr.bf16.mxu0 0
        %1166 = vmatpush2.bf16.msra.mxu0 0
        %1167 = vmatprep.subr.bf16.mxu0 0
        %1168 = vmatpush2.bf16.msra.mxu0 0
        %1169 = vmatprep.subr.bf16.mxu0 0
        %1170 = vmatpush2.bf16.msra.mxu0 0
        %1171 = vmatprep.subr.bf16.mxu0 0
        %1172 = vmatpush2.bf16.msra.mxu0 0
        %1173 = vmatprep.mubr.bf16.mxu0 0
        %1174 = vmatmul.mubr.bf16.gmra.mxu0 %v443
        %v1175 = vpop.f32.mrf.mxu0
        %v1176 = vadd.f32 %v1073, %v1175
        %v1177 = vpop.f32.mrf.mxu0
        %v1178 = vpop.f32.mrf.mxu0
        %v1179 = vadd.f32 %v1076, %v1178
        %v1180 = vpop.f32.mrf.mxu0
        %1181 = vmatprep.mubr.bf16.mxu0 0
        %1182 = vmatmul.mubr.bf16.gmra.mxu0 %v446
        %v1183 = vpop.f32.mrf.mxu0
        %v1184 = vadd.f32 %v1081, %v1183
        %v1185 = vpop.f32.mrf.mxu0
        %v1186 = vpop.f32.mrf.mxu0
        %v1187 = vadd.f32 %v1084, %v1186
        %v1188 = vpop.f32.mrf.mxu0
        %1189 = vmatprep.mubr.bf16.mxu0 0
        %1190 = vmatmul.mubr.bf16.gmra.mxu0 %v449
        %v1191 = vpop.f32.mrf.mxu0
        %v1192 = vadd.f32 %v1089, %v1191
        %v1193 = vpop.f32.mrf.mxu0
        %v1194 = vpop.f32.mrf.mxu0
        %v1195 = vadd.f32 %v1092, %v1194
        %v1196 = vpop.f32.mrf.mxu0
        %1197 = vmatprep.mubr.bf16.mxu0 0
        %1198 = vmatmul.mubr.bf16.gmra.mxu0 %v452
        %v1199 = vpop.f32.mrf.mxu0
        %v1200 = vadd.f32 %v1097, %v1199
        %v1201 = vpop.f32.mrf.mxu0
        %v1202 = vpop.f32.mrf.mxu0
        %v1203 = vadd.f32 %v1100, %v1202
        %v1204 = vpop.f32.mrf.mxu0
        %1205 = vmatprep.mubr.bf16.mxu0 0
        %1206 = vmatmul.mubr.bf16.gmra.mxu0 %v455
        %v1207 = vpop.f32.mrf.mxu0
        %v1208 = vadd.f32 %v1105, %v1207
        %v1209 = vpop.f32.mrf.mxu0
        %v1210 = vpop.f32.mrf.mxu0
        %v1211 = vadd.f32 %v1108, %v1210
        %v1212 = vpop.f32.mrf.mxu0
        %1213 = vmatprep.mubr.bf16.mxu0 0
        %1214 = vmatmul.mubr.bf16.gmra.mxu0 %v458
        %v1215 = vpop.f32.mrf.mxu0
        %v1216 = vadd.f32 %v1113, %v1215
        %v1217 = vpop.f32.mrf.mxu0
        %v1218 = vpop.f32.mrf.mxu0
        %v1219 = vadd.f32 %v1116, %v1218
        %v1220 = vpop.f32.mrf.mxu0
        %1221 = vmatprep.mubr.bf16.mxu0 0
        %1222 = vmatmul.mubr.bf16.gmra.mxu0 %v461
        %v1223 = vpop.f32.mrf.mxu0
        %v1224 = vadd.f32 %v1121, %v1223
        %v1225 = vpop.f32.mrf.mxu0
        %v1226 = vpop.f32.mrf.mxu0
        %v1227 = vadd.f32 %v1124, %v1226
        %v1228 = vpop.f32.mrf.mxu0
        %1229 = vmatprep.mubr.bf16.mxu0 0
        %1230 = vmatmul.mubr.bf16.gmra.mxu0 %v464
        %v1231 = vpop.f32.mrf.mxu0
        %v1232 = vadd.f32 %v1129, %v1231
        %v1233 = vpop.f32.mrf.mxu0
        %v1234 = vpop.f32.mrf.mxu0
        %v1235 = vadd.f32 %v1132, %v1234
        %v1236 = vpop.f32.mrf.mxu0
        %1237 = vdwg.mxu0
        %v1238 = vld [vmem:[%s7] sm:$0x1]
        %v1240 = vlaneseq
        %v1241 = vshrl.u32 %v1240, 7
        %v1242 = vsub.s32 0, %v1241
        %v1243 = vrot.slane %v1238, %v1242
        %v1245 = vadd.f32 %v1176, %v1243
        %v1246 = vadd.f32 %v1179, %v1243
        %v1247 = vadd.f32 %v1184, %v1243
        %v1248 = vadd.f32 %v1187, %v1243
        %v1249 = vadd.f32 %v1192, %v1243
        %v1250 = vadd.f32 %v1195, %v1243
        %v1251 = vadd.f32 %v1200, %v1243
        %v1252 = vadd.f32 %v1203, %v1243
        %v1253 = vadd.f32 %v1208, %v1243
        %v1254 = vadd.f32 %v1211, %v1243
        %v1255 = vadd.f32 %v1216, %v1243
        %v1256 = vadd.f32 %v1219, %v1243
        %v1257 = vadd.f32 %v1224, %v1243
        %v1258 = vadd.f32 %v1227, %v1243
        %v1259 = vadd.f32 %v1232, %v1243
        %v1260 = vadd.f32 %v1235, %v1243
        %v1261 = vtanh.pop %v1245
        %v1262 = vtanh.pop %v1246
        %v1263 = vtanh.pop %v1247
        %v1264 = vtanh.pop %v1248
        %v1265 = vtanh.pop %v1249
        %v1266 = vtanh.pop %v1250
        %v1267 = vtanh.pop %v1251
        %v1268 = vtanh.pop %v1252
        %v1269 = vtanh.pop %v1253
        %v1270 = vtanh.pop %v1254
        %v1271 = vtanh.pop %v1255
        %v1272 = vtanh.pop %v1256
        %v1273 = vtanh.pop %v1257
        %v1274 = vtanh.pop %v1258
        %v1275 = vtanh.pop %v1259
        %v1276 = vtanh.pop %v1260
        %v1277 = vpack.c.bf16 %v1262, %v1261
        %v1278 = vpack.c.bf16 %v1264, %v1263
        %v1279 = vpack.c.bf16 %v1266, %v1265
        %v1280 = vpack.c.bf16 %v1268, %v1267
        %v1281 = vpack.c.bf16 %v1270, %v1269
        %v1282 = vpack.c.bf16 %v1272, %v1271
        %v1283 = vpack.c.bf16 %v1274, %v1273
        %v1284 = vpack.c.bf16 %v1276, %v1275
        %v1285 = vld [vmem:[%s8] sm:$0xf]
        %v1286 = vld [vmem:[%s8 + $0x4] sm:$0xf]
        %v1287 = vld [vmem:[%s8 + $0x8] sm:$0xf]
        %v1288 = vld [vmem:[%s8 + $0xc] sm:$0xf]
        %v1289 = vld [vmem:[%s8 + $0x10] sm:$0xf]
        %v1290 = vld [vmem:[%s8 + $0x14] sm:$0xf]
        %v1291 = vld [vmem:[%s8 + $0x18] sm:$0xf]
        %v1292 = vld [vmem:[%s8 + $0x1c] sm:$0xf]
        %v1293 = vld [vmem:[%s8 + $0x20] sm:$0xf]
        %v1294 = vld [vmem:[%s8 + $0x24] sm:$0xf]
        %v1295 = vld [vmem:[%s8 + $0x28] sm:$0xf]
        %v1296 = vld [vmem:[%s8 + $0x2c] sm:$0xf]
        %v1297 = vld [vmem:[%s8 + $0x30] sm:$0xf]
        %v1298 = vld [vmem:[%s8 + $0x34] sm:$0xf]
        %v1299 = vld [vmem:[%s8 + $0x38] sm:$0xf]
        %v1300 = vld [vmem:[%s8 + $0x3c] sm:$0xf]
        %v1301 = vld [vmem:[%s9] sm:$0x1]
        %v1303 = vlaneseq
        %v1304 = vshrl.u32 %v1303, 7
        %v1305 = vsub.s32 0, %v1304
        %v1306 = vrot.slane %v1301, %v1305
        %v1324 = vunpack.c.l.b16 %v1285
        %v1325 = vunpack.c.l.b16 %v1286
        %v1326 = vunpack.c.l.b16 %v1287
        %v1327 = vunpack.c.l.b16 %v1288
        %v1328 = vunpack.c.l.b16 %v1289
        %v1329 = vunpack.c.l.b16 %v1290
        %v1330 = vunpack.c.l.b16 %v1291
        %v1331 = vunpack.c.l.b16 %v1292
        %v1332 = vunpack.c.l.b16 %v1293
        %v1333 = vunpack.c.l.b16 %v1294
        %v1334 = vunpack.c.l.b16 %v1295
        %v1335 = vunpack.c.l.b16 %v1296
        %v1336 = vunpack.c.l.b16 %v1297
        %v1337 = vunpack.c.l.b16 %v1298
        %v1338 = vunpack.c.l.b16 %v1299
        %v1339 = vunpack.c.l.b16 %v1300
        %v1340 = vpack.c.b16 %v1325, %v1324
        %v1341 = vpack.c.b16 %v1327, %v1326
        %v1342 = vpack.c.b16 %v1329, %v1328
        %v1343 = vpack.c.b16 %v1331, %v1330
        %v1344 = vpack.c.b16 %v1333, %v1332
        %v1345 = vpack.c.b16 %v1335, %v1334
        %v1346 = vpack.c.b16 %v1337, %v1336
        %v1347 = vpack.c.b16 %v1339, %v1338
        %1356 = vmatprep.subr.bf16.mxu0 0
        %1357 = vmatpush1.bf16.msra.mxu0 %v1347
        %1358 = vmatprep.subr.bf16.mxu0 0
        %1359 = vmatpush1.bf16.msra.mxu0 %v1346
        %1360 = vmatprep.subr.bf16.mxu0 0
        %1361 = vmatpush1.bf16.msra.mxu0 %v1345
        %1362 = vmatprep.subr.bf16.mxu0 0
        %1363 = vmatpush1.bf16.msra.mxu0 %v1344
        %1364 = vmatprep.subr.bf16.mxu0 0
        %1365 = vmatpush1.bf16.msra.mxu0 %v1343
        %1366 = vmatprep.subr.bf16.mxu0 0
        %1367 = vmatpush1.bf16.msra.mxu0 %v1342
        %1368 = vmatprep.subr.bf16.mxu0 0
        %1369 = vmatpush1.bf16.msra.mxu0 %v1341
        %1370 = vmatprep.subr.bf16.mxu0 0
        %1371 = vmatpush1.bf16.msra.mxu0 %v1340
        %1372 = vmatprep.subr.bf16.mxu0 0
        %1373 = vmatpush2.bf16.msra.mxu0 0
        %1374 = vmatprep.subr.bf16.mxu0 0
        %1375 = vmatpush2.bf16.msra.mxu0 0
        %1376 = vmatprep.subr.bf16.mxu0 0
        %1377 = vmatpush2.bf16.msra.mxu0 0
        %1378 = vmatprep.subr.bf16.mxu0 0
        %1379 = vmatpush2.bf16.msra.mxu0 0
        %1380 = vmatprep.subr.bf16.mxu0 0
        %1381 = vmatpush2.bf16.msra.mxu0 0
        %1382 = vmatprep.subr.bf16.mxu0 0
        %1383 = vmatpush2.bf16.msra.mxu0 0
        %1384 = vmatprep.subr.bf16.mxu0 0
        %1385 = vmatpush2.bf16.msra.mxu0 0
        %1386 = vmatprep.subr.bf16.mxu0 0
        %1387 = vmatpush2.bf16.msra.mxu0 0
        %1388 = vmatprep.mubr.bf16.mxu0 0
        %1389 = vmatmul.mubr.bf16.gmra.mxu0 %v1277
        %v1390 = vpop.f32.mrf.mxu0
        %v1391 = vadd.f32 %v1306, %v1390
        %v1392 = vpop.f32.mrf.mxu0
        %v1393 = vpop.f32.mrf.mxu0
        %v1394 = vadd.f32 %v1306, %v1393
        %v1395 = vpop.f32.mrf.mxu0
        %1396 = vmatprep.mubr.bf16.mxu0 0
        %1397 = vmatmul.mubr.bf16.gmra.mxu0 %v1278
        %v1398 = vpop.f32.mrf.mxu0
        %v1399 = vadd.f32 %v1306, %v1398
        %v1400 = vpop.f32.mrf.mxu0
        %v1401 = vpop.f32.mrf.mxu0
        %v1402 = vadd.f32 %v1306, %v1401
        %v1403 = vpop.f32.mrf.mxu0
        %1404 = vmatprep.mubr.bf16.mxu0 0
        %1405 = vmatmul.mubr.bf16.gmra.mxu0 %v1279
        %v1406 = vpop.f32.mrf.mxu0
        %v1407 = vadd.f32 %v1306, %v1406
        %v1408 = vpop.f32.mrf.mxu0
        %v1409 = vpop.f32.mrf.mxu0
        %v1410 = vadd.f32 %v1306, %v1409
        %v1411 = vpop.f32.mrf.mxu0
        %1412 = vmatprep.mubr.bf16.mxu0 0
        %1413 = vmatmul.mubr.bf16.gmra.mxu0 %v1280
        %v1414 = vpop.f32.mrf.mxu0
        %v1415 = vadd.f32 %v1306, %v1414
        %v1416 = vpop.f32.mrf.mxu0
        %v1417 = vpop.f32.mrf.mxu0
        %v1418 = vadd.f32 %v1306, %v1417
        %v1419 = vpop.f32.mrf.mxu0
        %1420 = vmatprep.mubr.bf16.mxu0 0
        %1421 = vmatmul.mubr.bf16.gmra.mxu0 %v1281
        %v1422 = vpop.f32.mrf.mxu0
        %v1423 = vadd.f32 %v1306, %v1422
        %v1424 = vpop.f32.mrf.mxu0
        %v1425 = vpop.f32.mrf.mxu0
        %v1426 = vadd.f32 %v1306, %v1425
        %v1427 = vpop.f32.mrf.mxu0
        %1428 = vmatprep.mubr.bf16.mxu0 0
        %1429 = vmatmul.mubr.bf16.gmra.mxu0 %v1282
        %v1430 = vpop.f32.mrf.mxu0
        %v1431 = vadd.f32 %v1306, %v1430
        %v1432 = vpop.f32.mrf.mxu0
        %v1433 = vpop.f32.mrf.mxu0
        %v1434 = vadd.f32 %v1306, %v1433
        %v1435 = vpop.f32.mrf.mxu0
        %1436 = vmatprep.mubr.bf16.mxu0 0
        %1437 = vmatmul.mubr.bf16.gmra.mxu0 %v1283
        %v1438 = vpop.f32.mrf.mxu0
        %v1439 = vadd.f32 %v1306, %v1438
        %v1440 = vpop.f32.mrf.mxu0
        %v1441 = vpop.f32.mrf.mxu0
        %v1442 = vadd.f32 %v1306, %v1441
        %v1443 = vpop.f32.mrf.mxu0
        %1444 = vmatprep.mubr.bf16.mxu0 0
        %1445 = vmatmul.mubr.bf16.gmra.mxu0 %v1284
        %v1446 = vpop.f32.mrf.mxu0
        %v1447 = vadd.f32 %v1306, %v1446
        %v1448 = vpop.f32.mrf.mxu0
        %v1449 = vpop.f32.mrf.mxu0
        %v1450 = vadd.f32 %v1306, %v1449
        %v1451 = vpop.f32.mrf.mxu0
        %1452 = vdwg.mxu0
        %1453 = vst [vmem:[%s369] sm:$0xff] %v1391
        %1454 = vst [vmem:[%s369 + $0x8] sm:$0xff] %v1394
        %1455 = vst [vmem:[%s369 + $0x10] sm:$0xff] %v1399
        %1456 = vst [vmem:[%s369 + $0x18] sm:$0xff] %v1402
        %1457 = vst [vmem:[%s369 + $0x20] sm:$0xff] %v1407
        %1458 = vst [vmem:[%s369 + $0x28] sm:$0xff] %v1410
        %1459 = vst [vmem:[%s369 + $0x30] sm:$0xff] %v1415
        %1460 = vst [vmem:[%s369 + $0x38] sm:$0xff] %v1418
        %1461 = vst [vmem:[%s369 + $0x40] sm:$0xff] %v1423
        %1462 = vst [vmem:[%s369 + $0x48] sm:$0xff] %v1426
        %1463 = vst [vmem:[%s369 + $0x50] sm:$0xff] %v1431
        %1464 = vst [vmem:[%s369 + $0x58] sm:$0xff] %v1434
        %1465 = vst [vmem:[%s369 + $0x60] sm:$0xff] %v1439
        %1466 = vst [vmem:[%s369 + $0x68] sm:$0xff] %v1442
        %1467 = vst [vmem:[%s369 + $0x70] sm:$0xff] %v1447
        %1468 = vst [vmem:[%s369 + $0x78] sm:$0xff] %v1450
        %s1469 = sand.u32 %s252, 1
        %s1470 = scalar_lea.sflag [#allocation3], %s1469
        %s1471 = sand.u32 %s252, 1
        %s1472 = smul.addr %s1471, 128
        %s1473 = scalar_lea.vmem [#allocation2], %s1472
        // Predicated region
        $region61: #{tpu_custom_call.1} parent=59 // pred_check
          %p1474 = pneg %p262
        $region62: #{tpu_custom_call.1} parent=59 // pred_check_branch
          %1476 = sbr.rel (%p1474) target = $region64
        $region63: #{tpu_custom_call.1} parent=59 // pred_region
          %s1477 = smul.u32 16, %s24
          %s1479 = ssub.s32 2048, 2048
          %1480 = vsyncadd %s1470, %s1479
          %s1481 = smul.addr %s1477, 128
          %s1482 = scalar_lea.hbm %s10, %s1481
          %s1483 = sshll.u32 %s1473, 4
          %s1484 = int_to_ptr.vmem [resolvable:$true] %s1483
          %1489 = dma.vmem_to_hbm [thread:$0]  %s1484, 2048, %s1482, %s1470, 128, 128, 8
        $region64: #{tpu_custom_call.1} parent=59 // pred_fallthru
          _
      $region60: #{tpu_custom_call.1} parent=5 // pred_fallthru
        _
      %p1490 = scmp.le.s32.totalorder 2, %s19
      // Predicated region
      $region65: #{tpu_custom_call.1} parent=5 // pred_check
        %p1491 = pneg %p1490
      $region66: #{tpu_custom_call.1} parent=5 // pred_check_branch
        %1493 = sbr.rel (%p1491) target = $region68
      $region67: #{tpu_custom_call.1} parent=5 // pred_region
        %s1494 = ssub.s32 %s19, 2
        // Predicated region
        $region69: #{tpu_custom_call.1} parent=67 // pred_check
          %p1495 = pneg %p268
        $region70: #{tpu_custom_call.1} parent=67 // pred_check_branch
          %1497 = sbr.rel (%p1495) target = $region72
        $region71: #{tpu_custom_call.1} parent=67 // pred_region
          %s1498 = sand.u32 %s253, 1
          %s1499 = scalar_lea.sflag [#allocation3], %s1498
          %s1500 = sand.u32 %s253, 1
          %s1501 = smul.addr %s1500, 128
          %s1502 = scalar_lea.vmem [#allocation2], %s1501
          %1503 = dma.done %s1499, 2048
        $region72: #{tpu_custom_call.1} parent=67 // pred_fallthru
          _
      $region68: #{tpu_custom_call.1} parent=5 // pred_fallthru
        _
    $region6: #{tpu_custom_call.1} parent=1 // loop_footer
      %s23 = sadd.s32 1, %s19
    $region7: #{tpu_custom_call.1} parent=1 // loop_footer_branch
      %18 = sbr.rel target = $region3
    $region8: #{tpu_custom_call.1} parent=1 // loop_exit
      _
    %1504 = vsyncpa [#allocation3], 1
    %s1505 = scalar_lea.sflag [#allocation3], 1
    %1506 = vsyncpa %s1505, 1

</llo_original>
